<compile_context>
chip_gen: v5e
topology: v5e:2x2
jax: 0.10.0
libtpu: 0.0.40
codegen_flags: <defaults>
</compile_context>

<pallas_src>
import math

import jax
import jax.numpy as jnp
from jax.experimental import pallas as pl
from jax.experimental.pallas import tpu as pltpu


def _residual_cc_block_kernel(
    xp_ref,      # (1, H+2, W+2, C1)   zero-padded input with coord channels appended
    coords_ref,  # (H, W, 2)           [xx, yy] coordinate planes
    w1_ref,      # (9, C1, P)          conv1 weights, per-tap (in, out) matrices
    b1_ref,      # (1, P)
    w2_ref,      # (9, C2, P)          conv2 weights, per-tap (in, out) matrices
    b2_ref,      # (1, P)
    wp_ref,      # (C1, P)             1x1 proj weight (zero rows for coord channels)
    bp_ref,      # (1, P)
    sel_ref,     # (Ho*Wo, H*W)        0/1 stride-2 subsampling matrix
    out_ref,     # (1, Ho*Wo, P)
    pad2_ref,    # VMEM scratch (H+2, W+2, C2)
):
    H = xp_ref.shape[1] - 2
    W = xp_ref.shape[2] - 2
    C1 = xp_ref.shape[3]
    C2 = w2_ref.shape[1]
    P = w1_ref.shape[2]

    # ---- CoordConv #1: 3x3, stride 1, pad 1, + LeakyReLU(0.2) --------------
    acc1 = jnp.zeros((H * W, P), jnp.float32)
    for dy in range(3):
        for dx in range(3):
            patch = xp_ref[0, dy:dy + H, dx:dx + W, :].reshape(H * W, C1)
            acc1 = acc1 + jnp.dot(patch, w1_ref[3 * dy + dx],
                                  preferred_element_type=jnp.float32)
    acc1 = acc1 + b1_ref[...]
    y1 = jnp.maximum(acc1, 0.2 * acc1)                       # LeakyReLU(0.2)

    # ---- AddCoords + zero-pad for conv #2, staged in VMEM scratch ----------
    pad2_ref[...] = jnp.zeros_like(pad2_ref)
    pad2_ref[1:H + 1, 1:W + 1, 0:P] = y1.reshape(H, W, P)
    pad2_ref[1:H + 1, 1:W + 1, P:P + 2] = coords_ref[...]

    # ---- CoordConv #2: 3x3, stride 2, pad 1, + LeakyReLU(0.2) --------------
    # Computed densely at stride 1, then subsampled by a 0/1 selection matmul.
    acc2 = jnp.zeros((H * W, P), jnp.float32)
    for dy in range(3):
        for dx in range(3):
            patch = pad2_ref[dy:dy + H, dx:dx + W, :].reshape(H * W, C2)
            acc2 = acc2 + jnp.dot(patch, w2_ref[3 * dy + dx],
                                  preferred_element_type=jnp.float32)
    acc2 = acc2 + b2_ref[...]
    y2 = jnp.maximum(acc2, 0.2 * acc2)
    y2s = jnp.dot(sel_ref[...], y2, preferred_element_type=jnp.float32)   # (Ho*Wo, P)

    # ---- proj: 1x1 conv, stride 2, on the raw input ------------------------
    x_flat = xp_ref[0, 1:H + 1, 1:W + 1, :].reshape(H * W, C1)
    x_sub = jnp.dot(sel_ref[...], x_flat, preferred_element_type=jnp.float32)
    ident = jnp.dot(x_sub, wp_ref[...], preferred_element_type=jnp.float32) + bp_ref[...]

    # ---- residual combine: (y + identity) / sqrt(2) ------------------------
    out_ref[0] = ((y2s + ident) * (1.0 / math.sqrt(2.0))).astype(out_ref.dtype)


@jax.jit
def residual_cc_block_forward(x, w1, b1, w2, b2, wp, bp):
    """ResidualCCBlock forward. x: (N, C_in, H, W); weights in PyTorch OIHW layout."""
    f32 = jnp.float32
    N, C_in, H, W = x.shape
    planes = w1.shape[0]
    C1 = C_in + 2
    C2 = planes + 2
    Ho = (H - 1) // 2 + 1
    Wo = (W - 1) // 2 + 1

    # AddCoords planes: xx varies along H, yy varies along W, both in [-1, 1].
    xx = jnp.broadcast_to(
        (2.0 * jnp.arange(H, dtype=f32) / (H - 1) - 1.0)[:, None], (H, W))
    yy = jnp.broadcast_to(
        (2.0 * jnp.arange(W, dtype=f32) / (W - 1) - 1.0)[None, :], (H, W))
    coords = jnp.stack([xx, yy], axis=-1)                                 # (H, W, 2)

    # NCHW -> NHWC (TPU-friendly channels-in-lanes), append coords, zero-pad by 1.
    x_nhwc = jnp.transpose(x, (0, 2, 3, 1)).astype(f32)
    xc = jnp.concatenate(
        [x_nhwc, jnp.broadcast_to(coords, (N, H, W, 2))], axis=-1)        # (N, H, W, C1)
    xp = jnp.pad(xc, ((0, 0), (1, 1), (1, 1), (0, 0)))                    # (N, H+2, W+2, C1)

    # Conv weights OIHW -> per-tap (in, out) matmul form.
    w1_t = jnp.transpose(w1, (2, 3, 1, 0)).reshape(9, C1, planes)
    w2_t = jnp.transpose(w2, (2, 3, 1, 0)).reshape(9, C2, planes)
    # 1x1 projection: (out, in, 1, 1) -> (in, out); zero rows kill the coord channels
    # so the kernel can reuse the coord-augmented input for the residual path.
    wp_t = jnp.concatenate(
        [jnp.transpose(wp.reshape(planes, C_in), (1, 0)),
         jnp.zeros((2, planes), f32)], axis=0)                            # (C1, planes)
    b1_t = b1.reshape(1, planes)
    b2_t = b2.reshape(1, planes)
    bp_t = bp.reshape(1, planes)

    # Stride-2 subsampling over flattened H*W as a 0/1 selection matrix.
    r = jnp.arange(Ho * Wo)
    src = 2 * (r // Wo) * W + 2 * (r % Wo)
    sel = (src[:, None] == jnp.arange(H * W)[None, :]).astype(f32)        # (Ho*Wo, H*W)

    out_flat = pl.pallas_call(
        _residual_cc_block_kernel,
        out_shape=jax.ShapeDtypeStruct((N, Ho * Wo, planes), f32),
        grid_spec=pltpu.PrefetchScalarGridSpec(
            num_scalar_prefetch=0,
            grid=(N,),
            in_specs=[
                pl.BlockSpec((1, H + 2, W + 2, C1), lambda n: (n, 0, 0, 0)),
                pl.BlockSpec((H, W, 2), lambda n: (0, 0, 0)),
                pl.BlockSpec((9, C1, planes), lambda n: (0, 0, 0)),
                pl.BlockSpec((1, planes), lambda n: (0, 0)),
                pl.BlockSpec((9, C2, planes), lambda n: (0, 0, 0)),
                pl.BlockSpec((1, planes), lambda n: (0, 0)),
                pl.BlockSpec((C1, planes), lambda n: (0, 0)),
                pl.BlockSpec((1, planes), lambda n: (0, 0)),
                pl.BlockSpec((Ho * Wo, H * W), lambda n: (0, 0)),
            ],
            out_specs=pl.BlockSpec((1, Ho * Wo, planes), lambda n: (n, 0, 0)),
            scratch_shapes=[pltpu.VMEM((H + 2, W + 2, C2), jnp.float32)],
        ),
        compiler_params=pltpu.CompilerParams(
            dimension_semantics=("parallel",)),
    )(xp, coords, w1_t, b1_t, w2_t, b2_t, wp_t, bp_t, sel)

    # (N, Ho*Wo, planes) -> NCHW to match the PyTorch module's interface.
    return jnp.transpose(out_flat.reshape(N, Ho, Wo, planes), (0, 3, 1, 2))


def init_params(key, inplanes, planes):
    """PyTorch Conv2d default init: U(-1/sqrt(fan_in), 1/sqrt(fan_in))."""
    ks = jax.random.split(key, 6)

    def conv_init(kw_key, kb_key, out_c, in_c, kh, kw):
        fan_in = in_c * kh * kw
        bound = 1.0 / math.sqrt(fan_in)
        w = jax.random.uniform(kw_key, (out_c, in_c, kh, kw), jnp.float32, -bound, bound)
        b = jax.random.uniform(kb_key, (out_c,), jnp.float32, -bound, bound)
        return w, b

    w1, b1 = conv_init(ks[0], ks[1], planes, inplanes + 2, 3, 3)
    w2, b2 = conv_init(ks[2], ks[3], planes, planes + 2, 3, 3)
    wp, bp = conv_init(ks[4], ks[5], planes, inplanes, 1, 1)
    return w1, b1, w2, b2, wp, bp


def _reference_forward(x, w1, b1, w2, b2, wp, bp):
    """Pure-JAX reference (XLA convs) mirroring the PyTorch module."""
    f32 = jnp.float32
    N, C_in, H, W = x.shape

    def leaky(v):
        return jnp.where(v >= 0, v, 0.2 * v)

    xx = jnp.broadcast_to(
        (2.0 * jnp.arange(H, dtype=f32) / (H - 1) - 1.0)[None, None, :, None],
        (N, 1, H, W))
    yy = jnp.broadcast_to(
        (2.0 * jnp.arange(W, dtype=f32) / (W - 1) - 1.0)[None, None, None, :],
        (N, 1, H, W))
    dn = ("NCHW", "OIHW", "NCHW")

    x1 = jnp.concatenate([x, xx, yy], axis=1)
    y1 = jax.lax.conv_general_dilated(x1, w1, (1, 1), ((1, 1), (1, 1)),
                                      dimension_numbers=dn)
    y1 = leaky(y1 + b1[None, :, None, None])

    x2 = jnp.concatenate([y1, xx, yy], axis=1)
    y2 = jax.lax.conv_general_dilated(x2, w2, (2, 2), ((1, 1), (1, 1)),
                                      dimension_numbers=dn)
    y2 = leaky(y2 + b2[None, :, None, None])

    ident = jax.lax.conv_general_dilated(x, wp, (2, 2), ((0, 0), (0, 0)),
                                         dimension_numbers=dn)
    ident = ident + bp[None, :, None, None]
    return (y2 + ident) / math.sqrt(2.0)


if __name__ == "__main__":
    key = jax.random.PRNGKey(0)
    k_x, k_p = jax.random.split(key)

    N, inplanes, H, W = 2, 4, 16, 16
    planes = 32

    x = jax.random.normal(k_x, (N, inplanes, H, W), dtype=jnp.float32)
    w1, b1, w2, b2, wp, bp = init_params(k_p, inplanes, planes)

    out = residual_cc_block_forward(x, w1, b1, w2, b2, wp, bp)
    out = jax.block_until_ready(out)

    ref = _reference_forward(x, w1, b1, w2, b2, wp, bp)
    assert out.shape == (N, planes, H // 2, W // 2), out.shape
    max_err = float(jnp.max(jnp.abs(out - ref)))
    assert max_err < 5e-2, f"max abs error {max_err}"

    print("KERNEL_OK")
</pallas_src>

<mosaic_0001>
module attributes {stable_mosaic.version = 11 : i64} {
  func.func @_residual_cc_block_kernel(%arg0: i32, %arg1: memref<1x18x18x6xf32, #tpu.memory_space<vmem>>, %arg2: memref<16x16x2xf32, #tpu.memory_space<vmem>>, %arg3: memref<9x6x32xf32, #tpu.memory_space<vmem>>, %arg4: memref<1x32xf32, #tpu.memory_space<vmem>>, %arg5: memref<9x34x32xf32, #tpu.memory_space<vmem>>, %arg6: memref<1x32xf32, #tpu.memory_space<vmem>>, %arg7: memref<6x32xf32, #tpu.memory_space<vmem>>, %arg8: memref<1x32xf32, #tpu.memory_space<vmem>>, %arg9: memref<64x256xf32, #tpu.memory_space<vmem>>, %arg10: memref<1x64x32xf32, #tpu.memory_space<vmem>>, %arg11: memref<18x18x34xf32, #tpu.memory_space<vmem>>) attributes {dimension_semantics = [#tpu.dimension_semantics<parallel>], iteration_bounds = array<i64: 2>, scalar_prefetch = 0 : i64, scratch_operands = 1 : i64, tpu.core_type = #tpu.core_type<tc>, window_params = [{transform_indices = @transform_0, window_bounds = array<i64: 1, 18, 18, 6>}, {pipeline_mode = #tpu.pipeline_mode<synchronous>, transform_indices = @transform_1, window_bounds = array<i64: 16, 16, 2>}, {pipeline_mode = #tpu.pipeline_mode<synchronous>, transform_indices = @transform_2, window_bounds = array<i64: 9, 6, 32>}, {pipeline_mode = #tpu.pipeline_mode<synchronous>, transform_indices = @transform_3, window_bounds = array<i64: 1, 32>}, {pipeline_mode = #tpu.pipeline_mode<synchronous>, transform_indices = @transform_4, window_bounds = array<i64: 9, 34, 32>}, {pipeline_mode = #tpu.pipeline_mode<synchronous>, transform_indices = @transform_5, window_bounds = array<i64: 1, 32>}, {pipeline_mode = #tpu.pipeline_mode<synchronous>, transform_indices = @transform_6, window_bounds = array<i64: 6, 32>}, {pipeline_mode = #tpu.pipeline_mode<synchronous>, transform_indices = @transform_7, window_bounds = array<i64: 1, 32>}, {pipeline_mode = #tpu.pipeline_mode<synchronous>, transform_indices = @transform_8, window_bounds = array<i64: 64, 256>}, {transform_indices = @transform_9, window_bounds = array<i64: 1, 64, 32>}]} {
    %cst = arith.constant 0.000000e+00 : f32
    %0 = vector.broadcast %cst : f32 to vector<256x32xf32>
    %c0 = arith.constant 0 : index
    %c0_0 = arith.constant 0 : index
    %c0_1 = arith.constant 0 : index
    %c0_2 = arith.constant 0 : index
    %1 = vector.load %arg1[%c0, %c0_0, %c0_1, %c0_2] : memref<1x18x18x6xf32, #tpu.memory_space<vmem>>, vector<1x16x16x6xf32>
    %2 = vector.shape_cast %1 : vector<1x16x16x6xf32> to vector<16x16x6xf32>
    %3 = vector.shape_cast %2 : vector<16x16x6xf32> to vector<256x6xf32>
    %c0_3 = arith.constant 0 : index
    %c0_4 = arith.constant 0 : index
    %c0_5 = arith.constant 0 : index
    %4 = vector.load %arg3[%c0_3, %c0_4, %c0_5] : memref<9x6x32xf32, #tpu.memory_space<vmem>>, vector<1x6x32xf32>
    %5 = vector.shape_cast %4 : vector<1x6x32xf32> to vector<6x32xf32>
    %cst_6 = arith.constant dense<0.000000e+00> : vector<256x32xf32>
    %6 = tpu.matmul %3, %5, %cst_6 {dimension_numbers = #tpu.dot_dimension_numbers<[1], [0], [0], [1], [0, 0, 1, 1], [], []>} : vector<256x6xf32>, vector<6x32xf32>, vector<256x32xf32> -> vector<256x32xf32>
    %7 = arith.addf %0, %6 : vector<256x32xf32>
    %c0_7 = arith.constant 0 : index
    %c0_8 = arith.constant 0 : index
    %c1 = arith.constant 1 : index
    %c0_9 = arith.constant 0 : index
    %8 = vector.load %arg1[%c0_7, %c0_8, %c1, %c0_9] : memref<1x18x18x6xf32, #tpu.memory_space<vmem>>, vector<1x16x16x6xf32>
    %9 = vector.shape_cast %8 : vector<1x16x16x6xf32> to vector<16x16x6xf32>
    %10 = vector.shape_cast %9 : vector<16x16x6xf32> to vector<256x6xf32>
    %c1_10 = arith.constant 1 : index
    %c0_11 = arith.constant 0 : index
    %c0_12 = arith.constant 0 : index
    %11 = vector.load %arg3[%c1_10, %c0_11, %c0_12] : memref<9x6x32xf32, #tpu.memory_space<vmem>>, vector<1x6x32xf32>
    %12 = vector.shape_cast %11 : vector<1x6x32xf32> to vector<6x32xf32>
    %cst_13 = arith.constant dense<0.000000e+00> : vector<256x32xf32>
    %13 = tpu.matmul %10, %12, %cst_13 {dimension_numbers = #tpu.dot_dimension_numbers<[1], [0], [0], [1], [0, 0, 1, 1], [], []>} : vector<256x6xf32>, vector<6x32xf32>, vector<256x32xf32> -> vector<256x32xf32>
    %14 = arith.addf %7, %13 : vector<256x32xf32>
    %c0_14 = arith.constant 0 : index
    %c0_15 = arith.constant 0 : index
    %c2 = arith.constant 2 : index
    %c0_16 = arith.constant 0 : index
    %15 = vector.load %arg1[%c0_14, %c0_15, %c2, %c0_16] : memref<1x18x18x6xf32, #tpu.memory_space<vmem>>, vector<1x16x16x6xf32>
    %16 = vector.shape_cast %15 : vector<1x16x16x6xf32> to vector<16x16x6xf32>
    %17 = vector.shape_cast %16 : vector<16x16x6xf32> to vector<256x6xf32>
    %c2_17 = arith.constant 2 : index
    %c0_18 = arith.constant 0 : index
    %c0_19 = arith.constant 0 : index
    %18 = vector.load %arg3[%c2_17, %c0_18, %c0_19] : memref<9x6x32xf32, #tpu.memory_space<vmem>>, vector<1x6x32xf32>
    %19 = vector.shape_cast %18 : vector<1x6x32xf32> to vector<6x32xf32>
    %cst_20 = arith.constant dense<0.000000e+00> : vector<256x32xf32>
    %20 = tpu.matmul %17, %19, %cst_20 {dimension_numbers = #tpu.dot_dimension_numbers<[1], [0], [0], [1], [0, 0, 1, 1], [], []>} : vector<256x6xf32>, vector<6x32xf32>, vector<256x32xf32> -> vector<256x32xf32>
    %21 = arith.addf %14, %20 : vector<256x32xf32>
    %c0_21 = arith.constant 0 : index
    %c1_22 = arith.constant 1 : index
    %c0_23 = arith.constant 0 : index
    %c0_24 = arith.constant 0 : index
    %22 = vector.load %arg1[%c0_21, %c1_22, %c0_23, %c0_24] : memref<1x18x18x6xf32, #tpu.memory_space<vmem>>, vector<1x16x16x6xf32>
    %23 = vector.shape_cast %22 : vector<1x16x16x6xf32> to vector<16x16x6xf32>
    %24 = vector.shape_cast %23 : vector<16x16x6xf32> to vector<256x6xf32>
    %c3 = arith.constant 3 : index
    %c0_25 = arith.constant 0 : index
    %c0_26 = arith.constant 0 : index
    %25 = vector.load %arg3[%c3, %c0_25, %c0_26] : memref<9x6x32xf32, #tpu.memory_space<vmem>>, vector<1x6x32xf32>
    %26 = vector.shape_cast %25 : vector<1x6x32xf32> to vector<6x32xf32>
    %cst_27 = arith.constant dense<0.000000e+00> : vector<256x32xf32>
    %27 = tpu.matmul %24, %26, %cst_27 {dimension_numbers = #tpu.dot_dimension_numbers<[1], [0], [0], [1], [0, 0, 1, 1], [], []>} : vector<256x6xf32>, vector<6x32xf32>, vector<256x32xf32> -> vector<256x32xf32>
    %28 = arith.addf %21, %27 : vector<256x32xf32>
    %c0_28 = arith.constant 0 : index
    %c1_29 = arith.constant 1 : index
    %c1_30 = arith.constant 1 : index
    %c0_31 = arith.constant 0 : index
    %29 = vector.load %arg1[%c0_28, %c1_29, %c1_30, %c0_31] : memref<1x18x18x6xf32, #tpu.memory_space<vmem>>, vector<1x16x16x6xf32>
    %30 = vector.shape_cast %29 : vector<1x16x16x6xf32> to vector<16x16x6xf32>
    %31 = vector.shape_cast %30 : vector<16x16x6xf32> to vector<256x6xf32>
    %c4 = arith.constant 4 : index
    %c0_32 = arith.constant 0 : index
    %c0_33 = arith.constant 0 : index
    %32 = vector.load %arg3[%c4, %c0_32, %c0_33] : memref<9x6x32xf32, #tpu.memory_space<vmem>>, vector<1x6x32xf32>
    %33 = vector.shape_cast %32 : vector<1x6x32xf32> to vector<6x32xf32>
    %cst_34 = arith.constant dense<0.000000e+00> : vector<256x32xf32>
    %34 = tpu.matmul %31, %33, %cst_34 {dimension_numbers = #tpu.dot_dimension_numbers<[1], [0], [0], [1], [0, 0, 1, 1], [], []>} : vector<256x6xf32>, vector<6x32xf32>, vector<256x32xf32> -> vector<256x32xf32>
    %35 = arith.addf %28, %34 : vector<256x32xf32>
    %c0_35 = arith.constant 0 : index
    %c1_36 = arith.constant 1 : index
    %c2_37 = arith.constant 2 : index
    %c0_38 = arith.constant 0 : index
    %36 = vector.load %arg1[%c0_35, %c1_36, %c2_37, %c0_38] : memref<1x18x18x6xf32, #tpu.memory_space<vmem>>, vector<1x16x16x6xf32>
    %37 = vector.shape_cast %36 : vector<1x16x16x6xf32> to vector<16x16x6xf32>
    %38 = vector.shape_cast %37 : vector<16x16x6xf32> to vector<256x6xf32>
    %c5 = arith.constant 5 : index
    %c0_39 = arith.constant 0 : index
    %c0_40 = arith.constant 0 : index
    %39 = vector.load %arg3[%c5, %c0_39, %c0_40] : memref<9x6x32xf32, #tpu.memory_space<vmem>>, vector<1x6x32xf32>
    %40 = vector.shape_cast %39 : vector<1x6x32xf32> to vector<6x32xf32>
    %cst_41 = arith.constant dense<0.000000e+00> : vector<256x32xf32>
    %41 = tpu.matmul %38, %40, %cst_41 {dimension_numbers = #tpu.dot_dimension_numbers<[1], [0], [0], [1], [0, 0, 1, 1], [], []>} : vector<256x6xf32>, vector<6x32xf32>, vector<256x32xf32> -> vector<256x32xf32>
    %42 = arith.addf %35, %41 : vector<256x32xf32>
    %c0_42 = arith.constant 0 : index
    %c2_43 = arith.constant 2 : index
    %c0_44 = arith.constant 0 : index
    %c0_45 = arith.constant 0 : index
    %43 = vector.load %arg1[%c0_42, %c2_43, %c0_44, %c0_45] : memref<1x18x18x6xf32, #tpu.memory_space<vmem>>, vector<1x16x16x6xf32>
    %44 = vector.shape_cast %43 : vector<1x16x16x6xf32> to vector<16x16x6xf32>
    %45 = vector.shape_cast %44 : vector<16x16x6xf32> to vector<256x6xf32>
    %c6 = arith.constant 6 : index
    %c0_46 = arith.constant 0 : index
    %c0_47 = arith.constant 0 : index
    %46 = vector.load %arg3[%c6, %c0_46, %c0_47] : memref<9x6x32xf32, #tpu.memory_space<vmem>>, vector<1x6x32xf32>
    %47 = vector.shape_cast %46 : vector<1x6x32xf32> to vector<6x32xf32>
    %cst_48 = arith.constant dense<0.000000e+00> : vector<256x32xf32>
    %48 = tpu.matmul %45, %47, %cst_48 {dimension_numbers = #tpu.dot_dimension_numbers<[1], [0], [0], [1], [0, 0, 1, 1], [], []>} : vector<256x6xf32>, vector<6x32xf32>, vector<256x32xf32> -> vector<256x32xf32>
    %49 = arith.addf %42, %48 : vector<256x32xf32>
    %c0_49 = arith.constant 0 : index
    %c2_50 = arith.constant 2 : index
    %c1_51 = arith.constant 1 : index
    %c0_52 = arith.constant 0 : index
    %50 = vector.load %arg1[%c0_49, %c2_50, %c1_51, %c0_52] : memref<1x18x18x6xf32, #tpu.memory_space<vmem>>, vector<1x16x16x6xf32>
    %51 = vector.shape_cast %50 : vector<1x16x16x6xf32> to vector<16x16x6xf32>
    %52 = vector.shape_cast %51 : vector<16x16x6xf32> to vector<256x6xf32>
    %c7 = arith.constant 7 : index
    %c0_53 = arith.constant 0 : index
    %c0_54 = arith.constant 0 : index
    %53 = vector.load %arg3[%c7, %c0_53, %c0_54] : memref<9x6x32xf32, #tpu.memory_space<vmem>>, vector<1x6x32xf32>
    %54 = vector.shape_cast %53 : vector<1x6x32xf32> to vector<6x32xf32>
    %cst_55 = arith.constant dense<0.000000e+00> : vector<256x32xf32>
    %55 = tpu.matmul %52, %54, %cst_55 {dimension_numbers = #tpu.dot_dimension_numbers<[1], [0], [0], [1], [0, 0, 1, 1], [], []>} : vector<256x6xf32>, vector<6x32xf32>, vector<256x32xf32> -> vector<256x32xf32>
    %56 = arith.addf %49, %55 : vector<256x32xf32>
    %c0_56 = arith.constant 0 : index
    %c2_57 = arith.constant 2 : index
    %c2_58 = arith.constant 2 : index
    %c0_59 = arith.constant 0 : index
    %57 = vector.load %arg1[%c0_56, %c2_57, %c2_58, %c0_59] : memref<1x18x18x6xf32, #tpu.memory_space<vmem>>, vector<1x16x16x6xf32>
    %58 = vector.shape_cast %57 : vector<1x16x16x6xf32> to vector<16x16x6xf32>
    %59 = vector.shape_cast %58 : vector<16x16x6xf32> to vector<256x6xf32>
    %c8 = arith.constant 8 : index
    %c0_60 = arith.constant 0 : index
    %c0_61 = arith.constant 0 : index
    %60 = vector.load %arg3[%c8, %c0_60, %c0_61] : memref<9x6x32xf32, #tpu.memory_space<vmem>>, vector<1x6x32xf32>
    %61 = vector.shape_cast %60 : vector<1x6x32xf32> to vector<6x32xf32>
    %cst_62 = arith.constant dense<0.000000e+00> : vector<256x32xf32>
    %62 = tpu.matmul %59, %61, %cst_62 {dimension_numbers = #tpu.dot_dimension_numbers<[1], [0], [0], [1], [0, 0, 1, 1], [], []>} : vector<256x6xf32>, vector<6x32xf32>, vector<256x32xf32> -> vector<256x32xf32>
    %63 = arith.addf %56, %62 : vector<256x32xf32>
    %c0_63 = arith.constant 0 : index
    %c0_64 = arith.constant 0 : index
    %64 = vector.load %arg4[%c0_63, %c0_64] : memref<1x32xf32, #tpu.memory_space<vmem>>, vector<1x32xf32>
    %65 = vector.broadcast %64 : vector<1x32xf32> to vector<256x32xf32>
    %66 = arith.addf %63, %65 : vector<256x32xf32>
    %cst_65 = arith.constant 2.000000e-01 : f32
    %67 = vector.broadcast %cst_65 : f32 to vector<256x32xf32>
    %68 = arith.mulf %67, %66 : vector<256x32xf32>
    %69 = arith.maximumf %66, %68 : vector<256x32xf32>
    %cst_66 = arith.constant 0.000000e+00 : f32
    %70 = vector.broadcast %cst_66 : f32 to vector<18x18x34xf32>
    %c0_67 = arith.constant 0 : index
    %c0_68 = arith.constant 0 : index
    %c0_69 = arith.constant 0 : index
    %71 = vector.load %arg11[%c0_67, %c0_68, %c0_69] : memref<18x18x34xf32, #tpu.memory_space<vmem>>, vector<18x18x34xf32>
    tpu.vector_store %arg11[%c0_67, %c0_68, %c0_69], %70 {strides = array<i32>} : memref<18x18x34xf32, #tpu.memory_space<vmem>>, vector<18x18x34xf32>,
    %72 = vector.shape_cast %69 : vector<256x32xf32> to vector<16x16x32xf32>
    %c1_70 = arith.constant 1 : index
    %c1_71 = arith.constant 1 : index
    %c0_72 = arith.constant 0 : index
    %73 = vector.load %arg11[%c1_70, %c1_71, %c0_72] : memref<18x18x34xf32, #tpu.memory_space<vmem>>, vector<16x16x32xf32>
    tpu.vector_store %arg11[%c1_70, %c1_71, %c0_72], %72 {strides = array<i32>} : memref<18x18x34xf32, #tpu.memory_space<vmem>>, vector<16x16x32xf32>,
    %c0_73 = arith.constant 0 : index
    %c0_74 = arith.constant 0 : index
    %c0_75 = arith.constant 0 : index
    %74 = vector.load %arg2[%c0_73, %c0_74, %c0_75] : memref<16x16x2xf32, #tpu.memory_space<vmem>>, vector<16x16x2xf32>
    %c1_76 = arith.constant 1 : index
    %c1_77 = arith.constant 1 : index
    %c32 = arith.constant 32 : index
    %75 = vector.load %arg11[%c1_76, %c1_77, %c32] : memref<18x18x34xf32, #tpu.memory_space<vmem>>, vector<16x16x2xf32>
    tpu.vector_store %arg11[%c1_76, %c1_77, %c32], %74 {strides = array<i32>} : memref<18x18x34xf32, #tpu.memory_space<vmem>>, vector<16x16x2xf32>,
    %cst_78 = arith.constant 0.000000e+00 : f32
    %76 = vector.broadcast %cst_78 : f32 to vector<256x32xf32>
    %c0_79 = arith.constant 0 : index
    %c0_80 = arith.constant 0 : index
    %c0_81 = arith.constant 0 : index
    %77 = vector.load %arg11[%c0_79, %c0_80, %c0_81] : memref<18x18x34xf32, #tpu.memory_space<vmem>>, vector<16x16x34xf32>
    %78 = vector.shape_cast %77 : vector<16x16x34xf32> to vector<256x34xf32>
    %c0_82 = arith.constant 0 : index
    %c0_83 = arith.constant 0 : index
    %c0_84 = arith.constant 0 : index
    %79 = vector.load %arg5[%c0_82, %c0_83, %c0_84] : memref<9x34x32xf32, #tpu.memory_space<vmem>>, vector<1x34x32xf32>
    %80 = vector.shape_cast %79 : vector<1x34x32xf32> to vector<34x32xf32>
    %cst_85 = arith.constant dense<0.000000e+00> : vector<256x32xf32>
    %81 = tpu.matmul %78, %80, %cst_85 {dimension_numbers = #tpu.dot_dimension_numbers<[1], [0], [0], [1], [0, 0, 1, 1], [], []>} : vector<256x34xf32>, vector<34x32xf32>, vector<256x32xf32> -> vector<256x32xf32>
    %82 = arith.addf %76, %81 : vector<256x32xf32>
    %c0_86 = arith.constant 0 : index
    %c1_87 = arith.constant 1 : index
    %c0_88 = arith.constant 0 : index
    %83 = vector.load %arg11[%c0_86, %c1_87, %c0_88] : memref<18x18x34xf32, #tpu.memory_space<vmem>>, vector<16x16x34xf32>
    %84 = vector.shape_cast %83 : vector<16x16x34xf32> to vector<256x34xf32>
    %c1_89 = arith.constant 1 : index
    %c0_90 = arith.constant 0 : index
    %c0_91 = arith.constant 0 : index
    %85 = vector.load %arg5[%c1_89, %c0_90, %c0_91] : memref<9x34x32xf32, #tpu.memory_space<vmem>>, vector<1x34x32xf32>
    %86 = vector.shape_cast %85 : vector<1x34x32xf32> to vector<34x32xf32>
    %cst_92 = arith.constant dense<0.000000e+00> : vector<256x32xf32>
    %87 = tpu.matmul %84, %86, %cst_92 {dimension_numbers = #tpu.dot_dimension_numbers<[1], [0], [0], [1], [0, 0, 1, 1], [], []>} : vector<256x34xf32>, vector<34x32xf32>, vector<256x32xf32> -> vector<256x32xf32>
    %88 = arith.addf %82, %87 : vector<256x32xf32>
    %c0_93 = arith.constant 0 : index
    %c2_94 = arith.constant 2 : index
    %c0_95 = arith.constant 0 : index
    %89 = vector.load %arg11[%c0_93, %c2_94, %c0_95] : memref<18x18x34xf32, #tpu.memory_space<vmem>>, vector<16x16x34xf32>
    %90 = vector.shape_cast %89 : vector<16x16x34xf32> to vector<256x34xf32>
    %c2_96 = arith.constant 2 : index
    %c0_97 = arith.constant 0 : index
    %c0_98 = arith.constant 0 : index
    %91 = vector.load %arg5[%c2_96, %c0_97, %c0_98] : memref<9x34x32xf32, #tpu.memory_space<vmem>>, vector<1x34x32xf32>
    %92 = vector.shape_cast %91 : vector<1x34x32xf32> to vector<34x32xf32>
    %cst_99 = arith.constant dense<0.000000e+00> : vector<256x32xf32>
    %93 = tpu.matmul %90, %92, %cst_99 {dimension_numbers = #tpu.dot_dimension_numbers<[1], [0], [0], [1], [0, 0, 1, 1], [], []>} : vector<256x34xf32>, vector<34x32xf32>, vector<256x32xf32> -> vector<256x32xf32>
    %94 = arith.addf %88, %93 : vector<256x32xf32>
    %c1_100 = arith.constant 1 : index
    %c0_101 = arith.constant 0 : index
    %c0_102 = arith.constant 0 : index
    %95 = vector.load %arg11[%c1_100, %c0_101, %c0_102] : memref<18x18x34xf32, #tpu.memory_space<vmem>>, vector<16x16x34xf32>
    %96 = vector.shape_cast %95 : vector<16x16x34xf32> to vector<256x34xf32>
    %c3_103 = arith.constant 3 : index
    %c0_104 = arith.constant 0 : index
    %c0_105 = arith.constant 0 : index
    %97 = vector.load %arg5[%c3_103, %c0_104, %c0_105] : memref<9x34x32xf32, #tpu.memory_space<vmem>>, vector<1x34x32xf32>
    %98 = vector.shape_cast %97 : vector<1x34x32xf32> to vector<34x32xf32>
    %cst_106 = arith.constant dense<0.000000e+00> : vector<256x32xf32>
    %99 = tpu.matmul %96, %98, %cst_106 {dimension_numbers = #tpu.dot_dimension_numbers<[1], [0], [0], [1], [0, 0, 1, 1], [], []>} : vector<256x34xf32>, vector<34x32xf32>, vector<256x32xf32> -> vector<256x32xf32>
    %100 = arith.addf %94, %99 : vector<256x32xf32>
    %c1_107 = arith.constant 1 : index
    %c1_108 = arith.constant 1 : index
    %c0_109 = arith.constant 0 : index
    %101 = vector.load %arg11[%c1_107, %c1_108, %c0_109] : memref<18x18x34xf32, #tpu.memory_space<vmem>>, vector<16x16x34xf32>
    %102 = vector.shape_cast %101 : vector<16x16x34xf32> to vector<256x34xf32>
    %c4_110 = arith.constant 4 : index
    %c0_111 = arith.constant 0 : index
    %c0_112 = arith.constant 0 : index
    %103 = vector.load %arg5[%c4_110, %c0_111, %c0_112] : memref<9x34x32xf32, #tpu.memory_space<vmem>>, vector<1x34x32xf32>
    %104 = vector.shape_cast %103 : vector<1x34x32xf32> to vector<34x32xf32>
    %cst_113 = arith.constant dense<0.000000e+00> : vector<256x32xf32>
    %105 = tpu.matmul %102, %104, %cst_113 {dimension_numbers = #tpu.dot_dimension_numbers<[1], [0], [0], [1], [0, 0, 1, 1], [], []>} : vector<256x34xf32>, vector<34x32xf32>, vector<256x32xf32> -> vector<256x32xf32>
    %106 = arith.addf %100, %105 : vector<256x32xf32>
    %c1_114 = arith.constant 1 : index
    %c2_115 = arith.constant 2 : index
    %c0_116 = arith.constant 0 : index
    %107 = vector.load %arg11[%c1_114, %c2_115, %c0_116] : memref<18x18x34xf32, #tpu.memory_space<vmem>>, vector<16x16x34xf32>
    %108 = vector.shape_cast %107 : vector<16x16x34xf32> to vector<256x34xf32>
    %c5_117 = arith.constant 5 : index
    %c0_118 = arith.constant 0 : index
    %c0_119 = arith.constant 0 : index
    %109 = vector.load %arg5[%c5_117, %c0_118, %c0_119] : memref<9x34x32xf32, #tpu.memory_space<vmem>>, vector<1x34x32xf32>
    %110 = vector.shape_cast %109 : vector<1x34x32xf32> to vector<34x32xf32>
    %cst_120 = arith.constant dense<0.000000e+00> : vector<256x32xf32>
    %111 = tpu.matmul %108, %110, %cst_120 {dimension_numbers = #tpu.dot_dimension_numbers<[1], [0], [0], [1], [0, 0, 1, 1], [], []>} : vector<256x34xf32>, vector<34x32xf32>, vector<256x32xf32> -> vector<256x32xf32>
    %112 = arith.addf %106, %111 : vector<256x32xf32>
    %c2_121 = arith.constant 2 : index
    %c0_122 = arith.constant 0 : index
    %c0_123 = arith.constant 0 : index
    %113 = vector.load %arg11[%c2_121, %c0_122, %c0_123] : memref<18x18x34xf32, #tpu.memory_space<vmem>>, vector<16x16x34xf32>
    %114 = vector.shape_cast %113 : vector<16x16x34xf32> to vector<256x34xf32>
    %c6_124 = arith.constant 6 : index
    %c0_125 = arith.constant 0 : index
    %c0_126 = arith.constant 0 : index
    %115 = vector.load %arg5[%c6_124, %c0_125, %c0_126] : memref<9x34x32xf32, #tpu.memory_space<vmem>>, vector<1x34x32xf32>
    %116 = vector.shape_cast %115 : vector<1x34x32xf32> to vector<34x32xf32>
    %cst_127 = arith.constant dense<0.000000e+00> : vector<256x32xf32>
    %117 = tpu.matmul %114, %116, %cst_127 {dimension_numbers = #tpu.dot_dimension_numbers<[1], [0], [0], [1], [0, 0, 1, 1], [], []>} : vector<256x34xf32>, vector<34x32xf32>, vector<256x32xf32> -> vector<256x32xf32>
    %118 = arith.addf %112, %117 : vector<256x32xf32>
    %c2_128 = arith.constant 2 : index
    %c1_129 = arith.constant 1 : index
    %c0_130 = arith.constant 0 : index
    %119 = vector.load %arg11[%c2_128, %c1_129, %c0_130] : memref<18x18x34xf32, #tpu.memory_space<vmem>>, vector<16x16x34xf32>
    %120 = vector.shape_cast %119 : vector<16x16x34xf32> to vector<256x34xf32>
    %c7_131 = arith.constant 7 : index
    %c0_132 = arith.constant 0 : index
    %c0_133 = arith.constant 0 : index
    %121 = vector.load %arg5[%c7_131, %c0_132, %c0_133] : memref<9x34x32xf32, #tpu.memory_space<vmem>>, vector<1x34x32xf32>
    %122 = vector.shape_cast %121 : vector<1x34x32xf32> to vector<34x32xf32>
    %cst_134 = arith.constant dense<0.000000e+00> : vector<256x32xf32>
    %123 = tpu.matmul %120, %122, %cst_134 {dimension_numbers = #tpu.dot_dimension_numbers<[1], [0], [0], [1], [0, 0, 1, 1], [], []>} : vector<256x34xf32>, vector<34x32xf32>, vector<256x32xf32> -> vector<256x32xf32>
    %124 = arith.addf %118, %123 : vector<256x32xf32>
    %c2_135 = arith.constant 2 : index
    %c2_136 = arith.constant 2 : index
    %c0_137 = arith.constant 0 : index
    %125 = vector.load %arg11[%c2_135, %c2_136, %c0_137] : memref<18x18x34xf32, #tpu.memory_space<vmem>>, vector<16x16x34xf32>
    %126 = vector.shape_cast %125 : vector<16x16x34xf32> to vector<256x34xf32>
    %c8_138 = arith.constant 8 : index
    %c0_139 = arith.constant 0 : index
    %c0_140 = arith.constant 0 : index
    %127 = vector.load %arg5[%c8_138, %c0_139, %c0_140] : memref<9x34x32xf32, #tpu.memory_space<vmem>>, vector<1x34x32xf32>
    %128 = vector.shape_cast %127 : vector<1x34x32xf32> to vector<34x32xf32>
    %cst_141 = arith.constant dense<0.000000e+00> : vector<256x32xf32>
    %129 = tpu.matmul %126, %128, %cst_141 {dimension_numbers = #tpu.dot_dimension_numbers<[1], [0], [0], [1], [0, 0, 1, 1], [], []>} : vector<256x34xf32>, vector<34x32xf32>, vector<256x32xf32> -> vector<256x32xf32>
    %130 = arith.addf %124, %129 : vector<256x32xf32>
    %c0_142 = arith.constant 0 : index
    %c0_143 = arith.constant 0 : index
    %131 = vector.load %arg6[%c0_142, %c0_143] : memref<1x32xf32, #tpu.memory_space<vmem>>, vector<1x32xf32>
    %132 = vector.broadcast %131 : vector<1x32xf32> to vector<256x32xf32>
    %133 = arith.addf %130, %132 : vector<256x32xf32>
    %cst_144 = arith.constant 2.000000e-01 : f32
    %134 = vector.broadcast %cst_144 : f32 to vector<256x32xf32>
    %135 = arith.mulf %134, %133 : vector<256x32xf32>
    %136 = arith.maximumf %133, %135 : vector<256x32xf32>
    %c0_145 = arith.constant 0 : index
    %c0_146 = arith.constant 0 : index
    %137 = vector.load %arg9[%c0_145, %c0_146] : memref<64x256xf32, #tpu.memory_space<vmem>>, vector<64x256xf32>
    %cst_147 = arith.constant dense<0.000000e+00> : vector<64x32xf32>
    %138 = tpu.matmul %137, %136, %cst_147 {dimension_numbers = #tpu.dot_dimension_numbers<[1], [0], [0], [1], [0, 0, 1, 1], [], []>} : vector<64x256xf32>, vector<256x32xf32>, vector<64x32xf32> -> vector<64x32xf32>
    %c0_148 = arith.constant 0 : index
    %c1_149 = arith.constant 1 : index
    %c1_150 = arith.constant 1 : index
    %c0_151 = arith.constant 0 : index
    %139 = vector.load %arg1[%c0_148, %c1_149, %c1_150, %c0_151] : memref<1x18x18x6xf32, #tpu.memory_space<vmem>>, vector<1x16x16x6xf32>
    %140 = vector.shape_cast %139 : vector<1x16x16x6xf32> to vector<16x16x6xf32>
    %141 = vector.shape_cast %140 : vector<16x16x6xf32> to vector<256x6xf32>
    %c0_152 = arith.constant 0 : index
    %c0_153 = arith.constant 0 : index
    %142 = vector.load %arg9[%c0_152, %c0_153] : memref<64x256xf32, #tpu.memory_space<vmem>>, vector<64x256xf32>
    %cst_154 = arith.constant dense<0.000000e+00> : vector<64x6xf32>
    %143 = tpu.matmul %142, %141, %cst_154 {dimension_numbers = #tpu.dot_dimension_numbers<[1], [0], [0], [1], [0, 0, 1, 1], [], []>} : vector<64x256xf32>, vector<256x6xf32>, vector<64x6xf32> -> vector<64x6xf32>
    %c0_155 = arith.constant 0 : index
    %c0_156 = arith.constant 0 : index
    %144 = vector.load %arg7[%c0_155, %c0_156] : memref<6x32xf32, #tpu.memory_space<vmem>>, vector<6x32xf32>
    %cst_157 = arith.constant dense<0.000000e+00> : vector<64x32xf32>
    %145 = tpu.matmul %143, %144, %cst_157 {dimension_numbers = #tpu.dot_dimension_numbers<[1], [0], [0], [1], [0, 0, 1, 1], [], []>} : vector<64x6xf32>, vector<6x32xf32>, vector<64x32xf32> -> vector<64x32xf32>
    %c0_158 = arith.constant 0 : index
    %c0_159 = arith.constant 0 : index
    %146 = vector.load %arg8[%c0_158, %c0_159] : memref<1x32xf32, #tpu.memory_space<vmem>>, vector<1x32xf32>
    %147 = vector.broadcast %146 : vector<1x32xf32> to vector<64x32xf32>
    %148 = arith.addf %145, %147 : vector<64x32xf32>
    %149 = arith.addf %138, %148 : vector<64x32xf32>
    %cst_160 = arith.constant 0.707106769 : f32
    %150 = vector.broadcast %cst_160 : f32 to vector<64x32xf32>
    %151 = arith.mulf %149, %150 : vector<64x32xf32>
    %c0_161 = arith.constant 0 : index
    %c0_162 = arith.constant 0 : index
    %c0_163 = arith.constant 0 : index
    %152 = vector.load %arg10[%c0_161, %c0_162, %c0_163] : memref<1x64x32xf32, #tpu.memory_space<vmem>>, vector<1x64x32xf32>
    %153 = vector.shape_cast %152 : vector<1x64x32xf32> to vector<64x32xf32>
    %154 = vector.shape_cast %151 : vector<64x32xf32> to vector<1x64x32xf32>
    tpu.vector_store %arg10[%c0_161, %c0_162, %c0_163], %154 {strides = array<i32>} : memref<1x64x32xf32, #tpu.memory_space<vmem>>, vector<1x64x32xf32>,
    return
  }
  func.func @transform_0(%arg0: i32) -> (i32, i32, i32, i32) {
    %c0_i32 = arith.constant 0 : i32
    %c0_i32_0 = arith.constant 0 : i32
    %c0_i32_1 = arith.constant 0 : i32
    %c0_i32_2 = arith.constant 0 : i32
    return %arg0, %c0_i32, %c0_i32_0, %c0_i32_1 : i32, i32, i32, i32
  }
  func.func @transform_1(%arg0: i32) -> (i32, i32, i32) {
    %c0_i32 = arith.constant 0 : i32
    %c0_i32_0 = arith.constant 0 : i32
    %c0_i32_1 = arith.constant 0 : i32
    %c0_i32_2 = arith.constant 0 : i32
    return %c0_i32, %c0_i32_0, %c0_i32_1 : i32, i32, i32
  }
  func.func @transform_2(%arg0: i32) -> (i32, i32, i32) {
    %c0_i32 = arith.constant 0 : i32
    %c0_i32_0 = arith.constant 0 : i32
    %c0_i32_1 = arith.constant 0 : i32
    %c0_i32_2 = arith.constant 0 : i32
    return %c0_i32, %c0_i32_0, %c0_i32_1 : i32, i32, i32
  }
  func.func @transform_3(%arg0: i32) -> (i32, i32) {
    %c0_i32 = arith.constant 0 : i32
    %c0_i32_0 = arith.constant 0 : i32
    %c0_i32_1 = arith.constant 0 : i32
    return %c0_i32, %c0_i32_0 : i32, i32
  }
  func.func @transform_4(%arg0: i32) -> (i32, i32, i32) {
    %c0_i32 = arith.constant 0 : i32
    %c0_i32_0 = arith.constant 0 : i32
    %c0_i32_1 = arith.constant 0 : i32
    %c0_i32_2 = arith.constant 0 : i32
    return %c0_i32, %c0_i32_0, %c0_i32_1 : i32, i32, i32
  }
  func.func @transform_5(%arg0: i32) -> (i32, i32) {
    %c0_i32 = arith.constant 0 : i32
    %c0_i32_0 = arith.constant 0 : i32
    %c0_i32_1 = arith.constant 0 : i32
    return %c0_i32, %c0_i32_0 : i32, i32
  }
  func.func @transform_6(%arg0: i32) -> (i32, i32) {
    %c0_i32 = arith.constant 0 : i32
    %c0_i32_0 = arith.constant 0 : i32
    %c0_i32_1 = arith.constant 0 : i32
    return %c0_i32, %c0_i32_0 : i32, i32
  }
  func.func @transform_7(%arg0: i32) -> (i32, i32) {
    %c0_i32 = arith.constant 0 : i32
    %c0_i32_0 = arith.constant 0 : i32
    %c0_i32_1 = arith.constant 0 : i32
    return %c0_i32, %c0_i32_0 : i32, i32
  }
  func.func @transform_8(%arg0: i32) -> (i32, i32) {
    %c0_i32 = arith.constant 0 : i32
    %c0_i32_0 = arith.constant 0 : i32
    %c0_i32_1 = arith.constant 0 : i32
    return %c0_i32, %c0_i32_0 : i32, i32
  }
  func.func @transform_9(%arg0: i32) -> (i32, i32, i32) {
    %c0_i32 = arith.constant 0 : i32
    %c0_i32_0 = arith.constant 0 : i32
    %c0_i32_1 = arith.constant 0 : i32
    return %arg0, %c0_i32, %c0_i32_0 : i32, i32, i32
  }
}

</mosaic_0001>

<llo_original>
// kernel: residual_cc_block_forward.1
$region0: #{residual_cc_block_forward.1}
  #allocation0 [shape = 'u32[]', space=smem, size = 0x4, offset = 0x4, fixed_abs, tag = 'smem constant byte address 0x4 - core index']
  #allocation1 [shape = 'u32[72,128]{1,0:T(1,128)}', space=vmem, size = 0x9000, scoped, tag = 'internal scratch']
  #allocation2 [shape = 'f32[18,18,34]{2,1,0:T(8,128)}', space=vmem, size = 0x36000, scoped, tag = 'scratch operand']
  %s0 = inlined_call_operand.vmem [shape: f32[2,18,18,6], index: 0, kind: input, shape index: {}]
  %s1 = inlined_call_operand.vmem [shape: f32[16,16,2], index: 1, kind: input, shape index: {}]
  %s2 = inlined_call_operand.vmem [shape: f32[9,6,32], index: 2, kind: input, shape index: {}]
  %s3 = inlined_call_operand.vmem [shape: f32[1,32], index: 3, kind: input, shape index: {}]
  %s4 = inlined_call_operand.vmem [shape: f32[9,34,32], index: 4, kind: input, shape index: {}]
  %s5 = inlined_call_operand.vmem [shape: f32[1,32], index: 5, kind: input, shape index: {}]
  %s6 = inlined_call_operand.vmem [shape: f32[6,32], index: 6, kind: input, shape index: {}]
  %s7 = inlined_call_operand.vmem [shape: f32[1,32], index: 7, kind: input, shape index: {}]
  %s8 = inlined_call_operand.vmem [shape: f32[64,256], index: 8, kind: input, shape index: {}]
  %s9 = inlined_call_operand.hbm [shape: f32[2,64,32], index: 9, kind: output, shape index: {}]
  %s10 = sld [smem:[#allocation0]]
  $region69: #{residual_cc_block_forward.1} parent=0
    _
  %s12 = ssub.s32 1, %s10
  %s13 = scalar_select 0, %s12, %s10
  $region1: #{residual_cc_block_forward.1} parent=0
    #allocation3 [shape = 'u8[65536]{0}', space=vmem, size = 0x10000, scoped, tag = 'output window, operand 0']
    #allocation4 [shape = 's32[2]{0}', space=sflag, size = 0x8, scoped, tag = 'scoped memory for residual_cc_block_forward.1']
    %14 = vsyncpa [#allocation4], 0
    %s15 = scalar_lea.sflag [#allocation4], 1
    %16 = vsyncpa %s15, 0
    loop: start=0, step=1, limit=4
    $region2: #{residual_cc_block_forward.1} parent=1 // loop_pre_header
      _
    $region3: #{residual_cc_block_forward.1} parent=1 // loop_header
      %s18 = sphi 0, %s22
      %p19 = scmp.ge.s32.totalorder %s18, 4
      %s28 = sphi 0, %s30
      %s31 = sphi 0, %s28
      %s32 = sphi 0, %s31
      %s48 = sphi 0, %s32
      %s52 = sphi 0, %s52
      %s54 = sphi 0, %s52
      %s55 = sphi 0, %s54
      %s69 = sphi 0, %s55
      %s73 = sphi 0, %s73
      %s75 = sphi 0, %s73
      %s76 = sphi 0, %s75
      %s90 = sphi 0, %s76
      %s94 = sphi 0, %s94
      %s96 = sphi 0, %s94
      %s97 = sphi 0, %s96
      %s111 = sphi 0, %s97
      %s115 = sphi 0, %s115
      %s117 = sphi 0, %s115
      %s118 = sphi 0, %s117
      %s132 = sphi 0, %s118
      %s136 = sphi 0, %s136
      %s138 = sphi 0, %s136
      %s139 = sphi 0, %s138
      %s153 = sphi 0, %s139
      %s157 = sphi 0, %s157
      %s159 = sphi 0, %s157
      %s160 = sphi 0, %s159
      %s174 = sphi 0, %s160
      %s178 = sphi 0, %s178
      %s180 = sphi 0, %s178
      %s181 = sphi 0, %s180
      %s195 = sphi 0, %s181
      %s199 = sphi 0, %s199
      %s201 = sphi 0, %s199
      %s202 = sphi 0, %s201
      %s216 = sphi 0, %s202
      %s222 = sphi 0, %s224
      %s225 = sphi 0, %s222
      %s226 = sphi 0, %s225
      %s242 = sphi 0, %s226
    $region4: #{residual_cc_block_forward.1} parent=1 // loop_header_branch
      %21 = sbr.rel (%p19) target = $region8
    $region5: #{residual_cc_block_forward.1} parent=1 // loop_body
      %s23 = ssub.s32 %s18, 1
      %s24 = ssub.s32 %s18, 2
      %s25 = sadd.s32 %s18, 1
      %s26 = ssub.s32 %s18, %s25
      %p27 = scmp.eq.s32.totalorder %s26, 0
      %s29 = sadd.s32 %s28, 1
      %s30 = scalar_select %p27, %s28, %s29
      %p33 = pneg %p27
      %p34 = scmp.eq.s32.totalorder %s18, 1
      %p35 = por %p33, %p34
      %p36 = scmp.ne.s32.totalorder %s28, %s31
      %p37 = scmp.eq.s32.totalorder %s18, 0
      %p38 = por %p36, %p37
      %p39 = scmp.ne.s32.totalorder %s28, %s31
      %p40 = scmp.eq.s32.totalorder %s23, 1
      %p41 = por %p39, %p40
      %p42 = scmp.ne.s32.totalorder %s31, %s32
      %p43 = scmp.eq.s32.totalorder %s23, 0
      %p44 = por %p42, %p43
      %p45 = scmp.ne.s32.totalorder %s31, %s32
      %p46 = scmp.eq.s32.totalorder %s24, 1
      %p47 = por %p45, %p46
      %p49 = scmp.ne.s32.totalorder %s32, %s48
      %p50 = scmp.eq.s32.totalorder %s24, 0
      %p51 = por %p49, %p50
      %s53 = sadd.s32 %s52, 1
      %p56 = scmp.eq.s32.totalorder %s18, 1
      %p57 = scmp.ne.s32.totalorder %s52, %s54
      %p58 = scmp.eq.s32.totalorder %s18, 0
      %p59 = por %p57, %p58
      %p60 = scmp.ne.s32.totalorder %s52, %s54
      %p61 = scmp.eq.s32.totalorder %s23, 1
      %p62 = por %p60, %p61
      %p63 = scmp.ne.s32.totalorder %s54, %s55
      %p64 = scmp.eq.s32.totalorder %s23, 0
      %p65 = por %p63, %p64
      %p66 = scmp.ne.s32.totalorder %s54, %s55
      %p67 = scmp.eq.s32.totalorder %s24, 1
      %p68 = por %p66, %p67
      %p70 = scmp.ne.s32.totalorder %s55, %s69
      %p71 = scmp.eq.s32.totalorder %s24, 0
      %p72 = por %p70, %p71
      %s74 = sadd.s32 %s73, 1
      %p77 = scmp.eq.s32.totalorder %s18, 1
      %p78 = scmp.ne.s32.totalorder %s73, %s75
      %p79 = scmp.eq.s32.totalorder %s18, 0
      %p80 = por %p78, %p79
      %p81 = scmp.ne.s32.totalorder %s73, %s75
      %p82 = scmp.eq.s32.totalorder %s23, 1
      %p83 = por %p81, %p82
      %p84 = scmp.ne.s32.totalorder %s75, %s76
      %p85 = scmp.eq.s32.totalorder %s23, 0
      %p86 = por %p84, %p85
      %p87 = scmp.ne.s32.totalorder %s75, %s76
      %p88 = scmp.eq.s32.totalorder %s24, 1
      %p89 = por %p87, %p88
      %p91 = scmp.ne.s32.totalorder %s76, %s90
      %p92 = scmp.eq.s32.totalorder %s24, 0
      %p93 = por %p91, %p92
      %s95 = sadd.s32 %s94, 1
      %p98 = scmp.eq.s32.totalorder %s18, 1
      %p99 = scmp.ne.s32.totalorder %s94, %s96
      %p100 = scmp.eq.s32.totalorder %s18, 0
      %p101 = por %p99, %p100
      %p102 = scmp.ne.s32.totalorder %s94, %s96
      %p103 = scmp.eq.s32.totalorder %s23, 1
      %p104 = por %p102, %p103
      %p105 = scmp.ne.s32.totalorder %s96, %s97
      %p106 = scmp.eq.s32.totalorder %s23, 0
      %p107 = por %p105, %p106
      %p108 = scmp.ne.s32.totalorder %s96, %s97
      %p109 = scmp.eq.s32.totalorder %s24, 1
      %p110 = por %p108, %p109
      %p112 = scmp.ne.s32.totalorder %s97, %s111
      %p113 = scmp.eq.s32.totalorder %s24, 0
      %p114 = por %p112, %p113
      %s116 = sadd.s32 %s115, 1
      %p119 = scmp.eq.s32.totalorder %s18, 1
      %p120 = scmp.ne.s32.totalorder %s115, %s117
      %p121 = scmp.eq.s32.totalorder %s18, 0
      %p122 = por %p120, %p121
      %p123 = scmp.ne.s32.totalorder %s115, %s117
      %p124 = scmp.eq.s32.totalorder %s23, 1
      %p125 = por %p123, %p124
      %p126 = scmp.ne.s32.totalorder %s117, %s118
      %p127 = scmp.eq.s32.totalorder %s23, 0
      %p128 = por %p126, %p127
      %p129 = scmp.ne.s32.totalorder %s117, %s118
      %p130 = scmp.eq.s32.totalorder %s24, 1
      %p131 = por %p129, %p130
      %p133 = scmp.ne.s32.totalorder %s118, %s132
      %p134 = scmp.eq.s32.totalorder %s24, 0
      %p135 = por %p133, %p134
      %s137 = sadd.s32 %s136, 1
      %p140 = scmp.eq.s32.totalorder %s18, 1
      %p141 = scmp.ne.s32.totalorder %s136, %s138
      %p142 = scmp.eq.s32.totalorder %s18, 0
      %p143 = por %p141, %p142
      %p144 = scmp.ne.s32.totalorder %s136, %s138
      %p145 = scmp.eq.s32.totalorder %s23, 1
      %p146 = por %p144, %p145
      %p147 = scmp.ne.s32.totalorder %s138, %s139
      %p148 = scmp.eq.s32.totalorder %s23, 0
      %p149 = por %p147, %p148
      %p150 = scmp.ne.s32.totalorder %s138, %s139
      %p151 = scmp.eq.s32.totalorder %s24, 1
      %p152 = por %p150, %p151
      %p154 = scmp.ne.s32.totalorder %s139, %s153
      %p155 = scmp.eq.s32.totalorder %s24, 0
      %p156 = por %p154, %p155
      %s158 = sadd.s32 %s157, 1
      %p161 = scmp.eq.s32.totalorder %s18, 1
      %p162 = scmp.ne.s32.totalorder %s157, %s159
      %p163 = scmp.eq.s32.totalorder %s18, 0
      %p164 = por %p162, %p163
      %p165 = scmp.ne.s32.totalorder %s157, %s159
      %p166 = scmp.eq.s32.totalorder %s23, 1
      %p167 = por %p165, %p166
      %p168 = scmp.ne.s32.totalorder %s159, %s160
      %p169 = scmp.eq.s32.totalorder %s23, 0
      %p170 = por %p168, %p169
      %p171 = scmp.ne.s32.totalorder %s159, %s160
      %p172 = scmp.eq.s32.totalorder %s24, 1
      %p173 = por %p171, %p172
      %p175 = scmp.ne.s32.totalorder %s160, %s174
      %p176 = scmp.eq.s32.totalorder %s24, 0
      %p177 = por %p175, %p176
      %s179 = sadd.s32 %s178, 1
      %p182 = scmp.eq.s32.totalorder %s18, 1
      %p183 = scmp.ne.s32.totalorder %s178, %s180
      %p184 = scmp.eq.s32.totalorder %s18, 0
      %p185 = por %p183, %p184
      %p186 = scmp.ne.s32.totalorder %s178, %s180
      %p187 = scmp.eq.s32.totalorder %s23, 1
      %p188 = por %p186, %p187
      %p189 = scmp.ne.s32.totalorder %s180, %s181
      %p190 = scmp.eq.s32.totalorder %s23, 0
      %p191 = por %p189, %p190
      %p192 = scmp.ne.s32.totalorder %s180, %s181
      %p193 = scmp.eq.s32.totalorder %s24, 1
      %p194 = por %p192, %p193
      %p196 = scmp.ne.s32.totalorder %s181, %s195
      %p197 = scmp.eq.s32.totalorder %s24, 0
      %p198 = por %p196, %p197
      %s200 = sadd.s32 %s199, 1
      %p203 = scmp.eq.s32.totalorder %s18, 1
      %p204 = scmp.ne.s32.totalorder %s199, %s201
      %p205 = scmp.eq.s32.totalorder %s18, 0
      %p206 = por %p204, %p205
      %p207 = scmp.ne.s32.totalorder %s199, %s201
      %p208 = scmp.eq.s32.totalorder %s23, 1
      %p209 = por %p207, %p208
      %p210 = scmp.ne.s32.totalorder %s201, %s202
      %p211 = scmp.eq.s32.totalorder %s23, 0
      %p212 = por %p210, %p211
      %p213 = scmp.ne.s32.totalorder %s201, %s202
      %p214 = scmp.eq.s32.totalorder %s24, 1
      %p215 = por %p213, %p214
      %p217 = scmp.ne.s32.totalorder %s202, %s216
      %p218 = scmp.eq.s32.totalorder %s24, 0
      %p219 = por %p217, %p218
      %s220 = ssub.s32 %s18, %s25
      %p221 = scmp.eq.s32.totalorder %s220, 0
      %s223 = sadd.s32 %s222, 1
      %s224 = scalar_select %p221, %s222, %s223
      %p227 = pneg %p221
      %p228 = scmp.eq.s32.totalorder %s18, 1
      %p229 = por %p227, %p228
      %p230 = scmp.ne.s32.totalorder %s222, %s225
      %p231 = scmp.eq.s32.totalorder %s18, 0
      %p232 = por %p230, %p231
      %p233 = scmp.ne.s32.totalorder %s222, %s225
      %p234 = scmp.eq.s32.totalorder %s23, 1
      %p235 = por %p233, %p234
      %p236 = scmp.ne.s32.totalorder %s225, %s226
      %p237 = scmp.eq.s32.totalorder %s23, 0
      %p238 = por %p236, %p237
      %p239 = scmp.ne.s32.totalorder %s225, %s226
      %p240 = scmp.eq.s32.totalorder %s24, 1
      %p241 = por %p239, %p240
      %p243 = scmp.ne.s32.totalorder %s226, %s242
      %p244 = scmp.eq.s32.totalorder %s24, 0
      %p245 = por %p243, %p244
      %p246 = scmp.le.s32.totalorder 1, %s18
      %p247 = scmp.lt.s32.totalorder %s18, 3
      %p248 = pnand %p246, %p247
      %p249 = pneg %p248
      // Predicated region
      $region9: #{residual_cc_block_forward.1} parent=5 // pred_check
        _
      $region10: #{residual_cc_block_forward.1} parent=5 // pred_check_branch
        %251 = sbr.rel (%p248) target = $region12
      $region11: #{residual_cc_block_forward.1} parent=5 // pred_region
        %s252 = ssub.s32 %s18, 1
        // Predicated region
        $region13: #{residual_cc_block_forward.1} parent=11 // pred_check
          %p253 = pneg %p65
        $region14: #{residual_cc_block_forward.1} parent=11 // pred_check_branch
          %255 = sbr.rel (%p253) target = $region16
        $region15: #{residual_cc_block_forward.1} parent=11 // pred_region
          _
        $region16: #{residual_cc_block_forward.1} parent=11 // pred_fallthru
          _
        // Predicated region
        $region17: #{residual_cc_block_forward.1} parent=11 // pred_check
          %p256 = pneg %p86
        $region18: #{residual_cc_block_forward.1} parent=11 // pred_check_branch
          %258 = sbr.rel (%p256) target = $region20
        $region19: #{residual_cc_block_forward.1} parent=11 // pred_region
          _
        $region20: #{residual_cc_block_forward.1} parent=11 // pred_fallthru
          _
        // Predicated region
        $region21: #{residual_cc_block_forward.1} parent=11 // pred_check
          %p259 = pneg %p107
        $region22: #{residual_cc_block_forward.1} parent=11 // pred_check_branch
          %261 = sbr.rel (%p259) target = $region24
        $region23: #{residual_cc_block_forward.1} parent=11 // pred_region
          _
        $region24: #{residual_cc_block_forward.1} parent=11 // pred_fallthru
          _
        // Predicated region
        $region25: #{residual_cc_block_forward.1} parent=11 // pred_check
          %p262 = pneg %p128
        $region26: #{residual_cc_block_forward.1} parent=11 // pred_check_branch
          %264 = sbr.rel (%p262) target = $region28
        $region27: #{residual_cc_block_forward.1} parent=11 // pred_region
          _
        $region28: #{residual_cc_block_forward.1} parent=11 // pred_fallthru
          _
        // Predicated region
        $region29: #{residual_cc_block_forward.1} parent=11 // pred_check
          %p265 = pneg %p149
        $region30: #{residual_cc_block_forward.1} parent=11 // pred_check_branch
          %267 = sbr.rel (%p265) target = $region32
        $region31: #{residual_cc_block_forward.1} parent=11 // pred_region
          _
        $region32: #{residual_cc_block_forward.1} parent=11 // pred_fallthru
          _
        // Predicated region
        $region33: #{residual_cc_block_forward.1} parent=11 // pred_check
          %p268 = pneg %p170
        $region34: #{residual_cc_block_forward.1} parent=11 // pred_check_branch
          %270 = sbr.rel (%p268) target = $region36
        $region35: #{residual_cc_block_forward.1} parent=11 // pred_region
          _
        $region36: #{residual_cc_block_forward.1} parent=11 // pred_fallthru
          _
        // Predicated region
        $region37: #{residual_cc_block_forward.1} parent=11 // pred_check
          %p271 = pneg %p191
        $region38: #{residual_cc_block_forward.1} parent=11 // pred_check_branch
          %273 = sbr.rel (%p271) target = $region40
        $region39: #{residual_cc_block_forward.1} parent=11 // pred_region
          _
        $region40: #{residual_cc_block_forward.1} parent=11 // pred_fallthru
          _
        // Predicated region
        $region41: #{residual_cc_block_forward.1} parent=11 // pred_check
          %p274 = pneg %p212
        $region42: #{residual_cc_block_forward.1} parent=11 // pred_check_branch
          %276 = sbr.rel (%p274) target = $region44
        $region43: #{residual_cc_block_forward.1} parent=11 // pred_region
          _
        $region44: #{residual_cc_block_forward.1} parent=11 // pred_fallthru
          _
      $region12: #{residual_cc_block_forward.1} parent=5 // pred_fallthru
        _
      %p277 = scmp.lt.s32.totalorder %s18, 2
      // Predicated region
      $region45: #{residual_cc_block_forward.1} parent=5 // pred_check
        %p278 = pneg %p277
      $region46: #{residual_cc_block_forward.1} parent=5 // pred_check_branch
        %280 = sbr.rel (%p278) target = $region48
      $region47: #{residual_cc_block_forward.1} parent=5 // pred_region
        // Predicated region
        $region49: #{residual_cc_block_forward.1} parent=47 // pred_check
          %p281 = pneg %p38
        $region50: #{residual_cc_block_forward.1} parent=47 // pred_check_branch
          %283 = sbr.rel (%p281) target = $region52
        $region51: #{residual_cc_block_forward.1} parent=47 // pred_region
          %p284 = scmp.lt.s32.totalorder %s18, 1
          %s285 = scalar_select %p284, %s18, 1
          %s286 = smul.addr %s285, 54
          %s287 = smul.addr %s286, 8
          %s288 = scalar_lea.vmem %s0, %s287
        $region52: #{residual_cc_block_forward.1} parent=47 // pred_fallthru
          _
      $region48: #{residual_cc_block_forward.1} parent=5 // pred_fallthru
        _
      %p289 = scmp.le.s32.totalorder 1, %s18
      %p290 = scmp.lt.s32.totalorder %s18, 3
      %p291 = pnand %p289, %p290
      %p292 = pneg %p291
      // Predicated region
      $region53: #{residual_cc_block_forward.1} parent=5 // pred_check
        _
      $region54: #{residual_cc_block_forward.1} parent=5 // pred_check_branch
        %294 = sbr.rel (%p291) target = $region56
      $region55: #{residual_cc_block_forward.1} parent=5 // pred_region
        %s295 = ssub.s32 %s18, 1
        %p296 = scmp.lt.s32.totalorder %s23, 1
        %s297 = scalar_select %p296, %s23, 1
        %s298 = smul.addr %s297, 54
        %s299 = smul.addr %s298, 8
        %s300 = scalar_lea.vmem %s0, %s299
        %p301 = pneg %p44
        %p302 = pneg %p41
        %p303 = pneg %p65
        %p304 = pneg %p62
        %p305 = pneg %p86
        %p306 = pneg %p83
        %p307 = pneg %p107
        %p308 = pneg %p104
        %p309 = pneg %p128
        %p310 = pneg %p125
        %p311 = pneg %p149
        %p312 = pneg %p146
        %p313 = pneg %p170
        %p314 = pneg %p167
        %p315 = pneg %p191
        %p316 = pneg %p188
        %p317 = pneg %p212
        %p318 = pneg %p209
        %p319 = pneg %p238
        %p320 = pneg %p235
        %s321 = sand.u32 %s225, 1
        %s322 = scalar_lea.sflag [#allocation4], %s321
        %s323 = sand.u32 %s225, 1
        %s324 = smul.addr %s323, 64
        %s325 = scalar_lea.vmem [#allocation3], %s324
        %p326 = scmp.lt.s32.totalorder %s23, 1
        %s327 = scalar_select %p326, %s23, 1
        %s328 = smul.addr %s327, 54
        %s329 = smul.addr %s328, 8
        %s330 = scalar_lea.vmem %s0, %s329
        %v331 = vld [vmem:[%s330] sm:$0xff]
        %v332 = vld [vmem:[%s330 + $0x8] sm:$0xff]
        %v333 = vld [vmem:[%s330 + $0x18] sm:$0xff]
        %v334 = vld [vmem:[%s330 + $0x20] sm:$0xff]
        %v335 = vld [vmem:[%s330 + $0x30] sm:$0xff]
        %v336 = vld [vmem:[%s330 + $0x38] sm:$0xff]
        %v337 = vld [vmem:[%s330 + $0x48] sm:$0xff]
        %v338 = vld [vmem:[%s330 + $0x50] sm:$0xff]
        %v339 = vld [vmem:[%s330 + $0x60] sm:$0xff]
        %v340 = vld [vmem:[%s330 + $0x68] sm:$0xff]
        %v341 = vld [vmem:[%s330 + $0x78] sm:$0xff]
        %v342 = vld [vmem:[%s330 + $0x80] sm:$0xff]
        %v343 = vld [vmem:[%s330 + $0x90] sm:$0xff]
        %v344 = vld [vmem:[%s330 + $0x98] sm:$0xff]
        %v345 = vld [vmem:[%s330 + $0xa8] sm:$0xff]
        %v346 = vld [vmem:[%s330 + $0xb0] sm:$0xff]
        %v347 = vld [vmem:[%s330 + $0xc0] sm:$0xff]
        %v348 = vld [vmem:[%s330 + $0xc8] sm:$0xff]
        %v349 = vld [vmem:[%s330 + $0xd8] sm:$0xff]
        %v350 = vld [vmem:[%s330 + $0xe0] sm:$0xff]
        %v351 = vld [vmem:[%s330 + $0xf0] sm:$0xff]
        %v352 = vld [vmem:[%s330 + $0xf8] sm:$0xff]
        %v353 = vld [vmem:[%s330 + $0x108] sm:$0xff]
        %v354 = vld [vmem:[%s330 + $0x110] sm:$0xff]
        %v355 = vld [vmem:[%s330 + $0x120] sm:$0xff]
        %v356 = vld [vmem:[%s330 + $0x128] sm:$0xff]
        %v357 = vld [vmem:[%s330 + $0x138] sm:$0xff]
        %v358 = vld [vmem:[%s330 + $0x140] sm:$0xff]
        %v359 = vld [vmem:[%s330 + $0x150] sm:$0xff]
        %v360 = vld [vmem:[%s330 + $0x158] sm:$0xff]
        %v361 = vld [vmem:[%s330 + $0x168] sm:$0xff]
        %v362 = vld [vmem:[%s330 + $0x170] sm:$0xff]
        %v363 = vld [vmem:[%s2] sm:$0x3f]
        %v364 = vld [vmem:[%s330 + $0x1] sm:$0xff]
        %v365 = vld [vmem:[%s330 + $0x9] sm:$0xff]
        %v366 = vld [vmem:[%s330 + $0x19] sm:$0xff]
        %v367 = vld [vmem:[%s330 + $0x21] sm:$0xff]
        %v368 = vld [vmem:[%s330 + $0x31] sm:$0xff]
        %v369 = vld [vmem:[%s330 + $0x39] sm:$0xff]
        %v370 = vld [vmem:[%s330 + $0x49] sm:$0xff]
        %v371 = vld [vmem:[%s330 + $0x51] sm:$0xff]
        %v372 = vld [vmem:[%s330 + $0x61] sm:$0xff]
        %v373 = vld [vmem:[%s330 + $0x69] sm:$0xff]
        %v374 = vld [vmem:[%s330 + $0x79] sm:$0xff]
        %v375 = vld [vmem:[%s330 + $0x81] sm:$0xff]
        %v376 = vld [vmem:[%s330 + $0x91] sm:$0xff]
        %v377 = vld [vmem:[%s330 + $0x99] sm:$0xff]
        %v378 = vld [vmem:[%s330 + $0xa9] sm:$0xff]
        %v379 = vld [vmem:[%s330 + $0xb1] sm:$0xff]
        %v380 = vld [vmem:[%s330 + $0xc1] sm:$0xff]
        %v381 = vld [vmem:[%s330 + $0xc9] sm:$0xff]
        %v382 = vld [vmem:[%s330 + $0xd9] sm:$0xff]
        %v383 = vld [vmem:[%s330 + $0xe1] sm:$0xff]
        %v384 = vld [vmem:[%s330 + $0xf1] sm:$0xff]
        %v385 = vld [vmem:[%s330 + $0xf9] sm:$0xff]
        %v386 = vld [vmem:[%s330 + $0x109] sm:$0xff]
        %v387 = vld [vmem:[%s330 + $0x111] sm:$0xff]
        %v388 = vld [vmem:[%s330 + $0x121] sm:$0xff]
        %v389 = vld [vmem:[%s330 + $0x129] sm:$0xff]
        %v390 = vld [vmem:[%s330 + $0x139] sm:$0xff]
        %v391 = vld [vmem:[%s330 + $0x141] sm:$0xff]
        %v392 = vld [vmem:[%s330 + $0x151] sm:$0xff]
        %v393 = vld [vmem:[%s330 + $0x159] sm:$0xff]
        %v394 = vld [vmem:[%s330 + $0x169] sm:$0xff]
        %v395 = vld [vmem:[%s330 + $0x171] sm:$0xff]
        %s396 = scalar_lea.vmem %s2, 8
        %v397 = vld [vmem:[%s396] sm:$0x3f]
        %vm398 = vcmask 48128
        %v400 = vsel %vm398, %v364, 0
        %v403 = vsel %vm398, %v365, 0
        %v406 = vsel %vm398, %v366, 0
        %v409 = vsel %vm398, %v367, 0
        %v412 = vsel %vm398, %v368, 0
        %v415 = vsel %vm398, %v369, 0
        %v418 = vsel %vm398, %v370, 0
        %v421 = vsel %vm398, %v371, 0
        %v424 = vsel %vm398, %v372, 0
        %v427 = vsel %vm398, %v373, 0
        %v430 = vsel %vm398, %v374, 0
        %v433 = vsel %vm398, %v375, 0
        %v436 = vsel %vm398, %v376, 0
        %v439 = vsel %vm398, %v377, 0
        %v442 = vsel %vm398, %v378, 0
        %v445 = vsel %vm398, %v379, 0
        %v448 = vsel %vm398, %v380, 0
        %v451 = vsel %vm398, %v381, 0
        %v454 = vsel %vm398, %v382, 0
        %v457 = vsel %vm398, %v383, 0
        %v460 = vsel %vm398, %v384, 0
        %v463 = vsel %vm398, %v385, 0
        %v466 = vsel %vm398, %v386, 0
        %v469 = vsel %vm398, %v387, 0
        %v472 = vsel %vm398, %v388, 0
        %v475 = vsel %vm398, %v389, 0
        %v478 = vsel %vm398, %v390, 0
        %v481 = vsel %vm398, %v391, 0
        %v484 = vsel %vm398, %v392, 0
        %v487 = vsel %vm398, %v393, 0
        %v490 = vsel %vm398, %v394, 0
        %v493 = vsel %vm398, %v395, 0
        %vm495 = vcmask 1045504
        %v497 = vsel %vm495, %v397, 0
        %499 = vmatpush.msra.mxu0 0.0
        %500 = vmatpush.msra.mxu0 0.0
        %501 = vmatpush.msra.mxu0 0.0
        %502 = vmatpush.msra.mxu0 0.0
        %503 = vmatpush.msra.mxu0 0.0
        %504 = vmatpush.msra.mxu0 0.0
        %505 = vmatpush.msra.mxu0 0.0
        %506 = vmatpush.msra.mxu0 0.0
        %507 = vmatpush.msra.mxu0 0.0
        %508 = vmatpush.msra.mxu0 0.0
        %509 = vmatpush.msra.mxu0 0.0
        %510 = vmatpush.msra.mxu0 0.0
        %511 = vmatpush.msra.mxu0 0.0
        %512 = vmatpush.msra.mxu0 0.0
        %513 = vmatpush.msra.mxu0 0.0
        %514 = vmatpush.msra.mxu0 %v497
        %515 = vmatmul.f32.gmra.mxu0 %v400
        %v516 = vpop.f32.mrf.mxu0
        %v517 = vadd.f32 0.0, %v516
        %518 = vmatmul.f32.gmra.mxu0 %v403
        %v519 = vpop.f32.mrf.mxu0
        %v520 = vadd.f32 0.0, %v519
        %521 = vmatmul.f32.gmra.mxu0 %v406
        %v522 = vpop.f32.mrf.mxu0
        %v523 = vadd.f32 0.0, %v522
        %524 = vmatmul.f32.gmra.mxu0 %v409
        %v525 = vpop.f32.mrf.mxu0
        %v526 = vadd.f32 0.0, %v525
        %527 = vmatmul.f32.gmra.mxu0 %v412
        %v528 = vpop.f32.mrf.mxu0
        %v529 = vadd.f32 0.0, %v528
        %530 = vmatmul.f32.gmra.mxu0 %v415
        %v531 = vpop.f32.mrf.mxu0
        %v532 = vadd.f32 0.0, %v531
        %533 = vmatmul.f32.gmra.mxu0 %v418
        %v534 = vpop.f32.mrf.mxu0
        %v535 = vadd.f32 0.0, %v534
        %536 = vmatmul.f32.gmra.mxu0 %v421
        %v537 = vpop.f32.mrf.mxu0
        %v538 = vadd.f32 0.0, %v537
        %539 = vmatmul.f32.gmra.mxu0 %v424
        %v540 = vpop.f32.mrf.mxu0
        %v541 = vadd.f32 0.0, %v540
        %542 = vmatmul.f32.gmra.mxu0 %v427
        %v543 = vpop.f32.mrf.mxu0
        %v544 = vadd.f32 0.0, %v543
        %545 = vmatmul.f32.gmra.mxu0 %v430
        %v546 = vpop.f32.mrf.mxu0
        %v547 = vadd.f32 0.0, %v546
        %548 = vmatmul.f32.gmra.mxu0 %v433
        %v549 = vpop.f32.mrf.mxu0
        %v550 = vadd.f32 0.0, %v549
        %551 = vmatmul.f32.gmra.mxu0 %v436
        %v552 = vpop.f32.mrf.mxu0
        %v553 = vadd.f32 0.0, %v552
        %554 = vmatmul.f32.gmra.mxu0 %v439
        %v555 = vpop.f32.mrf.mxu0
        %v556 = vadd.f32 0.0, %v555
        %557 = vmatmul.f32.gmra.mxu0 %v442
        %v558 = vpop.f32.mrf.mxu0
        %v559 = vadd.f32 0.0, %v558
        %560 = vmatmul.f32.gmra.mxu0 %v445
        %v561 = vpop.f32.mrf.mxu0
        %v562 = vadd.f32 0.0, %v561
        %563 = vmatmul.f32.gmra.mxu0 %v448
        %v564 = vpop.f32.mrf.mxu0
        %v565 = vadd.f32 0.0, %v564
        %566 = vmatmul.f32.gmra.mxu0 %v451
        %v567 = vpop.f32.mrf.mxu0
        %v568 = vadd.f32 0.0, %v567
        %569 = vmatmul.f32.gmra.mxu0 %v454
        %v570 = vpop.f32.mrf.mxu0
        %v571 = vadd.f32 0.0, %v570
        %572 = vmatmul.f32.gmra.mxu0 %v457
        %v573 = vpop.f32.mrf.mxu0
        %v574 = vadd.f32 0.0, %v573
        %575 = vmatmul.f32.gmra.mxu0 %v460
        %v576 = vpop.f32.mrf.mxu0
        %v577 = vadd.f32 0.0, %v576
        %578 = vmatmul.f32.gmra.mxu0 %v463
        %v579 = vpop.f32.mrf.mxu0
        %v580 = vadd.f32 0.0, %v579
        %581 = vmatmul.f32.gmra.mxu0 %v466
        %v582 = vpop.f32.mrf.mxu0
        %v583 = vadd.f32 0.0, %v582
        %584 = vmatmul.f32.gmra.mxu0 %v469
        %v585 = vpop.f32.mrf.mxu0
        %v586 = vadd.f32 0.0, %v585
        %587 = vmatmul.f32.gmra.mxu0 %v472
        %v588 = vpop.f32.mrf.mxu0
        %v589 = vadd.f32 0.0, %v588
        %590 = vmatmul.f32.gmra.mxu0 %v475
        %v591 = vpop.f32.mrf.mxu0
        %v592 = vadd.f32 0.0, %v591
        %593 = vmatmul.f32.gmra.mxu0 %v478
        %v594 = vpop.f32.mrf.mxu0
        %v595 = vadd.f32 0.0, %v594
        %596 = vmatmul.f32.gmra.mxu0 %v481
        %v597 = vpop.f32.mrf.mxu0
        %v598 = vadd.f32 0.0, %v597
        %599 = vmatmul.f32.gmra.mxu0 %v484
        %v600 = vpop.f32.mrf.mxu0
        %v601 = vadd.f32 0.0, %v600
        %602 = vmatmul.f32.gmra.mxu0 %v487
        %v603 = vpop.f32.mrf.mxu0
        %v604 = vadd.f32 0.0, %v603
        %605 = vmatmul.f32.gmra.mxu0 %v490
        %v606 = vpop.f32.mrf.mxu0
        %v607 = vadd.f32 0.0, %v606
        %608 = vmatmul.f32.gmra.mxu0 %v493
        %v609 = vpop.f32.mrf.mxu0
        %v610 = vadd.f32 0.0, %v609
        %611 = vdwg.mxu0
        %v613 = vsel %vm398, %v331, 0
        %v616 = vsel %vm398, %v332, 0
        %v619 = vsel %vm398, %v333, 0
        %v622 = vsel %vm398, %v334, 0
        %v625 = vsel %vm398, %v335, 0
        %v628 = vsel %vm398, %v336, 0
        %v631 = vsel %vm398, %v337, 0
        %v634 = vsel %vm398, %v338, 0
        %v637 = vsel %vm398, %v339, 0
        %v640 = vsel %vm398, %v340, 0
        %v643 = vsel %vm398, %v341, 0
        %v646 = vsel %vm398, %v342, 0
        %v649 = vsel %vm398, %v343, 0
        %v652 = vsel %vm398, %v344, 0
        %v655 = vsel %vm398, %v345, 0
        %v658 = vsel %vm398, %v346, 0
        %v661 = vsel %vm398, %v347, 0
        %v664 = vsel %vm398, %v348, 0
        %v667 = vsel %vm398, %v349, 0
        %v670 = vsel %vm398, %v350, 0
        %v673 = vsel %vm398, %v351, 0
        %v676 = vsel %vm398, %v352, 0
        %v679 = vsel %vm398, %v353, 0
        %v682 = vsel %vm398, %v354, 0
        %v685 = vsel %vm398, %v355, 0
        %v688 = vsel %vm398, %v356, 0
        %v691 = vsel %vm398, %v357, 0
        %v694 = vsel %vm398, %v358, 0
        %v697 = vsel %vm398, %v359, 0
        %v700 = vsel %vm398, %v360, 0
        %v703 = vsel %vm398, %v361, 0
        %v706 = vsel %vm398, %v362, 0
        %v709 = vsel %vm495, %v363, 0
        %711 = vmatpush.msra.mxu0 0.0
        %712 = vmatpush.msra.mxu0 0.0
        %713 = vmatpush.msra.mxu0 0.0
        %714 = vmatpush.msra.mxu0 0.0
        %715 = vmatpush.msra.mxu0 0.0
        %716 = vmatpush.msra.mxu0 0.0
        %717 = vmatpush.msra.mxu0 0.0
        %718 = vmatpush.msra.mxu0 0.0
        %719 = vmatpush.msra.mxu0 0.0
        %720 = vmatpush.msra.mxu0 0.0
        %721 = vmatpush.msra.mxu0 0.0
        %722 = vmatpush.msra.mxu0 0.0
        %723 = vmatpush.msra.mxu0 0.0
        %724 = vmatpush.msra.mxu0 0.0
        %725 = vmatpush.msra.mxu0 0.0
        %726 = vmatpush.msra.mxu0 %v709
        %727 = vmatmul.f32.gmra.mxu0 %v613
        %v728 = vpop.f32.mrf.mxu0
        %v729 = vadd.f32 %v517, %v728
        %730 = vmatmul.f32.gmra.mxu0 %v616
        %v731 = vpop.f32.mrf.mxu0
        %v732 = vadd.f32 %v520, %v731
        %733 = vmatmul.f32.gmra.mxu0 %v619
        %v734 = vpop.f32.mrf.mxu0
        %v735 = vadd.f32 %v523, %v734
        %736 = vmatmul.f32.gmra.mxu0 %v622
        %v737 = vpop.f32.mrf.mxu0
        %v738 = vadd.f32 %v526, %v737
        %739 = vmatmul.f32.gmra.mxu0 %v625
        %v740 = vpop.f32.mrf.mxu0
        %v741 = vadd.f32 %v529, %v740
        %742 = vmatmul.f32.gmra.mxu0 %v628
        %v743 = vpop.f32.mrf.mxu0
        %v744 = vadd.f32 %v532, %v743
        %745 = vmatmul.f32.gmra.mxu0 %v631
        %v746 = vpop.f32.mrf.mxu0
        %v747 = vadd.f32 %v535, %v746
        %748 = vmatmul.f32.gmra.mxu0 %v634
        %v749 = vpop.f32.mrf.mxu0
        %v750 = vadd.f32 %v538, %v749
        %751 = vmatmul.f32.gmra.mxu0 %v637
        %v752 = vpop.f32.mrf.mxu0
        %v753 = vadd.f32 %v541, %v752
        %754 = vmatmul.f32.gmra.mxu0 %v640
        %v755 = vpop.f32.mrf.mxu0
        %v756 = vadd.f32 %v544, %v755
        %757 = vmatmul.f32.gmra.mxu0 %v643
        %v758 = vpop.f32.mrf.mxu0
        %v759 = vadd.f32 %v547, %v758
        %760 = vmatmul.f32.gmra.mxu0 %v646
        %v761 = vpop.f32.mrf.mxu0
        %v762 = vadd.f32 %v550, %v761
        %763 = vmatmul.f32.gmra.mxu0 %v649
        %v764 = vpop.f32.mrf.mxu0
        %v765 = vadd.f32 %v553, %v764
        %766 = vmatmul.f32.gmra.mxu0 %v652
        %v767 = vpop.f32.mrf.mxu0
        %v768 = vadd.f32 %v556, %v767
        %769 = vmatmul.f32.gmra.mxu0 %v655
        %v770 = vpop.f32.mrf.mxu0
        %v771 = vadd.f32 %v559, %v770
        %772 = vmatmul.f32.gmra.mxu0 %v658
        %v773 = vpop.f32.mrf.mxu0
        %v774 = vadd.f32 %v562, %v773
        %775 = vmatmul.f32.gmra.mxu0 %v661
        %v776 = vpop.f32.mrf.mxu0
        %v777 = vadd.f32 %v565, %v776
        %778 = vmatmul.f32.gmra.mxu0 %v664
        %v779 = vpop.f32.mrf.mxu0
        %v780 = vadd.f32 %v568, %v779
        %781 = vmatmul.f32.gmra.mxu0 %v667
        %v782 = vpop.f32.mrf.mxu0
        %v783 = vadd.f32 %v571, %v782
        %784 = vmatmul.f32.gmra.mxu0 %v670
        %v785 = vpop.f32.mrf.mxu0
        %v786 = vadd.f32 %v574, %v785
        %787 = vmatmul.f32.gmra.mxu0 %v673
        %v788 = vpop.f32.mrf.mxu0
        %v789 = vadd.f32 %v577, %v788
        %790 = vmatmul.f32.gmra.mxu0 %v676
        %v791 = vpop.f32.mrf.mxu0
        %v792 = vadd.f32 %v580, %v791
        %793 = vmatmul.f32.gmra.mxu0 %v679
        %v794 = vpop.f32.mrf.mxu0
        %v795 = vadd.f32 %v583, %v794
        %796 = vmatmul.f32.gmra.mxu0 %v682
        %v797 = vpop.f32.mrf.mxu0
        %v798 = vadd.f32 %v586, %v797
        %799 = vmatmul.f32.gmra.mxu0 %v685
        %v800 = vpop.f32.mrf.mxu0
        %v801 = vadd.f32 %v589, %v800
        %802 = vmatmul.f32.gmra.mxu0 %v688
        %v803 = vpop.f32.mrf.mxu0
        %v804 = vadd.f32 %v592, %v803
        %805 = vmatmul.f32.gmra.mxu0 %v691
        %v806 = vpop.f32.mrf.mxu0
        %v807 = vadd.f32 %v595, %v806
        %808 = vmatmul.f32.gmra.mxu0 %v694
        %v809 = vpop.f32.mrf.mxu0
        %v810 = vadd.f32 %v598, %v809
        %811 = vmatmul.f32.gmra.mxu0 %v697
        %v812 = vpop.f32.mrf.mxu0
        %v813 = vadd.f32 %v601, %v812
        %814 = vmatmul.f32.gmra.mxu0 %v700
        %v815 = vpop.f32.mrf.mxu0
        %v816 = vadd.f32 %v604, %v815
        %817 = vmatmul.f32.gmra.mxu0 %v703
        %v818 = vpop.f32.mrf.mxu0
        %v819 = vadd.f32 %v607, %v818
        %820 = vmatmul.f32.gmra.mxu0 %v706
        %v821 = vpop.f32.mrf.mxu0
        %v822 = vadd.f32 %v610, %v821
        %823 = vdwg.mxu0
        %v824 = vld [vmem:[%s330 + $0x2] sm:$0xff]
        %v825 = vld [vmem:[%s330 + $0xa] sm:$0xff]
        %v826 = vld [vmem:[%s330 + $0x1a] sm:$0xff]
        %v827 = vld [vmem:[%s330 + $0x22] sm:$0xff]
        %v828 = vld [vmem:[%s330 + $0x32] sm:$0xff]
        %v829 = vld [vmem:[%s330 + $0x3a] sm:$0xff]
        %v830 = vld [vmem:[%s330 + $0x4a] sm:$0xff]
        %v831 = vld [vmem:[%s330 + $0x52] sm:$0xff]
        %v832 = vld [vmem:[%s330 + $0x62] sm:$0xff]
        %v833 = vld [vmem:[%s330 + $0x6a] sm:$0xff]
        %v834 = vld [vmem:[%s330 + $0x7a] sm:$0xff]
        %v835 = vld [vmem:[%s330 + $0x82] sm:$0xff]
        %v836 = vld [vmem:[%s330 + $0x92] sm:$0xff]
        %v837 = vld [vmem:[%s330 + $0x9a] sm:$0xff]
        %v838 = vld [vmem:[%s330 + $0xaa] sm:$0xff]
        %v839 = vld [vmem:[%s330 + $0xb2] sm:$0xff]
        %v840 = vld [vmem:[%s330 + $0xc2] sm:$0xff]
        %v841 = vld [vmem:[%s330 + $0xca] sm:$0xff]
        %v842 = vld [vmem:[%s330 + $0xda] sm:$0xff]
        %v843 = vld [vmem:[%s330 + $0xe2] sm:$0xff]
        %v844 = vld [vmem:[%s330 + $0xf2] sm:$0xff]
        %v845 = vld [vmem:[%s330 + $0xfa] sm:$0xff]
        %v846 = vld [vmem:[%s330 + $0x10a] sm:$0xff]
        %v847 = vld [vmem:[%s330 + $0x112] sm:$0xff]
        %v848 = vld [vmem:[%s330 + $0x122] sm:$0xff]
        %v849 = vld [vmem:[%s330 + $0x12a] sm:$0xff]
        %v850 = vld [vmem:[%s330 + $0x13a] sm:$0xff]
        %v851 = vld [vmem:[%s330 + $0x142] sm:$0xff]
        %v852 = vld [vmem:[%s330 + $0x152] sm:$0xff]
        %v853 = vld [vmem:[%s330 + $0x15a] sm:$0xff]
        %v854 = vld [vmem:[%s330 + $0x16a] sm:$0xff]
        %v855 = vld [vmem:[%s330 + $0x172] sm:$0xff]
        %s856 = scalar_lea.vmem %s2, 16
        %v857 = vld [vmem:[%s856] sm:$0x3f]
        %v859 = vsel %vm398, %v824, 0
        %v862 = vsel %vm398, %v825, 0
        %v865 = vsel %vm398, %v826, 0
        %v868 = vsel %vm398, %v827, 0
        %v871 = vsel %vm398, %v828, 0
        %v874 = vsel %vm398, %v829, 0
        %v877 = vsel %vm398, %v830, 0
        %v880 = vsel %vm398, %v831, 0
        %v883 = vsel %vm398, %v832, 0
        %v886 = vsel %vm398, %v833, 0
        %v889 = vsel %vm398, %v834, 0
        %v892 = vsel %vm398, %v835, 0
        %v895 = vsel %vm398, %v836, 0
        %v898 = vsel %vm398, %v837, 0
        %v901 = vsel %vm398, %v838, 0
        %v904 = vsel %vm398, %v839, 0
        %v907 = vsel %vm398, %v840, 0
        %v910 = vsel %vm398, %v841, 0
        %v913 = vsel %vm398, %v842, 0
        %v916 = vsel %vm398, %v843, 0
        %v919 = vsel %vm398, %v844, 0
        %v922 = vsel %vm398, %v845, 0
        %v925 = vsel %vm398, %v846, 0
        %v928 = vsel %vm398, %v847, 0
        %v931 = vsel %vm398, %v848, 0
        %v934 = vsel %vm398, %v849, 0
        %v937 = vsel %vm398, %v850, 0
        %v940 = vsel %vm398, %v851, 0
        %v943 = vsel %vm398, %v852, 0
        %v946 = vsel %vm398, %v853, 0
        %v949 = vsel %vm398, %v854, 0
        %v952 = vsel %vm398, %v855, 0
        %v955 = vsel %vm495, %v857, 0
        %957 = vmatpush.msra.mxu0 0.0
        %958 = vmatpush.msra.mxu0 0.0
        %959 = vmatpush.msra.mxu0 0.0
        %960 = vmatpush.msra.mxu0 0.0
        %961 = vmatpush.msra.mxu0 0.0
        %962 = vmatpush.msra.mxu0 0.0
        %963 = vmatpush.msra.mxu0 0.0
        %964 = vmatpush.msra.mxu0 0.0
        %965 = vmatpush.msra.mxu0 0.0
        %966 = vmatpush.msra.mxu0 0.0
        %967 = vmatpush.msra.mxu0 0.0
        %968 = vmatpush.msra.mxu0 0.0
        %969 = vmatpush.msra.mxu0 0.0
        %970 = vmatpush.msra.mxu0 0.0
        %971 = vmatpush.msra.mxu0 0.0
        %972 = vmatpush.msra.mxu0 %v955
        %973 = vmatmul.f32.gmra.mxu0 %v859
        %v974 = vpop.f32.mrf.mxu0
        %v975 = vadd.f32 0.0, %v974
        %976 = vmatmul.f32.gmra.mxu0 %v862
        %v977 = vpop.f32.mrf.mxu0
        %v978 = vadd.f32 0.0, %v977
        %979 = vmatmul.f32.gmra.mxu0 %v865
        %v980 = vpop.f32.mrf.mxu0
        %v981 = vadd.f32 0.0, %v980
        %982 = vmatmul.f32.gmra.mxu0 %v868
        %v983 = vpop.f32.mrf.mxu0
        %v984 = vadd.f32 0.0, %v983
        %985 = vmatmul.f32.gmra.mxu0 %v871
        %v986 = vpop.f32.mrf.mxu0
        %v987 = vadd.f32 0.0, %v986
        %988 = vmatmul.f32.gmra.mxu0 %v874
        %v989 = vpop.f32.mrf.mxu0
        %v990 = vadd.f32 0.0, %v989
        %991 = vmatmul.f32.gmra.mxu0 %v877
        %v992 = vpop.f32.mrf.mxu0
        %v993 = vadd.f32 0.0, %v992
        %994 = vmatmul.f32.gmra.mxu0 %v880
        %v995 = vpop.f32.mrf.mxu0
        %v996 = vadd.f32 0.0, %v995
        %997 = vmatmul.f32.gmra.mxu0 %v883
        %v998 = vpop.f32.mrf.mxu0
        %v999 = vadd.f32 0.0, %v998
        %1000 = vmatmul.f32.gmra.mxu0 %v886
        %v1001 = vpop.f32.mrf.mxu0
        %v1002 = vadd.f32 0.0, %v1001
        %1003 = vmatmul.f32.gmra.mxu0 %v889
        %v1004 = vpop.f32.mrf.mxu0
        %v1005 = vadd.f32 0.0, %v1004
        %1006 = vmatmul.f32.gmra.mxu0 %v892
        %v1007 = vpop.f32.mrf.mxu0
        %v1008 = vadd.f32 0.0, %v1007
        %1009 = vmatmul.f32.gmra.mxu0 %v895
        %v1010 = vpop.f32.mrf.mxu0
        %v1011 = vadd.f32 0.0, %v1010
        %1012 = vmatmul.f32.gmra.mxu0 %v898
        %v1013 = vpop.f32.mrf.mxu0
        %v1014 = vadd.f32 0.0, %v1013
        %1015 = vmatmul.f32.gmra.mxu0 %v901
        %v1016 = vpop.f32.mrf.mxu0
        %v1017 = vadd.f32 0.0, %v1016
        %1018 = vmatmul.f32.gmra.mxu0 %v904
        %v1019 = vpop.f32.mrf.mxu0
        %v1020 = vadd.f32 0.0, %v1019
        %1021 = vmatmul.f32.gmra.mxu0 %v907
        %v1022 = vpop.f32.mrf.mxu0
        %v1023 = vadd.f32 0.0, %v1022
        %1024 = vmatmul.f32.gmra.mxu0 %v910
        %v1025 = vpop.f32.mrf.mxu0
        %v1026 = vadd.f32 0.0, %v1025
        %1027 = vmatmul.f32.gmra.mxu0 %v913
        %v1028 = vpop.f32.mrf.mxu0
        %v1029 = vadd.f32 0.0, %v1028
        %1030 = vmatmul.f32.gmra.mxu0 %v916
        %v1031 = vpop.f32.mrf.mxu0
        %v1032 = vadd.f32 0.0, %v1031
        %1033 = vmatmul.f32.gmra.mxu0 %v919
        %v1034 = vpop.f32.mrf.mxu0
        %v1035 = vadd.f32 0.0, %v1034
        %1036 = vmatmul.f32.gmra.mxu0 %v922
        %v1037 = vpop.f32.mrf.mxu0
        %v1038 = vadd.f32 0.0, %v1037
        %1039 = vmatmul.f32.gmra.mxu0 %v925
        %v1040 = vpop.f32.mrf.mxu0
        %v1041 = vadd.f32 0.0, %v1040
        %1042 = vmatmul.f32.gmra.mxu0 %v928
        %v1043 = vpop.f32.mrf.mxu0
        %v1044 = vadd.f32 0.0, %v1043
        %1045 = vmatmul.f32.gmra.mxu0 %v931
        %v1046 = vpop.f32.mrf.mxu0
        %v1047 = vadd.f32 0.0, %v1046
        %1048 = vmatmul.f32.gmra.mxu0 %v934
        %v1049 = vpop.f32.mrf.mxu0
        %v1050 = vadd.f32 0.0, %v1049
        %1051 = vmatmul.f32.gmra.mxu0 %v937
        %v1052 = vpop.f32.mrf.mxu0
        %v1053 = vadd.f32 0.0, %v1052
        %1054 = vmatmul.f32.gmra.mxu0 %v940
        %v1055 = vpop.f32.mrf.mxu0
        %v1056 = vadd.f32 0.0, %v1055
        %1057 = vmatmul.f32.gmra.mxu0 %v943
        %v1058 = vpop.f32.mrf.mxu0
        %v1059 = vadd.f32 0.0, %v1058
        %1060 = vmatmul.f32.gmra.mxu0 %v946
        %v1061 = vpop.f32.mrf.mxu0
        %v1062 = vadd.f32 0.0, %v1061
        %1063 = vmatmul.f32.gmra.mxu0 %v949
        %v1064 = vpop.f32.mrf.mxu0
        %v1065 = vadd.f32 0.0, %v1064
        %1066 = vmatmul.f32.gmra.mxu0 %v952
        %v1067 = vpop.f32.mrf.mxu0
        %v1068 = vadd.f32 0.0, %v1067
        %1069 = vdwg.mxu0
        %v1070 = vadd.f32 %v729, %v975
        %v1071 = vadd.f32 %v732, %v978
        %v1072 = vadd.f32 %v735, %v981
        %v1073 = vadd.f32 %v738, %v984
        %v1074 = vadd.f32 %v741, %v987
        %v1075 = vadd.f32 %v744, %v990
        %v1076 = vadd.f32 %v747, %v993
        %v1077 = vadd.f32 %v750, %v996
        %v1078 = vadd.f32 %v753, %v999
        %v1079 = vadd.f32 %v756, %v1002
        %v1080 = vadd.f32 %v759, %v1005
        %v1081 = vadd.f32 %v762, %v1008
        %v1082 = vadd.f32 %v765, %v1011
        %v1083 = vadd.f32 %v768, %v1014
        %v1084 = vadd.f32 %v771, %v1017
        %v1085 = vadd.f32 %v774, %v1020
        %v1086 = vadd.f32 %v777, %v1023
        %v1087 = vadd.f32 %v780, %v1026
        %v1088 = vadd.f32 %v783, %v1029
        %v1089 = vadd.f32 %v786, %v1032
        %v1090 = vadd.f32 %v789, %v1035
        %v1091 = vadd.f32 %v792, %v1038
        %v1092 = vadd.f32 %v795, %v1041
        %v1093 = vadd.f32 %v798, %v1044
        %v1094 = vadd.f32 %v801, %v1047
        %v1095 = vadd.f32 %v804, %v1050
        %v1096 = vadd.f32 %v807, %v1053
        %v1097 = vadd.f32 %v810, %v1056
        %v1098 = vadd.f32 %v813, %v1059
        %v1099 = vadd.f32 %v816, %v1062
        %v1100 = vadd.f32 %v819, %v1065
        %v1101 = vadd.f32 %v822, %v1068
        %s1102 = scalar_lea.vmem %s330, 24
        %v1103 = vld [vmem:[%s1102] sm:$0xff]
        %v1104 = vld [vmem:[%s1102 + $0x8] sm:$0xff]
        %v1105 = vld [vmem:[%s1102 + $0x18] sm:$0xff]
        %v1106 = vld [vmem:[%s1102 + $0x20] sm:$0xff]
        %v1107 = vld [vmem:[%s1102 + $0x30] sm:$0xff]
        %v1108 = vld [vmem:[%s1102 + $0x38] sm:$0xff]
        %v1109 = vld [vmem:[%s1102 + $0x48] sm:$0xff]
        %v1110 = vld [vmem:[%s1102 + $0x50] sm:$0xff]
        %v1111 = vld [vmem:[%s1102 + $0x60] sm:$0xff]
        %v1112 = vld [vmem:[%s1102 + $0x68] sm:$0xff]
        %v1113 = vld [vmem:[%s1102 + $0x78] sm:$0xff]
        %v1114 = vld [vmem:[%s1102 + $0x80] sm:$0xff]
        %v1115 = vld [vmem:[%s1102 + $0x90] sm:$0xff]
        %v1116 = vld [vmem:[%s1102 + $0x98] sm:$0xff]
        %v1117 = vld [vmem:[%s1102 + $0xa8] sm:$0xff]
        %v1118 = vld [vmem:[%s1102 + $0xb0] sm:$0xff]
        %v1119 = vld [vmem:[%s1102 + $0xc0] sm:$0xff]
        %v1120 = vld [vmem:[%s1102 + $0xc8] sm:$0xff]
        %v1121 = vld [vmem:[%s1102 + $0xd8] sm:$0xff]
        %v1122 = vld [vmem:[%s1102 + $0xe0] sm:$0xff]
        %v1123 = vld [vmem:[%s1102 + $0xf0] sm:$0xff]
        %v1124 = vld [vmem:[%s1102 + $0xf8] sm:$0xff]
        %v1125 = vld [vmem:[%s1102 + $0x108] sm:$0xff]
        %v1126 = vld [vmem:[%s1102 + $0x110] sm:$0xff]
        %v1127 = vld [vmem:[%s1102 + $0x120] sm:$0xff]
        %v1128 = vld [vmem:[%s1102 + $0x128] sm:$0xff]
        %v1129 = vld [vmem:[%s1102 + $0x138] sm:$0xff]
        %v1130 = vld [vmem:[%s1102 + $0x140] sm:$0xff]
        %v1131 = vld [vmem:[%s1102 + $0x150] sm:$0xff]
        %v1132 = vld [vmem:[%s1102 + $0x158] sm:$0xff]
        %v1133 = vld [vmem:[%s1102 + $0x168] sm:$0xff]
        %v1134 = vld [vmem:[%s1102 + $0x170] sm:$0xff]
        %s1135 = scalar_lea.vmem %s2, 24
        %v1136 = vld [vmem:[%s1135] sm:$0x3f]
        %v1138 = vsel %vm398, %v1103, 0
        %v1141 = vsel %vm398, %v1104, 0
        %v1144 = vsel %vm398, %v1105, 0
        %v1147 = vsel %vm398, %v1106, 0
        %v1150 = vsel %vm398, %v1107, 0
        %v1153 = vsel %vm398, %v1108, 0
        %v1156 = vsel %vm398, %v1109, 0
        %v1159 = vsel %vm398, %v1110, 0
        %v1162 = vsel %vm398, %v1111, 0
        %v1165 = vsel %vm398, %v1112, 0
        %v1168 = vsel %vm398, %v1113, 0
        %v1171 = vsel %vm398, %v1114, 0
        %v1174 = vsel %vm398, %v1115, 0
        %v1177 = vsel %vm398, %v1116, 0
        %v1180 = vsel %vm398, %v1117, 0
        %v1183 = vsel %vm398, %v1118, 0
        %v1186 = vsel %vm398, %v1119, 0
        %v1189 = vsel %vm398, %v1120, 0
        %v1192 = vsel %vm398, %v1121, 0
        %v1195 = vsel %vm398, %v1122, 0
        %v1198 = vsel %vm398, %v1123, 0
        %v1201 = vsel %vm398, %v1124, 0
        %v1204 = vsel %vm398, %v1125, 0
        %v1207 = vsel %vm398, %v1126, 0
        %v1210 = vsel %vm398, %v1127, 0
        %v1213 = vsel %vm398, %v1128, 0
        %v1216 = vsel %vm398, %v1129, 0
        %v1219 = vsel %vm398, %v1130, 0
        %v1222 = vsel %vm398, %v1131, 0
        %v1225 = vsel %vm398, %v1132, 0
        %v1228 = vsel %vm398, %v1133, 0
        %v1231 = vsel %vm398, %v1134, 0
        %v1234 = vsel %vm495, %v1136, 0
        %1236 = vmatpush.msra.mxu0 0.0
        %1237 = vmatpush.msra.mxu0 0.0
        %1238 = vmatpush.msra.mxu0 0.0
        %1239 = vmatpush.msra.mxu0 0.0
        %1240 = vmatpush.msra.mxu0 0.0
        %1241 = vmatpush.msra.mxu0 0.0
        %1242 = vmatpush.msra.mxu0 0.0
        %1243 = vmatpush.msra.mxu0 0.0
        %1244 = vmatpush.msra.mxu0 0.0
        %1245 = vmatpush.msra.mxu0 0.0
        %1246 = vmatpush.msra.mxu0 0.0
        %1247 = vmatpush.msra.mxu0 0.0
        %1248 = vmatpush.msra.mxu0 0.0
        %1249 = vmatpush.msra.mxu0 0.0
        %1250 = vmatpush.msra.mxu0 0.0
        %1251 = vmatpush.msra.mxu0 %v1234
        %1252 = vmatmul.f32.gmra.mxu0 %v1138
        %v1253 = vpop.f32.mrf.mxu0
        %v1254 = vadd.f32 0.0, %v1253
        %1255 = vmatmul.f32.gmra.mxu0 %v1141
        %v1256 = vpop.f32.mrf.mxu0
        %v1257 = vadd.f32 0.0, %v1256
        %1258 = vmatmul.f32.gmra.mxu0 %v1144
        %v1259 = vpop.f32.mrf.mxu0
        %v1260 = vadd.f32 0.0, %v1259
        %1261 = vmatmul.f32.gmra.mxu0 %v1147
        %v1262 = vpop.f32.mrf.mxu0
        %v1263 = vadd.f32 0.0, %v1262
        %1264 = vmatmul.f32.gmra.mxu0 %v1150
        %v1265 = vpop.f32.mrf.mxu0
        %v1266 = vadd.f32 0.0, %v1265
        %1267 = vmatmul.f32.gmra.mxu0 %v1153
        %v1268 = vpop.f32.mrf.mxu0
        %v1269 = vadd.f32 0.0, %v1268
        %1270 = vmatmul.f32.gmra.mxu0 %v1156
        %v1271 = vpop.f32.mrf.mxu0
        %v1272 = vadd.f32 0.0, %v1271
        %1273 = vmatmul.f32.gmra.mxu0 %v1159
        %v1274 = vpop.f32.mrf.mxu0
        %v1275 = vadd.f32 0.0, %v1274
        %1276 = vmatmul.f32.gmra.mxu0 %v1162
        %v1277 = vpop.f32.mrf.mxu0
        %v1278 = vadd.f32 0.0, %v1277
        %1279 = vmatmul.f32.gmra.mxu0 %v1165
        %v1280 = vpop.f32.mrf.mxu0
        %v1281 = vadd.f32 0.0, %v1280
        %1282 = vmatmul.f32.gmra.mxu0 %v1168
        %v1283 = vpop.f32.mrf.mxu0
        %v1284 = vadd.f32 0.0, %v1283
        %1285 = vmatmul.f32.gmra.mxu0 %v1171
        %v1286 = vpop.f32.mrf.mxu0
        %v1287 = vadd.f32 0.0, %v1286
        %1288 = vmatmul.f32.gmra.mxu0 %v1174
        %v1289 = vpop.f32.mrf.mxu0
        %v1290 = vadd.f32 0.0, %v1289
        %1291 = vmatmul.f32.gmra.mxu0 %v1177
        %v1292 = vpop.f32.mrf.mxu0
        %v1293 = vadd.f32 0.0, %v1292
        %1294 = vmatmul.f32.gmra.mxu0 %v1180
        %v1295 = vpop.f32.mrf.mxu0
        %v1296 = vadd.f32 0.0, %v1295
        %1297 = vmatmul.f32.gmra.mxu0 %v1183
        %v1298 = vpop.f32.mrf.mxu0
        %v1299 = vadd.f32 0.0, %v1298
        %1300 = vmatmul.f32.gmra.mxu0 %v1186
        %v1301 = vpop.f32.mrf.mxu0
        %v1302 = vadd.f32 0.0, %v1301
        %1303 = vmatmul.f32.gmra.mxu0 %v1189
        %v1304 = vpop.f32.mrf.mxu0
        %v1305 = vadd.f32 0.0, %v1304
        %1306 = vmatmul.f32.gmra.mxu0 %v1192
        %v1307 = vpop.f32.mrf.mxu0
        %v1308 = vadd.f32 0.0, %v1307
        %1309 = vmatmul.f32.gmra.mxu0 %v1195
        %v1310 = vpop.f32.mrf.mxu0
        %v1311 = vadd.f32 0.0, %v1310
        %1312 = vmatmul.f32.gmra.mxu0 %v1198
        %v1313 = vpop.f32.mrf.mxu0
        %v1314 = vadd.f32 0.0, %v1313
        %1315 = vmatmul.f32.gmra.mxu0 %v1201
        %v1316 = vpop.f32.mrf.mxu0
        %v1317 = vadd.f32 0.0, %v1316
        %1318 = vmatmul.f32.gmra.mxu0 %v1204
        %v1319 = vpop.f32.mrf.mxu0
        %v1320 = vadd.f32 0.0, %v1319
        %1321 = vmatmul.f32.gmra.mxu0 %v1207
        %v1322 = vpop.f32.mrf.mxu0
        %v1323 = vadd.f32 0.0, %v1322
        %1324 = vmatmul.f32.gmra.mxu0 %v1210
        %v1325 = vpop.f32.mrf.mxu0
        %v1326 = vadd.f32 0.0, %v1325
        %1327 = vmatmul.f32.gmra.mxu0 %v1213
        %v1328 = vpop.f32.mrf.mxu0
        %v1329 = vadd.f32 0.0, %v1328
        %1330 = vmatmul.f32.gmra.mxu0 %v1216
        %v1331 = vpop.f32.mrf.mxu0
        %v1332 = vadd.f32 0.0, %v1331
        %1333 = vmatmul.f32.gmra.mxu0 %v1219
        %v1334 = vpop.f32.mrf.mxu0
        %v1335 = vadd.f32 0.0, %v1334
        %1336 = vmatmul.f32.gmra.mxu0 %v1222
        %v1337 = vpop.f32.mrf.mxu0
        %v1338 = vadd.f32 0.0, %v1337
        %1339 = vmatmul.f32.gmra.mxu0 %v1225
        %v1340 = vpop.f32.mrf.mxu0
        %v1341 = vadd.f32 0.0, %v1340
        %1342 = vmatmul.f32.gmra.mxu0 %v1228
        %v1343 = vpop.f32.mrf.mxu0
        %v1344 = vadd.f32 0.0, %v1343
        %1345 = vmatmul.f32.gmra.mxu0 %v1231
        %v1346 = vpop.f32.mrf.mxu0
        %v1347 = vadd.f32 0.0, %v1346
        %1348 = vdwg.mxu0
        %v1349 = vadd.f32 %v1070, %v1254
        %v1350 = vadd.f32 %v1071, %v1257
        %v1351 = vadd.f32 %v1072, %v1260
        %v1352 = vadd.f32 %v1073, %v1263
        %v1353 = vadd.f32 %v1074, %v1266
        %v1354 = vadd.f32 %v1075, %v1269
        %v1355 = vadd.f32 %v1076, %v1272
        %v1356 = vadd.f32 %v1077, %v1275
        %v1357 = vadd.f32 %v1078, %v1278
        %v1358 = vadd.f32 %v1079, %v1281
        %v1359 = vadd.f32 %v1080, %v1284
        %v1360 = vadd.f32 %v1081, %v1287
        %v1361 = vadd.f32 %v1082, %v1290
        %v1362 = vadd.f32 %v1083, %v1293
        %v1363 = vadd.f32 %v1084, %v1296
        %v1364 = vadd.f32 %v1085, %v1299
        %v1365 = vadd.f32 %v1086, %v1302
        %v1366 = vadd.f32 %v1087, %v1305
        %v1367 = vadd.f32 %v1088, %v1308
        %v1368 = vadd.f32 %v1089, %v1311
        %v1369 = vadd.f32 %v1090, %v1314
        %v1370 = vadd.f32 %v1091, %v1317
        %v1371 = vadd.f32 %v1092, %v1320
        %v1372 = vadd.f32 %v1093, %v1323
        %v1373 = vadd.f32 %v1094, %v1326
        %v1374 = vadd.f32 %v1095, %v1329
        %v1375 = vadd.f32 %v1096, %v1332
        %v1376 = vadd.f32 %v1097, %v1335
        %v1377 = vadd.f32 %v1098, %v1338
        %v1378 = vadd.f32 %v1099, %v1341
        %v1379 = vadd.f32 %v1100, %v1344
        %v1380 = vadd.f32 %v1101, %v1347
        %v1381 = vld [vmem:[%s1102 + $0x1] sm:$0xff]
        %v1382 = vld [vmem:[%s1102 + $0x9] sm:$0xff]
        %v1383 = vld [vmem:[%s1102 + $0x19] sm:$0xff]
        %v1384 = vld [vmem:[%s1102 + $0x21] sm:$0xff]
        %v1385 = vld [vmem:[%s1102 + $0x31] sm:$0xff]
        %v1386 = vld [vmem:[%s1102 + $0x39] sm:$0xff]
        %v1387 = vld [vmem:[%s1102 + $0x49] sm:$0xff]
        %v1388 = vld [vmem:[%s1102 + $0x51] sm:$0xff]
        %v1389 = vld [vmem:[%s1102 + $0x61] sm:$0xff]
        %v1390 = vld [vmem:[%s1102 + $0x69] sm:$0xff]
        %v1391 = vld [vmem:[%s1102 + $0x79] sm:$0xff]
        %v1392 = vld [vmem:[%s1102 + $0x81] sm:$0xff]
        %v1393 = vld [vmem:[%s1102 + $0x91] sm:$0xff]
        %v1394 = vld [vmem:[%s1102 + $0x99] sm:$0xff]
        %v1395 = vld [vmem:[%s1102 + $0xa9] sm:$0xff]
        %v1396 = vld [vmem:[%s1102 + $0xb1] sm:$0xff]
        %v1397 = vld [vmem:[%s1102 + $0xc1] sm:$0xff]
        %v1398 = vld [vmem:[%s1102 + $0xc9] sm:$0xff]
        %v1399 = vld [vmem:[%s1102 + $0xd9] sm:$0xff]
        %v1400 = vld [vmem:[%s1102 + $0xe1] sm:$0xff]
        %v1401 = vld [vmem:[%s1102 + $0xf1] sm:$0xff]
        %v1402 = vld [vmem:[%s1102 + $0xf9] sm:$0xff]
        %v1403 = vld [vmem:[%s1102 + $0x109] sm:$0xff]
        %v1404 = vld [vmem:[%s1102 + $0x111] sm:$0xff]
        %v1405 = vld [vmem:[%s1102 + $0x121] sm:$0xff]
        %v1406 = vld [vmem:[%s1102 + $0x129] sm:$0xff]
        %v1407 = vld [vmem:[%s1102 + $0x139] sm:$0xff]
        %v1408 = vld [vmem:[%s1102 + $0x141] sm:$0xff]
        %v1409 = vld [vmem:[%s1102 + $0x151] sm:$0xff]
        %v1410 = vld [vmem:[%s1102 + $0x159] sm:$0xff]
        %v1411 = vld [vmem:[%s1102 + $0x169] sm:$0xff]
        %v1412 = vld [vmem:[%s1102 + $0x171] sm:$0xff]
        %s1413 = scalar_lea.vmem %s2, 32
        %v1414 = vld [vmem:[%s1413] sm:$0x3f]
        %v1416 = vsel %vm398, %v1381, 0
        %v1419 = vsel %vm398, %v1382, 0
        %v1422 = vsel %vm398, %v1383, 0
        %v1425 = vsel %vm398, %v1384, 0
        %v1428 = vsel %vm398, %v1385, 0
        %v1431 = vsel %vm398, %v1386, 0
        %v1434 = vsel %vm398, %v1387, 0
        %v1437 = vsel %vm398, %v1388, 0
        %v1440 = vsel %vm398, %v1389, 0
        %v1443 = vsel %vm398, %v1390, 0
        %v1446 = vsel %vm398, %v1391, 0
        %v1449 = vsel %vm398, %v1392, 0
        %v1452 = vsel %vm398, %v1393, 0
        %v1455 = vsel %vm398, %v1394, 0
        %v1458 = vsel %vm398, %v1395, 0
        %v1461 = vsel %vm398, %v1396, 0
        %v1464 = vsel %vm398, %v1397, 0
        %v1467 = vsel %vm398, %v1398, 0
        %v1470 = vsel %vm398, %v1399, 0
        %v1473 = vsel %vm398, %v1400, 0
        %v1476 = vsel %vm398, %v1401, 0
        %v1479 = vsel %vm398, %v1402, 0
        %v1482 = vsel %vm398, %v1403, 0
        %v1485 = vsel %vm398, %v1404, 0
        %v1488 = vsel %vm398, %v1405, 0
        %v1491 = vsel %vm398, %v1406, 0
        %v1494 = vsel %vm398, %v1407, 0
        %v1497 = vsel %vm398, %v1408, 0
        %v1500 = vsel %vm398, %v1409, 0
        %v1503 = vsel %vm398, %v1410, 0
        %v1506 = vsel %vm398, %v1411, 0
        %v1509 = vsel %vm398, %v1412, 0
        %v1512 = vsel %vm495, %v1414, 0
        %1514 = vmatpush.msra.mxu0 0.0
        %1515 = vmatpush.msra.mxu0 0.0
        %1516 = vmatpush.msra.mxu0 0.0
        %1517 = vmatpush.msra.mxu0 0.0
        %1518 = vmatpush.msra.mxu0 0.0
        %1519 = vmatpush.msra.mxu0 0.0
        %1520 = vmatpush.msra.mxu0 0.0
        %1521 = vmatpush.msra.mxu0 0.0
        %1522 = vmatpush.msra.mxu0 0.0
        %1523 = vmatpush.msra.mxu0 0.0
        %1524 = vmatpush.msra.mxu0 0.0
        %1525 = vmatpush.msra.mxu0 0.0
        %1526 = vmatpush.msra.mxu0 0.0
        %1527 = vmatpush.msra.mxu0 0.0
        %1528 = vmatpush.msra.mxu0 0.0
        %1529 = vmatpush.msra.mxu0 %v1512
        %1530 = vmatmul.f32.gmra.mxu0 %v1416
        %v1531 = vpop.f32.mrf.mxu0
        %v1532 = vadd.f32 0.0, %v1531
        %1533 = vmatmul.f32.gmra.mxu0 %v1419
        %v1534 = vpop.f32.mrf.mxu0
        %v1535 = vadd.f32 0.0, %v1534
        %1536 = vmatmul.f32.gmra.mxu0 %v1422
        %v1537 = vpop.f32.mrf.mxu0
        %v1538 = vadd.f32 0.0, %v1537
        %1539 = vmatmul.f32.gmra.mxu0 %v1425
        %v1540 = vpop.f32.mrf.mxu0
        %v1541 = vadd.f32 0.0, %v1540
        %1542 = vmatmul.f32.gmra.mxu0 %v1428
        %v1543 = vpop.f32.mrf.mxu0
        %v1544 = vadd.f32 0.0, %v1543
        %1545 = vmatmul.f32.gmra.mxu0 %v1431
        %v1546 = vpop.f32.mrf.mxu0
        %v1547 = vadd.f32 0.0, %v1546
        %1548 = vmatmul.f32.gmra.mxu0 %v1434
        %v1549 = vpop.f32.mrf.mxu0
        %v1550 = vadd.f32 0.0, %v1549
        %1551 = vmatmul.f32.gmra.mxu0 %v1437
        %v1552 = vpop.f32.mrf.mxu0
        %v1553 = vadd.f32 0.0, %v1552
        %1554 = vmatmul.f32.gmra.mxu0 %v1440
        %v1555 = vpop.f32.mrf.mxu0
        %v1556 = vadd.f32 0.0, %v1555
        %1557 = vmatmul.f32.gmra.mxu0 %v1443
        %v1558 = vpop.f32.mrf.mxu0
        %v1559 = vadd.f32 0.0, %v1558
        %1560 = vmatmul.f32.gmra.mxu0 %v1446
        %v1561 = vpop.f32.mrf.mxu0
        %v1562 = vadd.f32 0.0, %v1561
        %1563 = vmatmul.f32.gmra.mxu0 %v1449
        %v1564 = vpop.f32.mrf.mxu0
        %v1565 = vadd.f32 0.0, %v1564
        %1566 = vmatmul.f32.gmra.mxu0 %v1452
        %v1567 = vpop.f32.mrf.mxu0
        %v1568 = vadd.f32 0.0, %v1567
        %1569 = vmatmul.f32.gmra.mxu0 %v1455
        %v1570 = vpop.f32.mrf.mxu0
        %v1571 = vadd.f32 0.0, %v1570
        %1572 = vmatmul.f32.gmra.mxu0 %v1458
        %v1573 = vpop.f32.mrf.mxu0
        %v1574 = vadd.f32 0.0, %v1573
        %1575 = vmatmul.f32.gmra.mxu0 %v1461
        %v1576 = vpop.f32.mrf.mxu0
        %v1577 = vadd.f32 0.0, %v1576
        %1578 = vmatmul.f32.gmra.mxu0 %v1464
        %v1579 = vpop.f32.mrf.mxu0
        %v1580 = vadd.f32 0.0, %v1579
        %1581 = vmatmul.f32.gmra.mxu0 %v1467
        %v1582 = vpop.f32.mrf.mxu0
        %v1583 = vadd.f32 0.0, %v1582
        %1584 = vmatmul.f32.gmra.mxu0 %v1470
        %v1585 = vpop.f32.mrf.mxu0
        %v1586 = vadd.f32 0.0, %v1585
        %1587 = vmatmul.f32.gmra.mxu0 %v1473
        %v1588 = vpop.f32.mrf.mxu0
        %v1589 = vadd.f32 0.0, %v1588
        %1590 = vmatmul.f32.gmra.mxu0 %v1476
        %v1591 = vpop.f32.mrf.mxu0
        %v1592 = vadd.f32 0.0, %v1591
        %1593 = vmatmul.f32.gmra.mxu0 %v1479
        %v1594 = vpop.f32.mrf.mxu0
        %v1595 = vadd.f32 0.0, %v1594
        %1596 = vmatmul.f32.gmra.mxu0 %v1482
        %v1597 = vpop.f32.mrf.mxu0
        %v1598 = vadd.f32 0.0, %v1597
        %1599 = vmatmul.f32.gmra.mxu0 %v1485
        %v1600 = vpop.f32.mrf.mxu0
        %v1601 = vadd.f32 0.0, %v1600
        %1602 = vmatmul.f32.gmra.mxu0 %v1488
        %v1603 = vpop.f32.mrf.mxu0
        %v1604 = vadd.f32 0.0, %v1603
        %1605 = vmatmul.f32.gmra.mxu0 %v1491
        %v1606 = vpop.f32.mrf.mxu0
        %v1607 = vadd.f32 0.0, %v1606
        %1608 = vmatmul.f32.gmra.mxu0 %v1494
        %v1609 = vpop.f32.mrf.mxu0
        %v1610 = vadd.f32 0.0, %v1609
        %1611 = vmatmul.f32.gmra.mxu0 %v1497
        %v1612 = vpop.f32.mrf.mxu0
        %v1613 = vadd.f32 0.0, %v1612
        %1614 = vmatmul.f32.gmra.mxu0 %v1500
        %v1615 = vpop.f32.mrf.mxu0
        %v1616 = vadd.f32 0.0, %v1615
        %1617 = vmatmul.f32.gmra.mxu0 %v1503
        %v1618 = vpop.f32.mrf.mxu0
        %v1619 = vadd.f32 0.0, %v1618
        %1620 = vmatmul.f32.gmra.mxu0 %v1506
        %v1621 = vpop.f32.mrf.mxu0
        %v1622 = vadd.f32 0.0, %v1621
        %1623 = vmatmul.f32.gmra.mxu0 %v1509
        %v1624 = vpop.f32.mrf.mxu0
        %v1625 = vadd.f32 0.0, %v1624
        %1626 = vdwg.mxu0
        %v1627 = vadd.f32 %v1349, %v1532
        %v1628 = vadd.f32 %v1350, %v1535
        %v1629 = vadd.f32 %v1351, %v1538
        %v1630 = vadd.f32 %v1352, %v1541
        %v1631 = vadd.f32 %v1353, %v1544
        %v1632 = vadd.f32 %v1354, %v1547
        %v1633 = vadd.f32 %v1355, %v1550
        %v1634 = vadd.f32 %v1356, %v1553
        %v1635 = vadd.f32 %v1357, %v1556
        %v1636 = vadd.f32 %v1358, %v1559
        %v1637 = vadd.f32 %v1359, %v1562
        %v1638 = vadd.f32 %v1360, %v1565
        %v1639 = vadd.f32 %v1361, %v1568
        %v1640 = vadd.f32 %v1362, %v1571
        %v1641 = vadd.f32 %v1363, %v1574
        %v1642 = vadd.f32 %v1364, %v1577
        %v1643 = vadd.f32 %v1365, %v1580
        %v1644 = vadd.f32 %v1366, %v1583
        %v1645 = vadd.f32 %v1367, %v1586
        %v1646 = vadd.f32 %v1368, %v1589
        %v1647 = vadd.f32 %v1369, %v1592
        %v1648 = vadd.f32 %v1370, %v1595
        %v1649 = vadd.f32 %v1371, %v1598
        %v1650 = vadd.f32 %v1372, %v1601
        %v1651 = vadd.f32 %v1373, %v1604
        %v1652 = vadd.f32 %v1374, %v1607
        %v1653 = vadd.f32 %v1375, %v1610
        %v1654 = vadd.f32 %v1376, %v1613
        %v1655 = vadd.f32 %v1377, %v1616
        %v1656 = vadd.f32 %v1378, %v1619
        %v1657 = vadd.f32 %v1379, %v1622
        %v1658 = vadd.f32 %v1380, %v1625
        %v1659 = vld [vmem:[%s1102 + $0x2] sm:$0xff]
        %v1660 = vld [vmem:[%s1102 + $0xa] sm:$0xff]
        %v1661 = vld [vmem:[%s1102 + $0x1a] sm:$0xff]
        %v1662 = vld [vmem:[%s1102 + $0x22] sm:$0xff]
        %v1663 = vld [vmem:[%s1102 + $0x32] sm:$0xff]
        %v1664 = vld [vmem:[%s1102 + $0x3a] sm:$0xff]
        %v1665 = vld [vmem:[%s1102 + $0x4a] sm:$0xff]
        %v1666 = vld [vmem:[%s1102 + $0x52] sm:$0xff]
        %v1667 = vld [vmem:[%s1102 + $0x62] sm:$0xff]
        %v1668 = vld [vmem:[%s1102 + $0x6a] sm:$0xff]
        %v1669 = vld [vmem:[%s1102 + $0x7a] sm:$0xff]
        %v1670 = vld [vmem:[%s1102 + $0x82] sm:$0xff]
        %v1671 = vld [vmem:[%s1102 + $0x92] sm:$0xff]
        %v1672 = vld [vmem:[%s1102 + $0x9a] sm:$0xff]
        %v1673 = vld [vmem:[%s1102 + $0xaa] sm:$0xff]
        %v1674 = vld [vmem:[%s1102 + $0xb2] sm:$0xff]
        %v1675 = vld [vmem:[%s1102 + $0xc2] sm:$0xff]
        %v1676 = vld [vmem:[%s1102 + $0xca] sm:$0xff]
        %v1677 = vld [vmem:[%s1102 + $0xda] sm:$0xff]
        %v1678 = vld [vmem:[%s1102 + $0xe2] sm:$0xff]
        %v1679 = vld [vmem:[%s1102 + $0xf2] sm:$0xff]
        %v1680 = vld [vmem:[%s1102 + $0xfa] sm:$0xff]
        %v1681 = vld [vmem:[%s1102 + $0x10a] sm:$0xff]
        %v1682 = vld [vmem:[%s1102 + $0x112] sm:$0xff]
        %v1683 = vld [vmem:[%s1102 + $0x122] sm:$0xff]
        %v1684 = vld [vmem:[%s1102 + $0x12a] sm:$0xff]
        %v1685 = vld [vmem:[%s1102 + $0x13a] sm:$0xff]
        %v1686 = vld [vmem:[%s1102 + $0x142] sm:$0xff]
        %v1687 = vld [vmem:[%s1102 + $0x152] sm:$0xff]
        %v1688 = vld [vmem:[%s1102 + $0x15a] sm:$0xff]
        %v1689 = vld [vmem:[%s1102 + $0x16a] sm:$0xff]
        %v1690 = vld [vmem:[%s1102 + $0x172] sm:$0xff]
        %s1691 = scalar_lea.vmem %s2, 40
        %v1692 = vld [vmem:[%s1691] sm:$0x3f]
        %v1694 = vsel %vm398, %v1659, 0
        %v1697 = vsel %vm398, %v1660, 0
        %v1700 = vsel %vm398, %v1661, 0
        %v1703 = vsel %vm398, %v1662, 0
        %v1706 = vsel %vm398, %v1663, 0
        %v1709 = vsel %vm398, %v1664, 0
        %v1712 = vsel %vm398, %v1665, 0
        %v1715 = vsel %vm398, %v1666, 0
        %v1718 = vsel %vm398, %v1667, 0
        %v1721 = vsel %vm398, %v1668, 0
        %v1724 = vsel %vm398, %v1669, 0
        %v1727 = vsel %vm398, %v1670, 0
        %v1730 = vsel %vm398, %v1671, 0
        %v1733 = vsel %vm398, %v1672, 0
        %v1736 = vsel %vm398, %v1673, 0
        %v1739 = vsel %vm398, %v1674, 0
        %v1742 = vsel %vm398, %v1675, 0
        %v1745 = vsel %vm398, %v1676, 0
        %v1748 = vsel %vm398, %v1677, 0
        %v1751 = vsel %vm398, %v1678, 0
        %v1754 = vsel %vm398, %v1679, 0
        %v1757 = vsel %vm398, %v1680, 0
        %v1760 = vsel %vm398, %v1681, 0
        %v1763 = vsel %vm398, %v1682, 0
        %v1766 = vsel %vm398, %v1683, 0
        %v1769 = vsel %vm398, %v1684, 0
        %v1772 = vsel %vm398, %v1685, 0
        %v1775 = vsel %vm398, %v1686, 0
        %v1778 = vsel %vm398, %v1687, 0
        %v1781 = vsel %vm398, %v1688, 0
        %v1784 = vsel %vm398, %v1689, 0
        %v1787 = vsel %vm398, %v1690, 0
        %v1790 = vsel %vm495, %v1692, 0
        %1792 = vmatpush.msra.mxu0 0.0
        %1793 = vmatpush.msra.mxu0 0.0
        %1794 = vmatpush.msra.mxu0 0.0
        %1795 = vmatpush.msra.mxu0 0.0
        %1796 = vmatpush.msra.mxu0 0.0
        %1797 = vmatpush.msra.mxu0 0.0
        %1798 = vmatpush.msra.mxu0 0.0
        %1799 = vmatpush.msra.mxu0 0.0
        %1800 = vmatpush.msra.mxu0 0.0
        %1801 = vmatpush.msra.mxu0 0.0
        %1802 = vmatpush.msra.mxu0 0.0
        %1803 = vmatpush.msra.mxu0 0.0
        %1804 = vmatpush.msra.mxu0 0.0
        %1805 = vmatpush.msra.mxu0 0.0
        %1806 = vmatpush.msra.mxu0 0.0
        %1807 = vmatpush.msra.mxu0 %v1790
        %1808 = vmatmul.f32.gmra.mxu0 %v1694
        %v1809 = vpop.f32.mrf.mxu0
        %v1810 = vadd.f32 0.0, %v1809
        %1811 = vmatmul.f32.gmra.mxu0 %v1697
        %v1812 = vpop.f32.mrf.mxu0
        %v1813 = vadd.f32 0.0, %v1812
        %1814 = vmatmul.f32.gmra.mxu0 %v1700
        %v1815 = vpop.f32.mrf.mxu0
        %v1816 = vadd.f32 0.0, %v1815
        %1817 = vmatmul.f32.gmra.mxu0 %v1703
        %v1818 = vpop.f32.mrf.mxu0
        %v1819 = vadd.f32 0.0, %v1818
        %1820 = vmatmul.f32.gmra.mxu0 %v1706
        %v1821 = vpop.f32.mrf.mxu0
        %v1822 = vadd.f32 0.0, %v1821
        %1823 = vmatmul.f32.gmra.mxu0 %v1709
        %v1824 = vpop.f32.mrf.mxu0
        %v1825 = vadd.f32 0.0, %v1824
        %1826 = vmatmul.f32.gmra.mxu0 %v1712
        %v1827 = vpop.f32.mrf.mxu0
        %v1828 = vadd.f32 0.0, %v1827
        %1829 = vmatmul.f32.gmra.mxu0 %v1715
        %v1830 = vpop.f32.mrf.mxu0
        %v1831 = vadd.f32 0.0, %v1830
        %1832 = vmatmul.f32.gmra.mxu0 %v1718
        %v1833 = vpop.f32.mrf.mxu0
        %v1834 = vadd.f32 0.0, %v1833
        %1835 = vmatmul.f32.gmra.mxu0 %v1721
        %v1836 = vpop.f32.mrf.mxu0
        %v1837 = vadd.f32 0.0, %v1836
        %1838 = vmatmul.f32.gmra.mxu0 %v1724
        %v1839 = vpop.f32.mrf.mxu0
        %v1840 = vadd.f32 0.0, %v1839
        %1841 = vmatmul.f32.gmra.mxu0 %v1727
        %v1842 = vpop.f32.mrf.mxu0
        %v1843 = vadd.f32 0.0, %v1842
        %1844 = vmatmul.f32.gmra.mxu0 %v1730
        %v1845 = vpop.f32.mrf.mxu0
        %v1846 = vadd.f32 0.0, %v1845
        %1847 = vmatmul.f32.gmra.mxu0 %v1733
        %v1848 = vpop.f32.mrf.mxu0
        %v1849 = vadd.f32 0.0, %v1848
        %1850 = vmatmul.f32.gmra.mxu0 %v1736
        %v1851 = vpop.f32.mrf.mxu0
        %v1852 = vadd.f32 0.0, %v1851
        %1853 = vmatmul.f32.gmra.mxu0 %v1739
        %v1854 = vpop.f32.mrf.mxu0
        %v1855 = vadd.f32 0.0, %v1854
        %1856 = vmatmul.f32.gmra.mxu0 %v1742
        %v1857 = vpop.f32.mrf.mxu0
        %v1858 = vadd.f32 0.0, %v1857
        %1859 = vmatmul.f32.gmra.mxu0 %v1745
        %v1860 = vpop.f32.mrf.mxu0
        %v1861 = vadd.f32 0.0, %v1860
        %1862 = vmatmul.f32.gmra.mxu0 %v1748
        %v1863 = vpop.f32.mrf.mxu0
        %v1864 = vadd.f32 0.0, %v1863
        %1865 = vmatmul.f32.gmra.mxu0 %v1751
        %v1866 = vpop.f32.mrf.mxu0
        %v1867 = vadd.f32 0.0, %v1866
        %1868 = vmatmul.f32.gmra.mxu0 %v1754
        %v1869 = vpop.f32.mrf.mxu0
        %v1870 = vadd.f32 0.0, %v1869
        %1871 = vmatmul.f32.gmra.mxu0 %v1757
        %v1872 = vpop.f32.mrf.mxu0
        %v1873 = vadd.f32 0.0, %v1872
        %1874 = vmatmul.f32.gmra.mxu0 %v1760
        %v1875 = vpop.f32.mrf.mxu0
        %v1876 = vadd.f32 0.0, %v1875
        %1877 = vmatmul.f32.gmra.mxu0 %v1763
        %v1878 = vpop.f32.mrf.mxu0
        %v1879 = vadd.f32 0.0, %v1878
        %1880 = vmatmul.f32.gmra.mxu0 %v1766
        %v1881 = vpop.f32.mrf.mxu0
        %v1882 = vadd.f32 0.0, %v1881
        %1883 = vmatmul.f32.gmra.mxu0 %v1769
        %v1884 = vpop.f32.mrf.mxu0
        %v1885 = vadd.f32 0.0, %v1884
        %1886 = vmatmul.f32.gmra.mxu0 %v1772
        %v1887 = vpop.f32.mrf.mxu0
        %v1888 = vadd.f32 0.0, %v1887
        %1889 = vmatmul.f32.gmra.mxu0 %v1775
        %v1890 = vpop.f32.mrf.mxu0
        %v1891 = vadd.f32 0.0, %v1890
        %1892 = vmatmul.f32.gmra.mxu0 %v1778
        %v1893 = vpop.f32.mrf.mxu0
        %v1894 = vadd.f32 0.0, %v1893
        %1895 = vmatmul.f32.gmra.mxu0 %v1781
        %v1896 = vpop.f32.mrf.mxu0
        %v1897 = vadd.f32 0.0, %v1896
        %1898 = vmatmul.f32.gmra.mxu0 %v1784
        %v1899 = vpop.f32.mrf.mxu0
        %v1900 = vadd.f32 0.0, %v1899
        %1901 = vmatmul.f32.gmra.mxu0 %v1787
        %v1902 = vpop.f32.mrf.mxu0
        %v1903 = vadd.f32 0.0, %v1902
        %1904 = vdwg.mxu0
        %v1905 = vadd.f32 %v1627, %v1810
        %v1906 = vadd.f32 %v1628, %v1813
        %v1907 = vadd.f32 %v1629, %v1816
        %v1908 = vadd.f32 %v1630, %v1819
        %v1909 = vadd.f32 %v1631, %v1822
        %v1910 = vadd.f32 %v1632, %v1825
        %v1911 = vadd.f32 %v1633, %v1828
        %v1912 = vadd.f32 %v1634, %v1831
        %v1913 = vadd.f32 %v1635, %v1834
        %v1914 = vadd.f32 %v1636, %v1837
        %v1915 = vadd.f32 %v1637, %v1840
        %v1916 = vadd.f32 %v1638, %v1843
        %v1917 = vadd.f32 %v1639, %v1846
        %v1918 = vadd.f32 %v1640, %v1849
        %v1919 = vadd.f32 %v1641, %v1852
        %v1920 = vadd.f32 %v1642, %v1855
        %v1921 = vadd.f32 %v1643, %v1858
        %v1922 = vadd.f32 %v1644, %v1861
        %v1923 = vadd.f32 %v1645, %v1864
        %v1924 = vadd.f32 %v1646, %v1867
        %v1925 = vadd.f32 %v1647, %v1870
        %v1926 = vadd.f32 %v1648, %v1873
        %v1927 = vadd.f32 %v1649, %v1876
        %v1928 = vadd.f32 %v1650, %v1879
        %v1929 = vadd.f32 %v1651, %v1882
        %v1930 = vadd.f32 %v1652, %v1885
        %v1931 = vadd.f32 %v1653, %v1888
        %v1932 = vadd.f32 %v1654, %v1891
        %v1933 = vadd.f32 %v1655, %v1894
        %v1934 = vadd.f32 %v1656, %v1897
        %v1935 = vadd.f32 %v1657, %v1900
        %v1936 = vadd.f32 %v1658, %v1903
        %s1937 = scalar_lea.vmem %s330, 48
        %v1938 = vld [vmem:[%s1937] sm:$0xff]
        %v1939 = vld [vmem:[%s1937 + $0x8] sm:$0xff]
        %v1940 = vld [vmem:[%s1937 + $0x18] sm:$0xff]
        %v1941 = vld [vmem:[%s1937 + $0x20] sm:$0xff]
        %v1942 = vld [vmem:[%s1937 + $0x30] sm:$0xff]
        %v1943 = vld [vmem:[%s1937 + $0x38] sm:$0xff]
        %v1944 = vld [vmem:[%s1937 + $0x48] sm:$0xff]
        %v1945 = vld [vmem:[%s1937 + $0x50] sm:$0xff]
        %v1946 = vld [vmem:[%s1937 + $0x60] sm:$0xff]
        %v1947 = vld [vmem:[%s1937 + $0x68] sm:$0xff]
        %v1948 = vld [vmem:[%s1937 + $0x78] sm:$0xff]
        %v1949 = vld [vmem:[%s1937 + $0x80] sm:$0xff]
        %v1950 = vld [vmem:[%s1937 + $0x90] sm:$0xff]
        %v1951 = vld [vmem:[%s1937 + $0x98] sm:$0xff]
        %v1952 = vld [vmem:[%s1937 + $0xa8] sm:$0xff]
        %v1953 = vld [vmem:[%s1937 + $0xb0] sm:$0xff]
        %v1954 = vld [vmem:[%s1937 + $0xc0] sm:$0xff]
        %v1955 = vld [vmem:[%s1937 + $0xc8] sm:$0xff]
        %v1956 = vld [vmem:[%s1937 + $0xd8] sm:$0xff]
        %v1957 = vld [vmem:[%s1937 + $0xe0] sm:$0xff]
        %v1958 = vld [vmem:[%s1937 + $0xf0] sm:$0xff]
        %v1959 = vld [vmem:[%s1937 + $0xf8] sm:$0xff]
        %v1960 = vld [vmem:[%s1937 + $0x108] sm:$0xff]
        %v1961 = vld [vmem:[%s1937 + $0x110] sm:$0xff]
        %v1962 = vld [vmem:[%s1937 + $0x120] sm:$0xff]
        %v1963 = vld [vmem:[%s1937 + $0x128] sm:$0xff]
        %v1964 = vld [vmem:[%s1937 + $0x138] sm:$0xff]
        %v1965 = vld [vmem:[%s1937 + $0x140] sm:$0xff]
        %v1966 = vld [vmem:[%s1937 + $0x150] sm:$0xff]
        %v1967 = vld [vmem:[%s1937 + $0x158] sm:$0xff]
        %v1968 = vld [vmem:[%s1937 + $0x168] sm:$0xff]
        %v1969 = vld [vmem:[%s1937 + $0x170] sm:$0xff]
        %s1970 = scalar_lea.vmem %s2, 48
        %v1971 = vld [vmem:[%s1970] sm:$0x3f]
        %v1973 = vsel %vm398, %v1938, 0
        %v1976 = vsel %vm398, %v1939, 0
        %v1979 = vsel %vm398, %v1940, 0
        %v1982 = vsel %vm398, %v1941, 0
        %v1985 = vsel %vm398, %v1942, 0
        %v1988 = vsel %vm398, %v1943, 0
        %v1991 = vsel %vm398, %v1944, 0
        %v1994 = vsel %vm398, %v1945, 0
        %v1997 = vsel %vm398, %v1946, 0
        %v2000 = vsel %vm398, %v1947, 0
        %v2003 = vsel %vm398, %v1948, 0
        %v2006 = vsel %vm398, %v1949, 0
        %v2009 = vsel %vm398, %v1950, 0
        %v2012 = vsel %vm398, %v1951, 0
        %v2015 = vsel %vm398, %v1952, 0
        %v2018 = vsel %vm398, %v1953, 0
        %v2021 = vsel %vm398, %v1954, 0
        %v2024 = vsel %vm398, %v1955, 0
        %v2027 = vsel %vm398, %v1956, 0
        %v2030 = vsel %vm398, %v1957, 0
        %v2033 = vsel %vm398, %v1958, 0
        %v2036 = vsel %vm398, %v1959, 0
        %v2039 = vsel %vm398, %v1960, 0
        %v2042 = vsel %vm398, %v1961, 0
        %v2045 = vsel %vm398, %v1962, 0
        %v2048 = vsel %vm398, %v1963, 0
        %v2051 = vsel %vm398, %v1964, 0
        %v2054 = vsel %vm398, %v1965, 0
        %v2057 = vsel %vm398, %v1966, 0
        %v2060 = vsel %vm398, %v1967, 0
        %v2063 = vsel %vm398, %v1968, 0
        %v2066 = vsel %vm398, %v1969, 0
        %v2069 = vsel %vm495, %v1971, 0
        %2071 = vmatpush.msra.mxu0 0.0
        %2072 = vmatpush.msra.mxu0 0.0
        %2073 = vmatpush.msra.mxu0 0.0
        %2074 = vmatpush.msra.mxu0 0.0
        %2075 = vmatpush.msra.mxu0 0.0
        %2076 = vmatpush.msra.mxu0 0.0
        %2077 = vmatpush.msra.mxu0 0.0
        %2078 = vmatpush.msra.mxu0 0.0
        %2079 = vmatpush.msra.mxu0 0.0
        %2080 = vmatpush.msra.mxu0 0.0
        %2081 = vmatpush.msra.mxu0 0.0
        %2082 = vmatpush.msra.mxu0 0.0
        %2083 = vmatpush.msra.mxu0 0.0
        %2084 = vmatpush.msra.mxu0 0.0
        %2085 = vmatpush.msra.mxu0 0.0
        %2086 = vmatpush.msra.mxu0 %v2069
        %2087 = vmatmul.f32.gmra.mxu0 %v1973
        %v2088 = vpop.f32.mrf.mxu0
        %v2089 = vadd.f32 0.0, %v2088
        %2090 = vmatmul.f32.gmra.mxu0 %v1976
        %v2091 = vpop.f32.mrf.mxu0
        %v2092 = vadd.f32 0.0, %v2091
        %2093 = vmatmul.f32.gmra.mxu0 %v1979
        %v2094 = vpop.f32.mrf.mxu0
        %v2095 = vadd.f32 0.0, %v2094
        %2096 = vmatmul.f32.gmra.mxu0 %v1982
        %v2097 = vpop.f32.mrf.mxu0
        %v2098 = vadd.f32 0.0, %v2097
        %2099 = vmatmul.f32.gmra.mxu0 %v1985
        %v2100 = vpop.f32.mrf.mxu0
        %v2101 = vadd.f32 0.0, %v2100
        %2102 = vmatmul.f32.gmra.mxu0 %v1988
        %v2103 = vpop.f32.mrf.mxu0
        %v2104 = vadd.f32 0.0, %v2103
        %2105 = vmatmul.f32.gmra.mxu0 %v1991
        %v2106 = vpop.f32.mrf.mxu0
        %v2107 = vadd.f32 0.0, %v2106
        %2108 = vmatmul.f32.gmra.mxu0 %v1994
        %v2109 = vpop.f32.mrf.mxu0
        %v2110 = vadd.f32 0.0, %v2109
        %2111 = vmatmul.f32.gmra.mxu0 %v1997
        %v2112 = vpop.f32.mrf.mxu0
        %v2113 = vadd.f32 0.0, %v2112
        %2114 = vmatmul.f32.gmra.mxu0 %v2000
        %v2115 = vpop.f32.mrf.mxu0
        %v2116 = vadd.f32 0.0, %v2115
        %2117 = vmatmul.f32.gmra.mxu0 %v2003
        %v2118 = vpop.f32.mrf.mxu0
        %v2119 = vadd.f32 0.0, %v2118
        %2120 = vmatmul.f32.gmra.mxu0 %v2006
        %v2121 = vpop.f32.mrf.mxu0
        %v2122 = vadd.f32 0.0, %v2121
        %2123 = vmatmul.f32.gmra.mxu0 %v2009
        %v2124 = vpop.f32.mrf.mxu0
        %v2125 = vadd.f32 0.0, %v2124
        %2126 = vmatmul.f32.gmra.mxu0 %v2012
        %v2127 = vpop.f32.mrf.mxu0
        %v2128 = vadd.f32 0.0, %v2127
        %2129 = vmatmul.f32.gmra.mxu0 %v2015
        %v2130 = vpop.f32.mrf.mxu0
        %v2131 = vadd.f32 0.0, %v2130
        %2132 = vmatmul.f32.gmra.mxu0 %v2018
        %v2133 = vpop.f32.mrf.mxu0
        %v2134 = vadd.f32 0.0, %v2133
        %2135 = vmatmul.f32.gmra.mxu0 %v2021
        %v2136 = vpop.f32.mrf.mxu0
        %v2137 = vadd.f32 0.0, %v2136
        %2138 = vmatmul.f32.gmra.mxu0 %v2024
        %v2139 = vpop.f32.mrf.mxu0
        %v2140 = vadd.f32 0.0, %v2139
        %2141 = vmatmul.f32.gmra.mxu0 %v2027
        %v2142 = vpop.f32.mrf.mxu0
        %v2143 = vadd.f32 0.0, %v2142
        %2144 = vmatmul.f32.gmra.mxu0 %v2030
        %v2145 = vpop.f32.mrf.mxu0
        %v2146 = vadd.f32 0.0, %v2145
        %2147 = vmatmul.f32.gmra.mxu0 %v2033
        %v2148 = vpop.f32.mrf.mxu0
        %v2149 = vadd.f32 0.0, %v2148
        %2150 = vmatmul.f32.gmra.mxu0 %v2036
        %v2151 = vpop.f32.mrf.mxu0
        %v2152 = vadd.f32 0.0, %v2151
        %2153 = vmatmul.f32.gmra.mxu0 %v2039
        %v2154 = vpop.f32.mrf.mxu0
        %v2155 = vadd.f32 0.0, %v2154
        %2156 = vmatmul.f32.gmra.mxu0 %v2042
        %v2157 = vpop.f32.mrf.mxu0
        %v2158 = vadd.f32 0.0, %v2157
        %2159 = vmatmul.f32.gmra.mxu0 %v2045
        %v2160 = vpop.f32.mrf.mxu0
        %v2161 = vadd.f32 0.0, %v2160
        %2162 = vmatmul.f32.gmra.mxu0 %v2048
        %v2163 = vpop.f32.mrf.mxu0
        %v2164 = vadd.f32 0.0, %v2163
        %2165 = vmatmul.f32.gmra.mxu0 %v2051
        %v2166 = vpop.f32.mrf.mxu0
        %v2167 = vadd.f32 0.0, %v2166
        %2168 = vmatmul.f32.gmra.mxu0 %v2054
        %v2169 = vpop.f32.mrf.mxu0
        %v2170 = vadd.f32 0.0, %v2169
        %2171 = vmatmul.f32.gmra.mxu0 %v2057
        %v2172 = vpop.f32.mrf.mxu0
        %v2173 = vadd.f32 0.0, %v2172
        %2174 = vmatmul.f32.gmra.mxu0 %v2060
        %v2175 = vpop.f32.mrf.mxu0
        %v2176 = vadd.f32 0.0, %v2175
        %2177 = vmatmul.f32.gmra.mxu0 %v2063
        %v2178 = vpop.f32.mrf.mxu0
        %v2179 = vadd.f32 0.0, %v2178
        %2180 = vmatmul.f32.gmra.mxu0 %v2066
        %v2181 = vpop.f32.mrf.mxu0
        %v2182 = vadd.f32 0.0, %v2181
        %2183 = vdwg.mxu0
        %v2184 = vadd.f32 %v1905, %v2089
        %v2185 = vadd.f32 %v1906, %v2092
        %v2186 = vadd.f32 %v1907, %v2095
        %v2187 = vadd.f32 %v1908, %v2098
        %v2188 = vadd.f32 %v1909, %v2101
        %v2189 = vadd.f32 %v1910, %v2104
        %v2190 = vadd.f32 %v1911, %v2107
        %v2191 = vadd.f32 %v1912, %v2110
        %v2192 = vadd.f32 %v1913, %v2113
        %v2193 = vadd.f32 %v1914, %v2116
        %v2194 = vadd.f32 %v1915, %v2119
        %v2195 = vadd.f32 %v1916, %v2122
        %v2196 = vadd.f32 %v1917, %v2125
        %v2197 = vadd.f32 %v1918, %v2128
        %v2198 = vadd.f32 %v1919, %v2131
        %v2199 = vadd.f32 %v1920, %v2134
        %v2200 = vadd.f32 %v1921, %v2137
        %v2201 = vadd.f32 %v1922, %v2140
        %v2202 = vadd.f32 %v1923, %v2143
        %v2203 = vadd.f32 %v1924, %v2146
        %v2204 = vadd.f32 %v1925, %v2149
        %v2205 = vadd.f32 %v1926, %v2152
        %v2206 = vadd.f32 %v1927, %v2155
        %v2207 = vadd.f32 %v1928, %v2158
        %v2208 = vadd.f32 %v1929, %v2161
        %v2209 = vadd.f32 %v1930, %v2164
        %v2210 = vadd.f32 %v1931, %v2167
        %v2211 = vadd.f32 %v1932, %v2170
        %v2212 = vadd.f32 %v1933, %v2173
        %v2213 = vadd.f32 %v1934, %v2176
        %v2214 = vadd.f32 %v1935, %v2179
        %v2215 = vadd.f32 %v1936, %v2182
        %v2216 = vld [vmem:[%s1937 + $0x1] sm:$0xff]
        %v2217 = vld [vmem:[%s1937 + $0x9] sm:$0xff]
        %v2218 = vld [vmem:[%s1937 + $0x19] sm:$0xff]
        %v2219 = vld [vmem:[%s1937 + $0x21] sm:$0xff]
        %v2220 = vld [vmem:[%s1937 + $0x31] sm:$0xff]
        %v2221 = vld [vmem:[%s1937 + $0x39] sm:$0xff]
        %v2222 = vld [vmem:[%s1937 + $0x49] sm:$0xff]
        %v2223 = vld [vmem:[%s1937 + $0x51] sm:$0xff]
        %v2224 = vld [vmem:[%s1937 + $0x61] sm:$0xff]
        %v2225 = vld [vmem:[%s1937 + $0x69] sm:$0xff]
        %v2226 = vld [vmem:[%s1937 + $0x79] sm:$0xff]
        %v2227 = vld [vmem:[%s1937 + $0x81] sm:$0xff]
        %v2228 = vld [vmem:[%s1937 + $0x91] sm:$0xff]
        %v2229 = vld [vmem:[%s1937 + $0x99] sm:$0xff]
        %v2230 = vld [vmem:[%s1937 + $0xa9] sm:$0xff]
        %v2231 = vld [vmem:[%s1937 + $0xb1] sm:$0xff]
        %v2232 = vld [vmem:[%s1937 + $0xc1] sm:$0xff]
        %v2233 = vld [vmem:[%s1937 + $0xc9] sm:$0xff]
        %v2234 = vld [vmem:[%s1937 + $0xd9] sm:$0xff]
        %v2235 = vld [vmem:[%s1937 + $0xe1] sm:$0xff]
        %v2236 = vld [vmem:[%s1937 + $0xf1] sm:$0xff]
        %v2237 = vld [vmem:[%s1937 + $0xf9] sm:$0xff]
        %v2238 = vld [vmem:[%s1937 + $0x109] sm:$0xff]
        %v2239 = vld [vmem:[%s1937 + $0x111] sm:$0xff]
        %v2240 = vld [vmem:[%s1937 + $0x121] sm:$0xff]
        %v2241 = vld [vmem:[%s1937 + $0x129] sm:$0xff]
        %v2242 = vld [vmem:[%s1937 + $0x139] sm:$0xff]
        %v2243 = vld [vmem:[%s1937 + $0x141] sm:$0xff]
        %v2244 = vld [vmem:[%s1937 + $0x151] sm:$0xff]
        %v2245 = vld [vmem:[%s1937 + $0x159] sm:$0xff]
        %v2246 = vld [vmem:[%s1937 + $0x169] sm:$0xff]
        %v2247 = vld [vmem:[%s1937 + $0x171] sm:$0xff]
        %s2248 = scalar_lea.vmem %s2, 56
        %v2249 = vld [vmem:[%s2248] sm:$0x3f]
        %v2251 = vsel %vm398, %v2216, 0
        %v2254 = vsel %vm398, %v2217, 0
        %v2257 = vsel %vm398, %v2218, 0
        %v2260 = vsel %vm398, %v2219, 0
        %v2263 = vsel %vm398, %v2220, 0
        %v2266 = vsel %vm398, %v2221, 0
        %v2269 = vsel %vm398, %v2222, 0
        %v2272 = vsel %vm398, %v2223, 0
        %v2275 = vsel %vm398, %v2224, 0
        %v2278 = vsel %vm398, %v2225, 0
        %v2281 = vsel %vm398, %v2226, 0
        %v2284 = vsel %vm398, %v2227, 0
        %v2287 = vsel %vm398, %v2228, 0
        %v2290 = vsel %vm398, %v2229, 0
        %v2293 = vsel %vm398, %v2230, 0
        %v2296 = vsel %vm398, %v2231, 0
        %v2299 = vsel %vm398, %v2232, 0
        %v2302 = vsel %vm398, %v2233, 0
        %v2305 = vsel %vm398, %v2234, 0
        %v2308 = vsel %vm398, %v2235, 0
        %v2311 = vsel %vm398, %v2236, 0
        %v2314 = vsel %vm398, %v2237, 0
        %v2317 = vsel %vm398, %v2238, 0
        %v2320 = vsel %vm398, %v2239, 0
        %v2323 = vsel %vm398, %v2240, 0
        %v2326 = vsel %vm398, %v2241, 0
        %v2329 = vsel %vm398, %v2242, 0
        %v2332 = vsel %vm398, %v2243, 0
        %v2335 = vsel %vm398, %v2244, 0
        %v2338 = vsel %vm398, %v2245, 0
        %v2341 = vsel %vm398, %v2246, 0
        %v2344 = vsel %vm398, %v2247, 0
        %v2347 = vsel %vm495, %v2249, 0
        %2349 = vmatpush.msra.mxu0 0.0
        %2350 = vmatpush.msra.mxu0 0.0
        %2351 = vmatpush.msra.mxu0 0.0
        %2352 = vmatpush.msra.mxu0 0.0
        %2353 = vmatpush.msra.mxu0 0.0
        %2354 = vmatpush.msra.mxu0 0.0
        %2355 = vmatpush.msra.mxu0 0.0
        %2356 = vmatpush.msra.mxu0 0.0
        %2357 = vmatpush.msra.mxu0 0.0
        %2358 = vmatpush.msra.mxu0 0.0
        %2359 = vmatpush.msra.mxu0 0.0
        %2360 = vmatpush.msra.mxu0 0.0
        %2361 = vmatpush.msra.mxu0 0.0
        %2362 = vmatpush.msra.mxu0 0.0
        %2363 = vmatpush.msra.mxu0 0.0
        %2364 = vmatpush.msra.mxu0 %v2347
        %2365 = vmatmul.f32.gmra.mxu0 %v2251
        %v2366 = vpop.f32.mrf.mxu0
        %v2367 = vadd.f32 0.0, %v2366
        %2368 = vmatmul.f32.gmra.mxu0 %v2254
        %v2369 = vpop.f32.mrf.mxu0
        %v2370 = vadd.f32 0.0, %v2369
        %2371 = vmatmul.f32.gmra.mxu0 %v2257
        %v2372 = vpop.f32.mrf.mxu0
        %v2373 = vadd.f32 0.0, %v2372
        %2374 = vmatmul.f32.gmra.mxu0 %v2260
        %v2375 = vpop.f32.mrf.mxu0
        %v2376 = vadd.f32 0.0, %v2375
        %2377 = vmatmul.f32.gmra.mxu0 %v2263
        %v2378 = vpop.f32.mrf.mxu0
        %v2379 = vadd.f32 0.0, %v2378
        %2380 = vmatmul.f32.gmra.mxu0 %v2266
        %v2381 = vpop.f32.mrf.mxu0
        %v2382 = vadd.f32 0.0, %v2381
        %2383 = vmatmul.f32.gmra.mxu0 %v2269
        %v2384 = vpop.f32.mrf.mxu0
        %v2385 = vadd.f32 0.0, %v2384
        %2386 = vmatmul.f32.gmra.mxu0 %v2272
        %v2387 = vpop.f32.mrf.mxu0
        %v2388 = vadd.f32 0.0, %v2387
        %2389 = vmatmul.f32.gmra.mxu0 %v2275
        %v2390 = vpop.f32.mrf.mxu0
        %v2391 = vadd.f32 0.0, %v2390
        %2392 = vmatmul.f32.gmra.mxu0 %v2278
        %v2393 = vpop.f32.mrf.mxu0
        %v2394 = vadd.f32 0.0, %v2393
        %2395 = vmatmul.f32.gmra.mxu0 %v2281
        %v2396 = vpop.f32.mrf.mxu0
        %v2397 = vadd.f32 0.0, %v2396
        %2398 = vmatmul.f32.gmra.mxu0 %v2284
        %v2399 = vpop.f32.mrf.mxu0
        %v2400 = vadd.f32 0.0, %v2399
        %2401 = vmatmul.f32.gmra.mxu0 %v2287
        %v2402 = vpop.f32.mrf.mxu0
        %v2403 = vadd.f32 0.0, %v2402
        %2404 = vmatmul.f32.gmra.mxu0 %v2290
        %v2405 = vpop.f32.mrf.mxu0
        %v2406 = vadd.f32 0.0, %v2405
        %2407 = vmatmul.f32.gmra.mxu0 %v2293
        %v2408 = vpop.f32.mrf.mxu0
        %v2409 = vadd.f32 0.0, %v2408
        %2410 = vmatmul.f32.gmra.mxu0 %v2296
        %v2411 = vpop.f32.mrf.mxu0
        %v2412 = vadd.f32 0.0, %v2411
        %2413 = vmatmul.f32.gmra.mxu0 %v2299
        %v2414 = vpop.f32.mrf.mxu0
        %v2415 = vadd.f32 0.0, %v2414
        %2416 = vmatmul.f32.gmra.mxu0 %v2302
        %v2417 = vpop.f32.mrf.mxu0
        %v2418 = vadd.f32 0.0, %v2417
        %2419 = vmatmul.f32.gmra.mxu0 %v2305
        %v2420 = vpop.f32.mrf.mxu0
        %v2421 = vadd.f32 0.0, %v2420
        %2422 = vmatmul.f32.gmra.mxu0 %v2308
        %v2423 = vpop.f32.mrf.mxu0
        %v2424 = vadd.f32 0.0, %v2423
        %2425 = vmatmul.f32.gmra.mxu0 %v2311
        %v2426 = vpop.f32.mrf.mxu0
        %v2427 = vadd.f32 0.0, %v2426
        %2428 = vmatmul.f32.gmra.mxu0 %v2314
        %v2429 = vpop.f32.mrf.mxu0
        %v2430 = vadd.f32 0.0, %v2429
        %2431 = vmatmul.f32.gmra.mxu0 %v2317
        %v2432 = vpop.f32.mrf.mxu0
        %v2433 = vadd.f32 0.0, %v2432
        %2434 = vmatmul.f32.gmra.mxu0 %v2320
        %v2435 = vpop.f32.mrf.mxu0
        %v2436 = vadd.f32 0.0, %v2435
        %2437 = vmatmul.f32.gmra.mxu0 %v2323
        %v2438 = vpop.f32.mrf.mxu0
        %v2439 = vadd.f32 0.0, %v2438
        %2440 = vmatmul.f32.gmra.mxu0 %v2326
        %v2441 = vpop.f32.mrf.mxu0
        %v2442 = vadd.f32 0.0, %v2441
        %2443 = vmatmul.f32.gmra.mxu0 %v2329
        %v2444 = vpop.f32.mrf.mxu0
        %v2445 = vadd.f32 0.0, %v2444
        %2446 = vmatmul.f32.gmra.mxu0 %v2332
        %v2447 = vpop.f32.mrf.mxu0
        %v2448 = vadd.f32 0.0, %v2447
        %2449 = vmatmul.f32.gmra.mxu0 %v2335
        %v2450 = vpop.f32.mrf.mxu0
        %v2451 = vadd.f32 0.0, %v2450
        %2452 = vmatmul.f32.gmra.mxu0 %v2338
        %v2453 = vpop.f32.mrf.mxu0
        %v2454 = vadd.f32 0.0, %v2453
        %2455 = vmatmul.f32.gmra.mxu0 %v2341
        %v2456 = vpop.f32.mrf.mxu0
        %v2457 = vadd.f32 0.0, %v2456
        %2458 = vmatmul.f32.gmra.mxu0 %v2344
        %v2459 = vpop.f32.mrf.mxu0
        %v2460 = vadd.f32 0.0, %v2459
        %2461 = vdwg.mxu0
        %v2462 = vadd.f32 %v2184, %v2367
        %v2463 = vadd.f32 %v2185, %v2370
        %v2464 = vadd.f32 %v2186, %v2373
        %v2465 = vadd.f32 %v2187, %v2376
        %v2466 = vadd.f32 %v2188, %v2379
        %v2467 = vadd.f32 %v2189, %v2382
        %v2468 = vadd.f32 %v2190, %v2385
        %v2469 = vadd.f32 %v2191, %v2388
        %v2470 = vadd.f32 %v2192, %v2391
        %v2471 = vadd.f32 %v2193, %v2394
        %v2472 = vadd.f32 %v2194, %v2397
        %v2473 = vadd.f32 %v2195, %v2400
        %v2474 = vadd.f32 %v2196, %v2403
        %v2475 = vadd.f32 %v2197, %v2406
        %v2476 = vadd.f32 %v2198, %v2409
        %v2477 = vadd.f32 %v2199, %v2412
        %v2478 = vadd.f32 %v2200, %v2415
        %v2479 = vadd.f32 %v2201, %v2418
        %v2480 = vadd.f32 %v2202, %v2421
        %v2481 = vadd.f32 %v2203, %v2424
        %v2482 = vadd.f32 %v2204, %v2427
        %v2483 = vadd.f32 %v2205, %v2430
        %v2484 = vadd.f32 %v2206, %v2433
        %v2485 = vadd.f32 %v2207, %v2436
        %v2486 = vadd.f32 %v2208, %v2439
        %v2487 = vadd.f32 %v2209, %v2442
        %v2488 = vadd.f32 %v2210, %v2445
        %v2489 = vadd.f32 %v2211, %v2448
        %v2490 = vadd.f32 %v2212, %v2451
        %v2491 = vadd.f32 %v2213, %v2454
        %v2492 = vadd.f32 %v2214, %v2457
        %v2493 = vadd.f32 %v2215, %v2460
        %v2494 = vld [vmem:[%s1937 + $0x2] sm:$0xff]
        %v2495 = vld [vmem:[%s1937 + $0xa] sm:$0xff]
        %v2496 = vld [vmem:[%s1937 + $0x1a] sm:$0xff]
        %v2497 = vld [vmem:[%s1937 + $0x22] sm:$0xff]
        %v2498 = vld [vmem:[%s1937 + $0x32] sm:$0xff]
        %v2499 = vld [vmem:[%s1937 + $0x3a] sm:$0xff]
        %v2500 = vld [vmem:[%s1937 + $0x4a] sm:$0xff]
        %v2501 = vld [vmem:[%s1937 + $0x52] sm:$0xff]
        %v2502 = vld [vmem:[%s1937 + $0x62] sm:$0xff]
        %v2503 = vld [vmem:[%s1937 + $0x6a] sm:$0xff]
        %v2504 = vld [vmem:[%s1937 + $0x7a] sm:$0xff]
        %v2505 = vld [vmem:[%s1937 + $0x82] sm:$0xff]
        %v2506 = vld [vmem:[%s1937 + $0x92] sm:$0xff]
        %v2507 = vld [vmem:[%s1937 + $0x9a] sm:$0xff]
        %v2508 = vld [vmem:[%s1937 + $0xaa] sm:$0xff]
        %v2509 = vld [vmem:[%s1937 + $0xb2] sm:$0xff]
        %v2510 = vld [vmem:[%s1937 + $0xc2] sm:$0xff]
        %v2511 = vld [vmem:[%s1937 + $0xca] sm:$0xff]
        %v2512 = vld [vmem:[%s1937 + $0xda] sm:$0xff]
        %v2513 = vld [vmem:[%s1937 + $0xe2] sm:$0xff]
        %v2514 = vld [vmem:[%s1937 + $0xf2] sm:$0xff]
        %v2515 = vld [vmem:[%s1937 + $0xfa] sm:$0xff]
        %v2516 = vld [vmem:[%s1937 + $0x10a] sm:$0xff]
        %v2517 = vld [vmem:[%s1937 + $0x112] sm:$0xff]
        %v2518 = vld [vmem:[%s1937 + $0x122] sm:$0xff]
        %v2519 = vld [vmem:[%s1937 + $0x12a] sm:$0xff]
        %v2520 = vld [vmem:[%s1937 + $0x13a] sm:$0xff]
        %v2521 = vld [vmem:[%s1937 + $0x142] sm:$0xff]
        %v2522 = vld [vmem:[%s1937 + $0x152] sm:$0xff]
        %v2523 = vld [vmem:[%s1937 + $0x15a] sm:$0xff]
        %v2524 = vld [vmem:[%s1937 + $0x16a] sm:$0xff]
        %v2525 = vld [vmem:[%s1937 + $0x172] sm:$0xff]
        %s2526 = scalar_lea.vmem %s2, 64
        %v2527 = vld [vmem:[%s2526] sm:$0x3f]
        %v2529 = vsel %vm398, %v2494, 0
        %v2532 = vsel %vm398, %v2495, 0
        %v2535 = vsel %vm398, %v2496, 0
        %v2538 = vsel %vm398, %v2497, 0
        %v2541 = vsel %vm398, %v2498, 0
        %v2544 = vsel %vm398, %v2499, 0
        %v2547 = vsel %vm398, %v2500, 0
        %v2550 = vsel %vm398, %v2501, 0
        %v2553 = vsel %vm398, %v2502, 0
        %v2556 = vsel %vm398, %v2503, 0
        %v2559 = vsel %vm398, %v2504, 0
        %v2562 = vsel %vm398, %v2505, 0
        %v2565 = vsel %vm398, %v2506, 0
        %v2568 = vsel %vm398, %v2507, 0
        %v2571 = vsel %vm398, %v2508, 0
        %v2574 = vsel %vm398, %v2509, 0
        %v2577 = vsel %vm398, %v2510, 0
        %v2580 = vsel %vm398, %v2511, 0
        %v2583 = vsel %vm398, %v2512, 0
        %v2586 = vsel %vm398, %v2513, 0
        %v2589 = vsel %vm398, %v2514, 0
        %v2592 = vsel %vm398, %v2515, 0
        %v2595 = vsel %vm398, %v2516, 0
        %v2598 = vsel %vm398, %v2517, 0
        %v2601 = vsel %vm398, %v2518, 0
        %v2604 = vsel %vm398, %v2519, 0
        %v2607 = vsel %vm398, %v2520, 0
        %v2610 = vsel %vm398, %v2521, 0
        %v2613 = vsel %vm398, %v2522, 0
        %v2616 = vsel %vm398, %v2523, 0
        %v2619 = vsel %vm398, %v2524, 0
        %v2622 = vsel %vm398, %v2525, 0
        %v2625 = vsel %vm495, %v2527, 0
        %2627 = vmatpush.msra.mxu0 0.0
        %2628 = vmatpush.msra.mxu0 0.0
        %2629 = vmatpush.msra.mxu0 0.0
        %2630 = vmatpush.msra.mxu0 0.0
        %2631 = vmatpush.msra.mxu0 0.0
        %2632 = vmatpush.msra.mxu0 0.0
        %2633 = vmatpush.msra.mxu0 0.0
        %2634 = vmatpush.msra.mxu0 0.0
        %2635 = vmatpush.msra.mxu0 0.0
        %2636 = vmatpush.msra.mxu0 0.0
        %2637 = vmatpush.msra.mxu0 0.0
        %2638 = vmatpush.msra.mxu0 0.0
        %2639 = vmatpush.msra.mxu0 0.0
        %2640 = vmatpush.msra.mxu0 0.0
        %2641 = vmatpush.msra.mxu0 0.0
        %2642 = vmatpush.msra.mxu0 %v2625
        %2643 = vmatmul.f32.gmra.mxu0 %v2529
        %v2644 = vpop.f32.mrf.mxu0
        %v2645 = vadd.f32 0.0, %v2644
        %2646 = vmatmul.f32.gmra.mxu0 %v2532
        %v2647 = vpop.f32.mrf.mxu0
        %v2648 = vadd.f32 0.0, %v2647
        %2649 = vmatmul.f32.gmra.mxu0 %v2535
        %v2650 = vpop.f32.mrf.mxu0
        %v2651 = vadd.f32 0.0, %v2650
        %2652 = vmatmul.f32.gmra.mxu0 %v2538
        %v2653 = vpop.f32.mrf.mxu0
        %v2654 = vadd.f32 0.0, %v2653
        %2655 = vmatmul.f32.gmra.mxu0 %v2541
        %v2656 = vpop.f32.mrf.mxu0
        %v2657 = vadd.f32 0.0, %v2656
        %2658 = vmatmul.f32.gmra.mxu0 %v2544
        %v2659 = vpop.f32.mrf.mxu0
        %v2660 = vadd.f32 0.0, %v2659
        %2661 = vmatmul.f32.gmra.mxu0 %v2547
        %v2662 = vpop.f32.mrf.mxu0
        %v2663 = vadd.f32 0.0, %v2662
        %2664 = vmatmul.f32.gmra.mxu0 %v2550
        %v2665 = vpop.f32.mrf.mxu0
        %v2666 = vadd.f32 0.0, %v2665
        %2667 = vmatmul.f32.gmra.mxu0 %v2553
        %v2668 = vpop.f32.mrf.mxu0
        %v2669 = vadd.f32 0.0, %v2668
        %2670 = vmatmul.f32.gmra.mxu0 %v2556
        %v2671 = vpop.f32.mrf.mxu0
        %v2672 = vadd.f32 0.0, %v2671
        %2673 = vmatmul.f32.gmra.mxu0 %v2559
        %v2674 = vpop.f32.mrf.mxu0
        %v2675 = vadd.f32 0.0, %v2674
        %2676 = vmatmul.f32.gmra.mxu0 %v2562
        %v2677 = vpop.f32.mrf.mxu0
        %v2678 = vadd.f32 0.0, %v2677
        %2679 = vmatmul.f32.gmra.mxu0 %v2565
        %v2680 = vpop.f32.mrf.mxu0
        %v2681 = vadd.f32 0.0, %v2680
        %2682 = vmatmul.f32.gmra.mxu0 %v2568
        %v2683 = vpop.f32.mrf.mxu0
        %v2684 = vadd.f32 0.0, %v2683
        %2685 = vmatmul.f32.gmra.mxu0 %v2571
        %v2686 = vpop.f32.mrf.mxu0
        %v2687 = vadd.f32 0.0, %v2686
        %2688 = vmatmul.f32.gmra.mxu0 %v2574
        %v2689 = vpop.f32.mrf.mxu0
        %v2690 = vadd.f32 0.0, %v2689
        %2691 = vmatmul.f32.gmra.mxu0 %v2577
        %v2692 = vpop.f32.mrf.mxu0
        %v2693 = vadd.f32 0.0, %v2692
        %2694 = vmatmul.f32.gmra.mxu0 %v2580
        %v2695 = vpop.f32.mrf.mxu0
        %v2696 = vadd.f32 0.0, %v2695
        %2697 = vmatmul.f32.gmra.mxu0 %v2583
        %v2698 = vpop.f32.mrf.mxu0
        %v2699 = vadd.f32 0.0, %v2698
        %2700 = vmatmul.f32.gmra.mxu0 %v2586
        %v2701 = vpop.f32.mrf.mxu0
        %v2702 = vadd.f32 0.0, %v2701
        %2703 = vmatmul.f32.gmra.mxu0 %v2589
        %v2704 = vpop.f32.mrf.mxu0
        %v2705 = vadd.f32 0.0, %v2704
        %2706 = vmatmul.f32.gmra.mxu0 %v2592
        %v2707 = vpop.f32.mrf.mxu0
        %v2708 = vadd.f32 0.0, %v2707
        %2709 = vmatmul.f32.gmra.mxu0 %v2595
        %v2710 = vpop.f32.mrf.mxu0
        %v2711 = vadd.f32 0.0, %v2710
        %2712 = vmatmul.f32.gmra.mxu0 %v2598
        %v2713 = vpop.f32.mrf.mxu0
        %v2714 = vadd.f32 0.0, %v2713
        %2715 = vmatmul.f32.gmra.mxu0 %v2601
        %v2716 = vpop.f32.mrf.mxu0
        %v2717 = vadd.f32 0.0, %v2716
        %2718 = vmatmul.f32.gmra.mxu0 %v2604
        %v2719 = vpop.f32.mrf.mxu0
        %v2720 = vadd.f32 0.0, %v2719
        %2721 = vmatmul.f32.gmra.mxu0 %v2607
        %v2722 = vpop.f32.mrf.mxu0
        %v2723 = vadd.f32 0.0, %v2722
        %2724 = vmatmul.f32.gmra.mxu0 %v2610
        %v2725 = vpop.f32.mrf.mxu0
        %v2726 = vadd.f32 0.0, %v2725
        %2727 = vmatmul.f32.gmra.mxu0 %v2613
        %v2728 = vpop.f32.mrf.mxu0
        %v2729 = vadd.f32 0.0, %v2728
        %2730 = vmatmul.f32.gmra.mxu0 %v2616
        %v2731 = vpop.f32.mrf.mxu0
        %v2732 = vadd.f32 0.0, %v2731
        %2733 = vmatmul.f32.gmra.mxu0 %v2619
        %v2734 = vpop.f32.mrf.mxu0
        %v2735 = vadd.f32 0.0, %v2734
        %2736 = vmatmul.f32.gmra.mxu0 %v2622
        %v2737 = vpop.f32.mrf.mxu0
        %v2738 = vadd.f32 0.0, %v2737
        %2739 = vdwg.mxu0
        %v2740 = vadd.f32 %v2462, %v2645
        %v2741 = vadd.f32 %v2463, %v2648
        %v2742 = vadd.f32 %v2464, %v2651
        %v2743 = vadd.f32 %v2465, %v2654
        %v2744 = vadd.f32 %v2466, %v2657
        %v2745 = vadd.f32 %v2467, %v2660
        %v2746 = vadd.f32 %v2468, %v2663
        %v2747 = vadd.f32 %v2469, %v2666
        %v2748 = vadd.f32 %v2470, %v2669
        %v2749 = vadd.f32 %v2471, %v2672
        %v2750 = vadd.f32 %v2472, %v2675
        %v2751 = vadd.f32 %v2473, %v2678
        %v2752 = vadd.f32 %v2474, %v2681
        %v2753 = vadd.f32 %v2475, %v2684
        %v2754 = vadd.f32 %v2476, %v2687
        %v2755 = vadd.f32 %v2477, %v2690
        %v2756 = vadd.f32 %v2478, %v2693
        %v2757 = vadd.f32 %v2479, %v2696
        %v2758 = vadd.f32 %v2480, %v2699
        %v2759 = vadd.f32 %v2481, %v2702
        %v2760 = vadd.f32 %v2482, %v2705
        %v2761 = vadd.f32 %v2483, %v2708
        %v2762 = vadd.f32 %v2484, %v2711
        %v2763 = vadd.f32 %v2485, %v2714
        %v2764 = vadd.f32 %v2486, %v2717
        %v2765 = vadd.f32 %v2487, %v2720
        %v2766 = vadd.f32 %v2488, %v2723
        %v2767 = vadd.f32 %v2489, %v2726
        %v2768 = vadd.f32 %v2490, %v2729
        %v2769 = vadd.f32 %v2491, %v2732
        %v2770 = vadd.f32 %v2492, %v2735
        %v2771 = vadd.f32 %v2493, %v2738
        %v2772 = vld [vmem:[%s3] sm:$0x1]
        %v2774 = vperm.slane %v2772, 0
        %v2776 = vadd.f32 %v2740, %v2774
        %v2777 = vadd.f32 %v2741, %v2774
        %v2778 = vadd.f32 %v2742, %v2774
        %v2779 = vadd.f32 %v2743, %v2774
        %v2780 = vadd.f32 %v2744, %v2774
        %v2781 = vadd.f32 %v2745, %v2774
        %v2782 = vadd.f32 %v2746, %v2774
        %v2783 = vadd.f32 %v2747, %v2774
        %v2784 = vadd.f32 %v2748, %v2774
        %v2785 = vadd.f32 %v2749, %v2774
        %v2786 = vadd.f32 %v2750, %v2774
        %v2787 = vadd.f32 %v2751, %v2774
        %v2788 = vadd.f32 %v2752, %v2774
        %v2789 = vadd.f32 %v2753, %v2774
        %v2790 = vadd.f32 %v2754, %v2774
        %v2791 = vadd.f32 %v2755, %v2774
        %v2792 = vadd.f32 %v2756, %v2774
        %v2793 = vadd.f32 %v2757, %v2774
        %v2794 = vadd.f32 %v2758, %v2774
        %v2795 = vadd.f32 %v2759, %v2774
        %v2796 = vadd.f32 %v2760, %v2774
        %v2797 = vadd.f32 %v2761, %v2774
        %v2798 = vadd.f32 %v2762, %v2774
        %v2799 = vadd.f32 %v2763, %v2774
        %v2800 = vadd.f32 %v2764, %v2774
        %v2801 = vadd.f32 %v2765, %v2774
        %v2802 = vadd.f32 %v2766, %v2774
        %v2803 = vadd.f32 %v2767, %v2774
        %v2804 = vadd.f32 %v2768, %v2774
        %v2805 = vadd.f32 %v2769, %v2774
        %v2806 = vadd.f32 %v2770, %v2774
        %v2807 = vadd.f32 %v2771, %v2774
        %v2808 = vmul.f32 %v2776, 0.2
        %v2809 = vmul.f32 %v2777, 0.2
        %v2810 = vmul.f32 %v2778, 0.2
        %v2811 = vmul.f32 %v2779, 0.2
        %v2812 = vmul.f32 %v2780, 0.2
        %v2813 = vmul.f32 %v2781, 0.2
        %v2814 = vmul.f32 %v2782, 0.2
        %v2815 = vmul.f32 %v2783, 0.2
        %v2816 = vmul.f32 %v2784, 0.2
        %v2817 = vmul.f32 %v2785, 0.2
        %v2818 = vmul.f32 %v2786, 0.2
        %v2819 = vmul.f32 %v2787, 0.2
        %v2820 = vmul.f32 %v2788, 0.2
        %v2821 = vmul.f32 %v2789, 0.2
        %v2822 = vmul.f32 %v2790, 0.2
        %v2823 = vmul.f32 %v2791, 0.2
        %v2824 = vmul.f32 %v2792, 0.2
        %v2825 = vmul.f32 %v2793, 0.2
        %v2826 = vmul.f32 %v2794, 0.2
        %v2827 = vmul.f32 %v2795, 0.2
        %v2828 = vmul.f32 %v2796, 0.2
        %v2829 = vmul.f32 %v2797, 0.2
        %v2830 = vmul.f32 %v2798, 0.2
        %v2831 = vmul.f32 %v2799, 0.2
        %v2832 = vmul.f32 %v2800, 0.2
        %v2833 = vmul.f32 %v2801, 0.2
        %v2834 = vmul.f32 %v2802, 0.2
        %v2835 = vmul.f32 %v2803, 0.2
        %v2836 = vmul.f32 %v2804, 0.2
        %v2837 = vmul.f32 %v2805, 0.2
        %v2838 = vmul.f32 %v2806, 0.2
        %v2839 = vmul.f32 %v2807, 0.2
        %v2840 = vmax.f32 %v2776, %v2808
        %v2841 = vmax.f32 %v2777, %v2809
        %v2842 = vmax.f32 %v2778, %v2810
        %v2843 = vmax.f32 %v2779, %v2811
        %v2844 = vmax.f32 %v2780, %v2812
        %v2845 = vmax.f32 %v2781, %v2813
        %v2846 = vmax.f32 %v2782, %v2814
        %v2847 = vmax.f32 %v2783, %v2815
        %v2848 = vmax.f32 %v2784, %v2816
        %v2849 = vmax.f32 %v2785, %v2817
        %v2850 = vmax.f32 %v2786, %v2818
        %v2851 = vmax.f32 %v2787, %v2819
        %v2852 = vmax.f32 %v2788, %v2820
        %v2853 = vmax.f32 %v2789, %v2821
        %v2854 = vmax.f32 %v2790, %v2822
        %v2855 = vmax.f32 %v2791, %v2823
        %v2856 = vmax.f32 %v2792, %v2824
        %v2857 = vmax.f32 %v2793, %v2825
        %v2858 = vmax.f32 %v2794, %v2826
        %v2859 = vmax.f32 %v2795, %v2827
        %v2860 = vmax.f32 %v2796, %v2828
        %v2861 = vmax.f32 %v2797, %v2829
        %v2862 = vmax.f32 %v2798, %v2830
        %v2863 = vmax.f32 %v2799, %v2831
        %v2864 = vmax.f32 %v2800, %v2832
        %v2865 = vmax.f32 %v2801, %v2833
        %v2866 = vmax.f32 %v2802, %v2834
        %v2867 = vmax.f32 %v2803, %v2835
        %v2868 = vmax.f32 %v2804, %v2836
        %v2869 = vmax.f32 %v2805, %v2837
        %v2870 = vmax.f32 %v2806, %v2838
        %v2871 = vmax.f32 %v2807, %v2839
        %vm2872 = vcmask 277504
        %2873 = vst.msk [vmem:[#allocation2] sm:$0xff] %vm2872, 0.0
        %2874 = vst.msk [vmem:[#allocation2 + $0x8] sm:$0xff] %vm2872, 0.0
        %vm2875 = vcmask 271360
        %2876 = vst.msk [vmem:[#allocation2 + $0x10] sm:$0x3] %vm2875, 0.0
        %2877 = vst.msk [vmem:[#allocation2 + $0x18] sm:$0xff] %vm2872, 0.0
        %2878 = vst.msk [vmem:[#allocation2 + $0x20] sm:$0xff] %vm2872, 0.0
        %2879 = vst.msk [vmem:[#allocation2 + $0x28] sm:$0x3] %vm2875, 0.0
        %2880 = vst.msk [vmem:[#allocation2 + $0x30] sm:$0xff] %vm2872, 0.0
        %2881 = vst.msk [vmem:[#allocation2 + $0x38] sm:$0xff] %vm2872, 0.0
        %2882 = vst.msk [vmem:[#allocation2 + $0x40] sm:$0x3] %vm2875, 0.0
        %2883 = vst.msk [vmem:[#allocation2 + $0x48] sm:$0xff] %vm2872, 0.0
        %2884 = vst.msk [vmem:[#allocation2 + $0x50] sm:$0xff] %vm2872, 0.0
        %2885 = vst.msk [vmem:[#allocation2 + $0x58] sm:$0x3] %vm2875, 0.0
        %2886 = vst.msk [vmem:[#allocation2 + $0x60] sm:$0xff] %vm2872, 0.0
        %2887 = vst.msk [vmem:[#allocation2 + $0x68] sm:$0xff] %vm2872, 0.0
        %2888 = vst.msk [vmem:[#allocation2 + $0x70] sm:$0x3] %vm2875, 0.0
        %2889 = vst.msk [vmem:[#allocation2 + $0x78] sm:$0xff] %vm2872, 0.0
        %2890 = vst.msk [vmem:[#allocation2 + $0x80] sm:$0xff] %vm2872, 0.0
        %2891 = vst.msk [vmem:[#allocation2 + $0x88] sm:$0x3] %vm2875, 0.0
        %2892 = vst.msk [vmem:[#allocation2 + $0x90] sm:$0xff] %vm2872, 0.0
        %2893 = vst.msk [vmem:[#allocation2 + $0x98] sm:$0xff] %vm2872, 0.0
        %2894 = vst.msk [vmem:[#allocation2 + $0xa0] sm:$0x3] %vm2875, 0.0
        %2895 = vst.msk [vmem:[#allocation2 + $0xa8] sm:$0xff] %vm2872, 0.0
        %2896 = vst.msk [vmem:[#allocation2 + $0xb0] sm:$0xff] %vm2872, 0.0
        %2897 = vst.msk [vmem:[#allocation2 + $0xb8] sm:$0x3] %vm2875, 0.0
        %2898 = vst.msk [vmem:[#allocation2 + $0xc0] sm:$0xff] %vm2872, 0.0
        %2899 = vst.msk [vmem:[#allocation2 + $0xc8] sm:$0xff] %vm2872, 0.0
        %2900 = vst.msk [vmem:[#allocation2 + $0xd0] sm:$0x3] %vm2875, 0.0
        %2901 = vst.msk [vmem:[#allocation2 + $0xd8] sm:$0xff] %vm2872, 0.0
        %2902 = vst.msk [vmem:[#allocation2 + $0xe0] sm:$0xff] %vm2872, 0.0
        %2903 = vst.msk [vmem:[#allocation2 + $0xe8] sm:$0x3] %vm2875, 0.0
        %2904 = vst.msk [vmem:[#allocation2 + $0xf0] sm:$0xff] %vm2872, 0.0
        %2905 = vst.msk [vmem:[#allocation2 + $0xf8] sm:$0xff] %vm2872, 0.0
        %2906 = vst.msk [vmem:[#allocation2 + $0x100] sm:$0x3] %vm2875, 0.0
        %2907 = vst.msk [vmem:[#allocation2 + $0x108] sm:$0xff] %vm2872, 0.0
        %2908 = vst.msk [vmem:[#allocation2 + $0x110] sm:$0xff] %vm2872, 0.0
        %2909 = vst.msk [vmem:[#allocation2 + $0x118] sm:$0x3] %vm2875, 0.0
        %2910 = vst.msk [vmem:[#allocation2 + $0x120] sm:$0xff] %vm2872, 0.0
        %2911 = vst.msk [vmem:[#allocation2 + $0x128] sm:$0xff] %vm2872, 0.0
        %2912 = vst.msk [vmem:[#allocation2 + $0x130] sm:$0x3] %vm2875, 0.0
        %2913 = vst.msk [vmem:[#allocation2 + $0x138] sm:$0xff] %vm2872, 0.0
        %2914 = vst.msk [vmem:[#allocation2 + $0x140] sm:$0xff] %vm2872, 0.0
        %2915 = vst.msk [vmem:[#allocation2 + $0x148] sm:$0x3] %vm2875, 0.0
        %2916 = vst.msk [vmem:[#allocation2 + $0x150] sm:$0xff] %vm2872, 0.0
        %2917 = vst.msk [vmem:[#allocation2 + $0x158] sm:$0xff] %vm2872, 0.0
        %2918 = vst.msk [vmem:[#allocation2 + $0x160] sm:$0x3] %vm2875, 0.0
        %2919 = vst.msk [vmem:[#allocation2 + $0x168] sm:$0xff] %vm2872, 0.0
        %2920 = vst.msk [vmem:[#allocation2 + $0x170] sm:$0xff] %vm2872, 0.0
        %2921 = vst.msk [vmem:[#allocation2 + $0x178] sm:$0x3] %vm2875, 0.0
        %2922 = vst.msk [vmem:[#allocation2 + $0x180] sm:$0xff] %vm2872, 0.0
        %2923 = vst.msk [vmem:[#allocation2 + $0x188] sm:$0xff] %vm2872, 0.0
        %2924 = vst.msk [vmem:[#allocation2 + $0x190] sm:$0x3] %vm2875, 0.0
        %2925 = vst.msk [vmem:[#allocation2 + $0x198] sm:$0xff] %vm2872, 0.0
        %2926 = vst.msk [vmem:[#allocation2 + $0x1a0] sm:$0xff] %vm2872, 0.0
        %2927 = vst.msk [vmem:[#allocation2 + $0x1a8] sm:$0x3] %vm2875, 0.0
        %s2928 = scalar_lea.vmem [#allocation2], 24
        %vm2929 = vcmask 261120
        %2930 = vst.msk [vmem:[%s2928 + $0x1] sm:$0xff] %vm2929, %v2840
        %2931 = vst.msk [vmem:[%s2928 + $0x9] sm:$0xff] %vm2929, %v2841
        %2932 = vst.msk [vmem:[%s2928 + $0x19] sm:$0xff] %vm2929, %v2842
        %2933 = vst.msk [vmem:[%s2928 + $0x21] sm:$0xff] %vm2929, %v2843
        %2934 = vst.msk [vmem:[%s2928 + $0x31] sm:$0xff] %vm2929, %v2844
        %2935 = vst.msk [vmem:[%s2928 + $0x39] sm:$0xff] %vm2929, %v2845
        %2936 = vst.msk [vmem:[%s2928 + $0x49] sm:$0xff] %vm2929, %v2846
        %2937 = vst.msk [vmem:[%s2928 + $0x51] sm:$0xff] %vm2929, %v2847
        %2938 = vst.msk [vmem:[%s2928 + $0x61] sm:$0xff] %vm2929, %v2848
        %2939 = vst.msk [vmem:[%s2928 + $0x69] sm:$0xff] %vm2929, %v2849
        %2940 = vst.msk [vmem:[%s2928 + $0x79] sm:$0xff] %vm2929, %v2850
        %2941 = vst.msk [vmem:[%s2928 + $0x81] sm:$0xff] %vm2929, %v2851
        %2942 = vst.msk [vmem:[%s2928 + $0x91] sm:$0xff] %vm2929, %v2852
        %2943 = vst.msk [vmem:[%s2928 + $0x99] sm:$0xff] %vm2929, %v2853
        %2944 = vst.msk [vmem:[%s2928 + $0xa9] sm:$0xff] %vm2929, %v2854
        %2945 = vst.msk [vmem:[%s2928 + $0xb1] sm:$0xff] %vm2929, %v2855
        %2946 = vst.msk [vmem:[%s2928 + $0xc1] sm:$0xff] %vm2929, %v2856
        %2947 = vst.msk [vmem:[%s2928 + $0xc9] sm:$0xff] %vm2929, %v2857
        %2948 = vst.msk [vmem:[%s2928 + $0xd9] sm:$0xff] %vm2929, %v2858
        %2949 = vst.msk [vmem:[%s2928 + $0xe1] sm:$0xff] %vm2929, %v2859
        %2950 = vst.msk [vmem:[%s2928 + $0xf1] sm:$0xff] %vm2929, %v2860
        %2951 = vst.msk [vmem:[%s2928 + $0xf9] sm:$0xff] %vm2929, %v2861
        %2952 = vst.msk [vmem:[%s2928 + $0x109] sm:$0xff] %vm2929, %v2862
        %2953 = vst.msk [vmem:[%s2928 + $0x111] sm:$0xff] %vm2929, %v2863
        %2954 = vst.msk [vmem:[%s2928 + $0x121] sm:$0xff] %vm2929, %v2864
        %2955 = vst.msk [vmem:[%s2928 + $0x129] sm:$0xff] %vm2929, %v2865
        %2956 = vst.msk [vmem:[%s2928 + $0x139] sm:$0xff] %vm2929, %v2866
        %2957 = vst.msk [vmem:[%s2928 + $0x141] sm:$0xff] %vm2929, %v2867
        %2958 = vst.msk [vmem:[%s2928 + $0x151] sm:$0xff] %vm2929, %v2868
        %2959 = vst.msk [vmem:[%s2928 + $0x159] sm:$0xff] %vm2929, %v2869
        %2960 = vst.msk [vmem:[%s2928 + $0x169] sm:$0xff] %vm2929, %v2870
        %2961 = vst.msk [vmem:[%s2928 + $0x171] sm:$0xff] %vm2929, %v2871
        %v2962 = vld [vmem:[%s1] sm:$0xff]
        %v2963 = vld [vmem:[%s1 + $0x8] sm:$0xff]
        %v2964 = vld [vmem:[%s1 + $0x10] sm:$0xff]
        %v2965 = vld [vmem:[%s1 + $0x18] sm:$0xff]
        %v2966 = vld [vmem:[%s1 + $0x20] sm:$0xff]
        %v2967 = vld [vmem:[%s1 + $0x28] sm:$0xff]
        %v2968 = vld [vmem:[%s1 + $0x30] sm:$0xff]
        %v2969 = vld [vmem:[%s1 + $0x38] sm:$0xff]
        %v2970 = vld [vmem:[%s1 + $0x40] sm:$0xff]
        %v2971 = vld [vmem:[%s1 + $0x48] sm:$0xff]
        %v2972 = vld [vmem:[%s1 + $0x50] sm:$0xff]
        %v2973 = vld [vmem:[%s1 + $0x58] sm:$0xff]
        %v2974 = vld [vmem:[%s1 + $0x60] sm:$0xff]
        %v2975 = vld [vmem:[%s1 + $0x68] sm:$0xff]
        %v2976 = vld [vmem:[%s1 + $0x70] sm:$0xff]
        %v2977 = vld [vmem:[%s1 + $0x78] sm:$0xff]
        %v2978 = vld [vmem:[%s1 + $0x80] sm:$0xff]
        %v2979 = vld [vmem:[%s1 + $0x88] sm:$0xff]
        %v2980 = vld [vmem:[%s1 + $0x90] sm:$0xff]
        %v2981 = vld [vmem:[%s1 + $0x98] sm:$0xff]
        %v2982 = vld [vmem:[%s1 + $0xa0] sm:$0xff]
        %v2983 = vld [vmem:[%s1 + $0xa8] sm:$0xff]
        %v2984 = vld [vmem:[%s1 + $0xb0] sm:$0xff]
        %v2985 = vld [vmem:[%s1 + $0xb8] sm:$0xff]
        %v2986 = vld [vmem:[%s1 + $0xc0] sm:$0xff]
        %v2987 = vld [vmem:[%s1 + $0xc8] sm:$0xff]
        %v2988 = vld [vmem:[%s1 + $0xd0] sm:$0xff]
        %v2989 = vld [vmem:[%s1 + $0xd8] sm:$0xff]
        %v2990 = vld [vmem:[%s1 + $0xe0] sm:$0xff]
        %v2991 = vld [vmem:[%s1 + $0xe8] sm:$0xff]
        %v2992 = vld [vmem:[%s1 + $0xf0] sm:$0xff]
        %v2993 = vld [vmem:[%s1 + $0xf8] sm:$0xff]
        %3026 = vrot.lane.b32.xlu0 %v2962, 32
        %v3027 = vpop.permute.xlu0 %3026
        %3028 = vrot.lane.b32.xlu0 %v2963, 32
        %v3029 = vpop.permute.xlu0 %3028
        %3030 = vrot.lane.b32.xlu0 %v2964, 32
        %v3031 = vpop.permute.xlu0 %3030
        %3032 = vrot.lane.b32.xlu0 %v2965, 32
        %v3033 = vpop.permute.xlu0 %3032
        %3034 = vrot.lane.b32.xlu0 %v2966, 32
        %v3035 = vpop.permute.xlu0 %3034
        %3036 = vrot.lane.b32.xlu0 %v2967, 32
        %v3037 = vpop.permute.xlu0 %3036
        %3038 = vrot.lane.b32.xlu0 %v2968, 32
        %v3039 = vpop.permute.xlu0 %3038
        %3040 = vrot.lane.b32.xlu0 %v2969, 32
        %v3041 = vpop.permute.xlu0 %3040
        %3042 = vrot.lane.b32.xlu0 %v2970, 32
        %v3043 = vpop.permute.xlu0 %3042
        %3044 = vrot.lane.b32.xlu0 %v2971, 32
        %v3045 = vpop.permute.xlu0 %3044
        %3046 = vrot.lane.b32.xlu0 %v2972, 32
        %v3047 = vpop.permute.xlu0 %3046
        %3048 = vrot.lane.b32.xlu0 %v2973, 32
        %v3049 = vpop.permute.xlu0 %3048
        %3050 = vrot.lane.b32.xlu0 %v2974, 32
        %v3051 = vpop.permute.xlu0 %3050
        %3052 = vrot.lane.b32.xlu0 %v2975, 32
        %v3053 = vpop.permute.xlu0 %3052
        %3054 = vrot.lane.b32.xlu0 %v2976, 32
        %v3055 = vpop.permute.xlu0 %3054
        %3056 = vrot.lane.b32.xlu0 %v2977, 32
        %v3057 = vpop.permute.xlu0 %3056
        %3058 = vrot.lane.b32.xlu0 %v2978, 32
        %v3059 = vpop.permute.xlu0 %3058
        %3060 = vrot.lane.b32.xlu0 %v2979, 32
        %v3061 = vpop.permute.xlu0 %3060
        %3062 = vrot.lane.b32.xlu0 %v2980, 32
        %v3063 = vpop.permute.xlu0 %3062
        %3064 = vrot.lane.b32.xlu0 %v2981, 32
        %v3065 = vpop.permute.xlu0 %3064
        %3066 = vrot.lane.b32.xlu0 %v2982, 32
        %v3067 = vpop.permute.xlu0 %3066
        %3068 = vrot.lane.b32.xlu0 %v2983, 32
        %v3069 = vpop.permute.xlu0 %3068
        %3070 = vrot.lane.b32.xlu0 %v2984, 32
        %v3071 = vpop.permute.xlu0 %3070
        %3072 = vrot.lane.b32.xlu0 %v2985, 32
        %v3073 = vpop.permute.xlu0 %3072
        %3074 = vrot.lane.b32.xlu0 %v2986, 32
        %v3075 = vpop.permute.xlu0 %3074
        %3076 = vrot.lane.b32.xlu0 %v2987, 32
        %v3077 = vpop.permute.xlu0 %3076
        %3078 = vrot.lane.b32.xlu0 %v2988, 32
        %v3079 = vpop.permute.xlu0 %3078
        %3080 = vrot.lane.b32.xlu0 %v2989, 32
        %v3081 = vpop.permute.xlu0 %3080
        %3082 = vrot.lane.b32.xlu0 %v2990, 32
        %v3083 = vpop.permute.xlu0 %3082
        %3084 = vrot.lane.b32.xlu0 %v2991, 32
        %v3085 = vpop.permute.xlu0 %3084
        %3086 = vrot.lane.b32.xlu0 %v2992, 32
        %v3087 = vpop.permute.xlu0 %3086
        %3088 = vrot.lane.b32.xlu0 %v2993, 32
        %v3089 = vpop.permute.xlu0 %3088
        %vm3122 = vcmask 277760
        %3123 = vst.msk [vmem:[%s2928 + $0x1] sm:$0xff] %vm3122, %v3027
        %3124 = vst.msk [vmem:[%s2928 + $0x9] sm:$0xff] %vm3122, %v3029
        %3125 = vst.msk [vmem:[%s2928 + $0x19] sm:$0xff] %vm3122, %v3031
        %3126 = vst.msk [vmem:[%s2928 + $0x21] sm:$0xff] %vm3122, %v3033
        %3127 = vst.msk [vmem:[%s2928 + $0x31] sm:$0xff] %vm3122, %v3035
        %3128 = vst.msk [vmem:[%s2928 + $0x39] sm:$0xff] %vm3122, %v3037
        %3129 = vst.msk [vmem:[%s2928 + $0x49] sm:$0xff] %vm3122, %v3039
        %3130 = vst.msk [vmem:[%s2928 + $0x51] sm:$0xff] %vm3122, %v3041
        %3131 = vst.msk [vmem:[%s2928 + $0x61] sm:$0xff] %vm3122, %v3043
        %3132 = vst.msk [vmem:[%s2928 + $0x69] sm:$0xff] %vm3122, %v3045
        %3133 = vst.msk [vmem:[%s2928 + $0x79] sm:$0xff] %vm3122, %v3047
        %3134 = vst.msk [vmem:[%s2928 + $0x81] sm:$0xff] %vm3122, %v3049
        %3135 = vst.msk [vmem:[%s2928 + $0x91] sm:$0xff] %vm3122, %v3051
        %3136 = vst.msk [vmem:[%s2928 + $0x99] sm:$0xff] %vm3122, %v3053
        %3137 = vst.msk [vmem:[%s2928 + $0xa9] sm:$0xff] %vm3122, %v3055
        %3138 = vst.msk [vmem:[%s2928 + $0xb1] sm:$0xff] %vm3122, %v3057
        %3139 = vst.msk [vmem:[%s2928 + $0xc1] sm:$0xff] %vm3122, %v3059
        %3140 = vst.msk [vmem:[%s2928 + $0xc9] sm:$0xff] %vm3122, %v3061
        %3141 = vst.msk [vmem:[%s2928 + $0xd9] sm:$0xff] %vm3122, %v3063
        %3142 = vst.msk [vmem:[%s2928 + $0xe1] sm:$0xff] %vm3122, %v3065
        %3143 = vst.msk [vmem:[%s2928 + $0xf1] sm:$0xff] %vm3122, %v3067
        %3144 = vst.msk [vmem:[%s2928 + $0xf9] sm:$0xff] %vm3122, %v3069
        %3145 = vst.msk [vmem:[%s2928 + $0x109] sm:$0xff] %vm3122, %v3071
        %3146 = vst.msk [vmem:[%s2928 + $0x111] sm:$0xff] %vm3122, %v3073
        %3147 = vst.msk [vmem:[%s2928 + $0x121] sm:$0xff] %vm3122, %v3075
        %3148 = vst.msk [vmem:[%s2928 + $0x129] sm:$0xff] %vm3122, %v3077
        %3149 = vst.msk [vmem:[%s2928 + $0x139] sm:$0xff] %vm3122, %v3079
        %3150 = vst.msk [vmem:[%s2928 + $0x141] sm:$0xff] %vm3122, %v3081
        %3151 = vst.msk [vmem:[%s2928 + $0x151] sm:$0xff] %vm3122, %v3083
        %3152 = vst.msk [vmem:[%s2928 + $0x159] sm:$0xff] %vm3122, %v3085
        %3153 = vst.msk [vmem:[%s2928 + $0x169] sm:$0xff] %vm3122, %v3087
        %3154 = vst.msk [vmem:[%s2928 + $0x171] sm:$0xff] %vm3122, %v3089
        %v3155 = vld [vmem:[#allocation2] sm:$0xff]
        %v3156 = vld [vmem:[#allocation2 + $0x8] sm:$0xff]
        %v3157 = vld [vmem:[#allocation2 + $0x18] sm:$0xff]
        %v3158 = vld [vmem:[#allocation2 + $0x20] sm:$0xff]
        %v3159 = vld [vmem:[#allocation2 + $0x30] sm:$0xff]
        %v3160 = vld [vmem:[#allocation2 + $0x38] sm:$0xff]
        %v3161 = vld [vmem:[#allocation2 + $0x48] sm:$0xff]
        %v3162 = vld [vmem:[#allocation2 + $0x50] sm:$0xff]
        %v3163 = vld [vmem:[#allocation2 + $0x60] sm:$0xff]
        %v3164 = vld [vmem:[#allocation2 + $0x68] sm:$0xff]
        %v3165 = vld [vmem:[#allocation2 + $0x78] sm:$0xff]
        %v3166 = vld [vmem:[#allocation2 + $0x80] sm:$0xff]
        %v3167 = vld [vmem:[#allocation2 + $0x90] sm:$0xff]
        %v3168 = vld [vmem:[#allocation2 + $0x98] sm:$0xff]
        %v3169 = vld [vmem:[#allocation2 + $0xa8] sm:$0xff]
        %v3170 = vld [vmem:[#allocation2 + $0xb0] sm:$0xff]
        %v3171 = vld [vmem:[#allocation2 + $0xc0] sm:$0xff]
        %v3172 = vld [vmem:[#allocation2 + $0xc8] sm:$0xff]
        %v3173 = vld [vmem:[#allocation2 + $0xd8] sm:$0xff]
        %v3174 = vld [vmem:[#allocation2 + $0xe0] sm:$0xff]
        %v3175 = vld [vmem:[#allocation2 + $0xf0] sm:$0xff]
        %v3176 = vld [vmem:[#allocation2 + $0xf8] sm:$0xff]
        %v3177 = vld [vmem:[#allocation2 + $0x108] sm:$0xff]
        %v3178 = vld [vmem:[#allocation2 + $0x110] sm:$0xff]
        %v3179 = vld [vmem:[#allocation2 + $0x120] sm:$0xff]
        %v3180 = vld [vmem:[#allocation2 + $0x128] sm:$0xff]
        %v3181 = vld [vmem:[#allocation2 + $0x138] sm:$0xff]
        %v3182 = vld [vmem:[#allocation2 + $0x140] sm:$0xff]
        %v3183 = vld [vmem:[#allocation2 + $0x150] sm:$0xff]
        %v3184 = vld [vmem:[#allocation2 + $0x158] sm:$0xff]
        %v3185 = vld [vmem:[#allocation2 + $0x168] sm:$0xff]
        %v3186 = vld [vmem:[#allocation2 + $0x170] sm:$0xff]
        %v3187 = vld [vmem:[%s4] sm:$0xff]
        %v3188 = vld [vmem:[%s4 + $0x8] sm:$0xff]
        %v3189 = vld [vmem:[%s4 + $0x10] sm:$0xff]
        %v3190 = vld [vmem:[%s4 + $0x18] sm:$0xff]
        %v3191 = vld [vmem:[%s4 + $0x20] sm:$0x3]
        %v3192 = vld [vmem:[#allocation2 + $0x1] sm:$0xff]
        %v3193 = vld [vmem:[#allocation2 + $0x9] sm:$0xff]
        %v3194 = vld [vmem:[#allocation2 + $0x19] sm:$0xff]
        %v3195 = vld [vmem:[#allocation2 + $0x21] sm:$0xff]
        %v3196 = vld [vmem:[#allocation2 + $0x31] sm:$0xff]
        %v3197 = vld [vmem:[#allocation2 + $0x39] sm:$0xff]
        %v3198 = vld [vmem:[#allocation2 + $0x49] sm:$0xff]
        %v3199 = vld [vmem:[#allocation2 + $0x51] sm:$0xff]
        %v3200 = vld [vmem:[#allocation2 + $0x61] sm:$0xff]
        %v3201 = vld [vmem:[#allocation2 + $0x69] sm:$0xff]
        %v3202 = vld [vmem:[#allocation2 + $0x79] sm:$0xff]
        %v3203 = vld [vmem:[#allocation2 + $0x81] sm:$0xff]
        %v3204 = vld [vmem:[#allocation2 + $0x91] sm:$0xff]
        %v3205 = vld [vmem:[#allocation2 + $0x99] sm:$0xff]
        %v3206 = vld [vmem:[#allocation2 + $0xa9] sm:$0xff]
        %v3207 = vld [vmem:[#allocation2 + $0xb1] sm:$0xff]
        %v3208 = vld [vmem:[#allocation2 + $0xc1] sm:$0xff]
        %v3209 = vld [vmem:[#allocation2 + $0xc9] sm:$0xff]
        %v3210 = vld [vmem:[#allocation2 + $0xd9] sm:$0xff]
        %v3211 = vld [vmem:[#allocation2 + $0xe1] sm:$0xff]
        %v3212 = vld [vmem:[#allocation2 + $0xf1] sm:$0xff]
        %v3213 = vld [vmem:[#allocation2 + $0xf9] sm:$0xff]
        %v3214 = vld [vmem:[#allocation2 + $0x109] sm:$0xff]
        %v3215 = vld [vmem:[#allocation2 + $0x111] sm:$0xff]
        %v3216 = vld [vmem:[#allocation2 + $0x121] sm:$0xff]
        %v3217 = vld [vmem:[#allocation2 + $0x129] sm:$0xff]
        %v3218 = vld [vmem:[#allocation2 + $0x139] sm:$0xff]
        %v3219 = vld [vmem:[#allocation2 + $0x141] sm:$0xff]
        %v3220 = vld [vmem:[#allocation2 + $0x151] sm:$0xff]
        %v3221 = vld [vmem:[#allocation2 + $0x159] sm:$0xff]
        %v3222 = vld [vmem:[#allocation2 + $0x169] sm:$0xff]
        %v3223 = vld [vmem:[#allocation2 + $0x171] sm:$0xff]
        %s3224 = scalar_lea.vmem %s4, 40
        %v3225 = vld [vmem:[%s3224] sm:$0xff]
        %v3226 = vld [vmem:[%s3224 + $0x8] sm:$0xff]
        %v3227 = vld [vmem:[%s3224 + $0x10] sm:$0xff]
        %v3228 = vld [vmem:[%s3224 + $0x18] sm:$0xff]
        %v3229 = vld [vmem:[%s3224 + $0x20] sm:$0x3]
        %v3231 = vsel %vm2872, %v3192, 0
        %v3234 = vsel %vm2872, %v3193, 0
        %v3237 = vsel %vm2872, %v3194, 0
        %v3240 = vsel %vm2872, %v3195, 0
        %v3243 = vsel %vm2872, %v3196, 0
        %v3246 = vsel %vm2872, %v3197, 0
        %v3249 = vsel %vm2872, %v3198, 0
        %v3252 = vsel %vm2872, %v3199, 0
        %v3255 = vsel %vm2872, %v3200, 0
        %v3258 = vsel %vm2872, %v3201, 0
        %v3261 = vsel %vm2872, %v3202, 0
        %v3264 = vsel %vm2872, %v3203, 0
        %v3267 = vsel %vm2872, %v3204, 0
        %v3270 = vsel %vm2872, %v3205, 0
        %v3273 = vsel %vm2872, %v3206, 0
        %v3276 = vsel %vm2872, %v3207, 0
        %v3279 = vsel %vm2872, %v3208, 0
        %v3282 = vsel %vm2872, %v3209, 0
        %v3285 = vsel %vm2872, %v3210, 0
        %v3288 = vsel %vm2872, %v3211, 0
        %v3291 = vsel %vm2872, %v3212, 0
        %v3294 = vsel %vm2872, %v3213, 0
        %v3297 = vsel %vm2872, %v3214, 0
        %v3300 = vsel %vm2872, %v3215, 0
        %v3303 = vsel %vm2872, %v3216, 0
        %v3306 = vsel %vm2872, %v3217, 0
        %v3309 = vsel %vm2872, %v3218, 0
        %v3312 = vsel %vm2872, %v3219, 0
        %v3315 = vsel %vm2872, %v3220, 0
        %v3318 = vsel %vm2872, %v3221, 0
        %v3321 = vsel %vm2872, %v3222, 0
        %v3324 = vsel %vm2872, %v3223, 0
        %vm3326 = vcmask 1041408
        %v3328 = vsel %vm3326, %v3229, 0
        %3330 = vmatpush.msra.mxu0 0.0
        %3331 = vmatpush.msra.mxu0 0.0
        %3332 = vmatpush.msra.mxu0 0.0
        %3333 = vmatpush.msra.mxu0 0.0
        %3334 = vmatpush.msra.mxu0 0.0
        %3335 = vmatpush.msra.mxu0 0.0
        %3336 = vmatpush.msra.mxu0 0.0
        %3337 = vmatpush.msra.mxu0 0.0
        %3338 = vmatpush.msra.mxu0 0.0
        %3339 = vmatpush.msra.mxu0 0.0
        %3340 = vmatpush.msra.mxu0 0.0
        %3341 = vmatpush.msra.mxu0 %v3328
        %3342 = vmatpush.msra.mxu0 %v3228
        %3343 = vmatpush.msra.mxu0 %v3227
        %3344 = vmatpush.msra.mxu0 %v3226
        %3345 = vmatpush.msra.mxu0 %v3225
        %3346 = vmatmul.f32.gmra.mxu0 %v3231
        %v3347 = vpop.f32.mrf.mxu0
        %v3348 = vadd.f32 0.0, %v3347
        %3349 = vmatmul.f32.gmra.mxu0 %v3234
        %v3350 = vpop.f32.mrf.mxu0
        %v3351 = vadd.f32 0.0, %v3350
        %3352 = vmatmul.f32.gmra.mxu0 %v3237
        %v3353 = vpop.f32.mrf.mxu0
        %v3354 = vadd.f32 0.0, %v3353
        %3355 = vmatmul.f32.gmra.mxu0 %v3240
        %v3356 = vpop.f32.mrf.mxu0
        %v3357 = vadd.f32 0.0, %v3356
        %3358 = vmatmul.f32.gmra.mxu0 %v3243
        %v3359 = vpop.f32.mrf.mxu0
        %v3360 = vadd.f32 0.0, %v3359
        %3361 = vmatmul.f32.gmra.mxu0 %v3246
        %v3362 = vpop.f32.mrf.mxu0
        %v3363 = vadd.f32 0.0, %v3362
        %3364 = vmatmul.f32.gmra.mxu0 %v3249
        %v3365 = vpop.f32.mrf.mxu0
        %v3366 = vadd.f32 0.0, %v3365
        %3367 = vmatmul.f32.gmra.mxu0 %v3252
        %v3368 = vpop.f32.mrf.mxu0
        %v3369 = vadd.f32 0.0, %v3368
        %3370 = vmatmul.f32.gmra.mxu0 %v3255
        %v3371 = vpop.f32.mrf.mxu0
        %v3372 = vadd.f32 0.0, %v3371
        %3373 = vmatmul.f32.gmra.mxu0 %v3258
        %v3374 = vpop.f32.mrf.mxu0
        %v3375 = vadd.f32 0.0, %v3374
        %3376 = vmatmul.f32.gmra.mxu0 %v3261
        %v3377 = vpop.f32.mrf.mxu0
        %v3378 = vadd.f32 0.0, %v3377
        %3379 = vmatmul.f32.gmra.mxu0 %v3264
        %v3380 = vpop.f32.mrf.mxu0
        %v3381 = vadd.f32 0.0, %v3380
        %3382 = vmatmul.f32.gmra.mxu0 %v3267
        %v3383 = vpop.f32.mrf.mxu0
        %v3384 = vadd.f32 0.0, %v3383
        %3385 = vmatmul.f32.gmra.mxu0 %v3270
        %v3386 = vpop.f32.mrf.mxu0
        %v3387 = vadd.f32 0.0, %v3386
        %3388 = vmatmul.f32.gmra.mxu0 %v3273
        %v3389 = vpop.f32.mrf.mxu0
        %v3390 = vadd.f32 0.0, %v3389
        %3391 = vmatmul.f32.gmra.mxu0 %v3276
        %v3392 = vpop.f32.mrf.mxu0
        %v3393 = vadd.f32 0.0, %v3392
        %3394 = vmatmul.f32.gmra.mxu0 %v3279
        %v3395 = vpop.f32.mrf.mxu0
        %v3396 = vadd.f32 0.0, %v3395
        %3397 = vmatmul.f32.gmra.mxu0 %v3282
        %v3398 = vpop.f32.mrf.mxu0
        %v3399 = vadd.f32 0.0, %v3398
        %3400 = vmatmul.f32.gmra.mxu0 %v3285
        %v3401 = vpop.f32.mrf.mxu0
        %v3402 = vadd.f32 0.0, %v3401
        %3403 = vmatmul.f32.gmra.mxu0 %v3288
        %v3404 = vpop.f32.mrf.mxu0
        %v3405 = vadd.f32 0.0, %v3404
        %3406 = vmatmul.f32.gmra.mxu0 %v3291
        %v3407 = vpop.f32.mrf.mxu0
        %v3408 = vadd.f32 0.0, %v3407
        %3409 = vmatmul.f32.gmra.mxu0 %v3294
        %v3410 = vpop.f32.mrf.mxu0
        %v3411 = vadd.f32 0.0, %v3410
        %3412 = vmatmul.f32.gmra.mxu0 %v3297
        %v3413 = vpop.f32.mrf.mxu0
        %v3414 = vadd.f32 0.0, %v3413
        %3415 = vmatmul.f32.gmra.mxu0 %v3300
        %v3416 = vpop.f32.mrf.mxu0
        %v3417 = vadd.f32 0.0, %v3416
        %3418 = vmatmul.f32.gmra.mxu0 %v3303
        %v3419 = vpop.f32.mrf.mxu0
        %v3420 = vadd.f32 0.0, %v3419
        %3421 = vmatmul.f32.gmra.mxu0 %v3306
        %v3422 = vpop.f32.mrf.mxu0
        %v3423 = vadd.f32 0.0, %v3422
        %3424 = vmatmul.f32.gmra.mxu0 %v3309
        %v3425 = vpop.f32.mrf.mxu0
        %v3426 = vadd.f32 0.0, %v3425
        %3427 = vmatmul.f32.gmra.mxu0 %v3312
        %v3428 = vpop.f32.mrf.mxu0
        %v3429 = vadd.f32 0.0, %v3428
        %3430 = vmatmul.f32.gmra.mxu0 %v3315
        %v3431 = vpop.f32.mrf.mxu0
        %v3432 = vadd.f32 0.0, %v3431
        %3433 = vmatmul.f32.gmra.mxu0 %v3318
        %v3434 = vpop.f32.mrf.mxu0
        %v3435 = vadd.f32 0.0, %v3434
        %3436 = vmatmul.f32.gmra.mxu0 %v3321
        %v3437 = vpop.f32.mrf.mxu0
        %v3438 = vadd.f32 0.0, %v3437
        %3439 = vmatmul.f32.gmra.mxu0 %v3324
        %v3440 = vpop.f32.mrf.mxu0
        %v3441 = vadd.f32 0.0, %v3440
        %3442 = vdwg.mxu0
        %v3444 = vsel %vm2872, %v3155, 0
        %v3447 = vsel %vm2872, %v3156, 0
        %v3450 = vsel %vm2872, %v3157, 0
        %v3453 = vsel %vm2872, %v3158, 0
        %v3456 = vsel %vm2872, %v3159, 0
        %v3459 = vsel %vm2872, %v3160, 0
        %v3462 = vsel %vm2872, %v3161, 0
        %v3465 = vsel %vm2872, %v3162, 0
        %v3468 = vsel %vm2872, %v3163, 0
        %v3471 = vsel %vm2872, %v3164, 0
        %v3474 = vsel %vm2872, %v3165, 0
        %v3477 = vsel %vm2872, %v3166, 0
        %v3480 = vsel %vm2872, %v3167, 0
        %v3483 = vsel %vm2872, %v3168, 0
        %v3486 = vsel %vm2872, %v3169, 0
        %v3489 = vsel %vm2872, %v3170, 0
        %v3492 = vsel %vm2872, %v3171, 0
        %v3495 = vsel %vm2872, %v3172, 0
        %v3498 = vsel %vm2872, %v3173, 0
        %v3501 = vsel %vm2872, %v3174, 0
        %v3504 = vsel %vm2872, %v3175, 0
        %v3507 = vsel %vm2872, %v3176, 0
        %v3510 = vsel %vm2872, %v3177, 0
        %v3513 = vsel %vm2872, %v3178, 0
        %v3516 = vsel %vm2872, %v3179, 0
        %v3519 = vsel %vm2872, %v3180, 0
        %v3522 = vsel %vm2872, %v3181, 0
        %v3525 = vsel %vm2872, %v3182, 0
        %v3528 = vsel %vm2872, %v3183, 0
        %v3531 = vsel %vm2872, %v3184, 0
        %v3534 = vsel %vm2872, %v3185, 0
        %v3537 = vsel %vm2872, %v3186, 0
        %v3540 = vsel %vm3326, %v3191, 0
        %3542 = vmatpush.msra.mxu0 0.0
        %3543 = vmatpush.msra.mxu0 0.0
        %3544 = vmatpush.msra.mxu0 0.0
        %3545 = vmatpush.msra.mxu0 0.0
        %3546 = vmatpush.msra.mxu0 0.0
        %3547 = vmatpush.msra.mxu0 0.0
        %3548 = vmatpush.msra.mxu0 0.0
        %3549 = vmatpush.msra.mxu0 0.0
        %3550 = vmatpush.msra.mxu0 0.0
        %3551 = vmatpush.msra.mxu0 0.0
        %3552 = vmatpush.msra.mxu0 0.0
        %3553 = vmatpush.msra.mxu0 %v3540
        %3554 = vmatpush.msra.mxu0 %v3190
        %3555 = vmatpush.msra.mxu0 %v3189
        %3556 = vmatpush.msra.mxu0 %v3188
        %3557 = vmatpush.msra.mxu0 %v3187
        %3558 = vmatmul.f32.gmra.mxu0 %v3444
        %v3559 = vpop.f32.mrf.mxu0
        %v3560 = vadd.f32 %v3348, %v3559
        %3561 = vmatmul.f32.gmra.mxu0 %v3447
        %v3562 = vpop.f32.mrf.mxu0
        %v3563 = vadd.f32 %v3351, %v3562
        %3564 = vmatmul.f32.gmra.mxu0 %v3450
        %v3565 = vpop.f32.mrf.mxu0
        %v3566 = vadd.f32 %v3354, %v3565
        %3567 = vmatmul.f32.gmra.mxu0 %v3453
        %v3568 = vpop.f32.mrf.mxu0
        %v3569 = vadd.f32 %v3357, %v3568
        %3570 = vmatmul.f32.gmra.mxu0 %v3456
        %v3571 = vpop.f32.mrf.mxu0
        %v3572 = vadd.f32 %v3360, %v3571
        %3573 = vmatmul.f32.gmra.mxu0 %v3459
        %v3574 = vpop.f32.mrf.mxu0
        %v3575 = vadd.f32 %v3363, %v3574
        %3576 = vmatmul.f32.gmra.mxu0 %v3462
        %v3577 = vpop.f32.mrf.mxu0
        %v3578 = vadd.f32 %v3366, %v3577
        %3579 = vmatmul.f32.gmra.mxu0 %v3465
        %v3580 = vpop.f32.mrf.mxu0
        %v3581 = vadd.f32 %v3369, %v3580
        %3582 = vmatmul.f32.gmra.mxu0 %v3468
        %v3583 = vpop.f32.mrf.mxu0
        %v3584 = vadd.f32 %v3372, %v3583
        %3585 = vmatmul.f32.gmra.mxu0 %v3471
        %v3586 = vpop.f32.mrf.mxu0
        %v3587 = vadd.f32 %v3375, %v3586
        %3588 = vmatmul.f32.gmra.mxu0 %v3474
        %v3589 = vpop.f32.mrf.mxu0
        %v3590 = vadd.f32 %v3378, %v3589
        %3591 = vmatmul.f32.gmra.mxu0 %v3477
        %v3592 = vpop.f32.mrf.mxu0
        %v3593 = vadd.f32 %v3381, %v3592
        %3594 = vmatmul.f32.gmra.mxu0 %v3480
        %v3595 = vpop.f32.mrf.mxu0
        %v3596 = vadd.f32 %v3384, %v3595
        %3597 = vmatmul.f32.gmra.mxu0 %v3483
        %v3598 = vpop.f32.mrf.mxu0
        %v3599 = vadd.f32 %v3387, %v3598
        %3600 = vmatmul.f32.gmra.mxu0 %v3486
        %v3601 = vpop.f32.mrf.mxu0
        %v3602 = vadd.f32 %v3390, %v3601
        %3603 = vmatmul.f32.gmra.mxu0 %v3489
        %v3604 = vpop.f32.mrf.mxu0
        %v3605 = vadd.f32 %v3393, %v3604
        %3606 = vmatmul.f32.gmra.mxu0 %v3492
        %v3607 = vpop.f32.mrf.mxu0
        %v3608 = vadd.f32 %v3396, %v3607
        %3609 = vmatmul.f32.gmra.mxu0 %v3495
        %v3610 = vpop.f32.mrf.mxu0
        %v3611 = vadd.f32 %v3399, %v3610
        %3612 = vmatmul.f32.gmra.mxu0 %v3498
        %v3613 = vpop.f32.mrf.mxu0
        %v3614 = vadd.f32 %v3402, %v3613
        %3615 = vmatmul.f32.gmra.mxu0 %v3501
        %v3616 = vpop.f32.mrf.mxu0
        %v3617 = vadd.f32 %v3405, %v3616
        %3618 = vmatmul.f32.gmra.mxu0 %v3504
        %v3619 = vpop.f32.mrf.mxu0
        %v3620 = vadd.f32 %v3408, %v3619
        %3621 = vmatmul.f32.gmra.mxu0 %v3507
        %v3622 = vpop.f32.mrf.mxu0
        %v3623 = vadd.f32 %v3411, %v3622
        %3624 = vmatmul.f32.gmra.mxu0 %v3510
        %v3625 = vpop.f32.mrf.mxu0
        %v3626 = vadd.f32 %v3414, %v3625
        %3627 = vmatmul.f32.gmra.mxu0 %v3513
        %v3628 = vpop.f32.mrf.mxu0
        %v3629 = vadd.f32 %v3417, %v3628
        %3630 = vmatmul.f32.gmra.mxu0 %v3516
        %v3631 = vpop.f32.mrf.mxu0
        %v3632 = vadd.f32 %v3420, %v3631
        %3633 = vmatmul.f32.gmra.mxu0 %v3519
        %v3634 = vpop.f32.mrf.mxu0
        %v3635 = vadd.f32 %v3423, %v3634
        %3636 = vmatmul.f32.gmra.mxu0 %v3522
        %v3637 = vpop.f32.mrf.mxu0
        %v3638 = vadd.f32 %v3426, %v3637
        %3639 = vmatmul.f32.gmra.mxu0 %v3525
        %v3640 = vpop.f32.mrf.mxu0
        %v3641 = vadd.f32 %v3429, %v3640
        %3642 = vmatmul.f32.gmra.mxu0 %v3528
        %v3643 = vpop.f32.mrf.mxu0
        %v3644 = vadd.f32 %v3432, %v3643
        %3645 = vmatmul.f32.gmra.mxu0 %v3531
        %v3646 = vpop.f32.mrf.mxu0
        %v3647 = vadd.f32 %v3435, %v3646
        %3648 = vmatmul.f32.gmra.mxu0 %v3534
        %v3649 = vpop.f32.mrf.mxu0
        %v3650 = vadd.f32 %v3438, %v3649
        %3651 = vmatmul.f32.gmra.mxu0 %v3537
        %v3652 = vpop.f32.mrf.mxu0
        %v3653 = vadd.f32 %v3441, %v3652
        %3654 = vdwg.mxu0
        %v3655 = vld [vmem:[#allocation2 + $0x2] sm:$0xff]
        %v3656 = vld [vmem:[#allocation2 + $0xa] sm:$0xff]
        %v3657 = vld [vmem:[#allocation2 + $0x1a] sm:$0xff]
        %v3658 = vld [vmem:[#allocation2 + $0x22] sm:$0xff]
        %v3659 = vld [vmem:[#allocation2 + $0x32] sm:$0xff]
        %v3660 = vld [vmem:[#allocation2 + $0x3a] sm:$0xff]
        %v3661 = vld [vmem:[#allocation2 + $0x4a] sm:$0xff]
        %v3662 = vld [vmem:[#allocation2 + $0x52] sm:$0xff]
        %v3663 = vld [vmem:[#allocation2 + $0x62] sm:$0xff]
        %v3664 = vld [vmem:[#allocation2 + $0x6a] sm:$0xff]
        %v3665 = vld [vmem:[#allocation2 + $0x7a] sm:$0xff]
        %v3666 = vld [vmem:[#allocation2 + $0x82] sm:$0xff]
        %v3667 = vld [vmem:[#allocation2 + $0x92] sm:$0xff]
        %v3668 = vld [vmem:[#allocation2 + $0x9a] sm:$0xff]
        %v3669 = vld [vmem:[#allocation2 + $0xaa] sm:$0xff]
        %v3670 = vld [vmem:[#allocation2 + $0xb2] sm:$0xff]
        %v3671 = vld [vmem:[#allocation2 + $0xc2] sm:$0xff]
        %v3672 = vld [vmem:[#allocation2 + $0xca] sm:$0xff]
        %v3673 = vld [vmem:[#allocation2 + $0xda] sm:$0xff]
        %v3674 = vld [vmem:[#allocation2 + $0xe2] sm:$0xff]
        %v3675 = vld [vmem:[#allocation2 + $0xf2] sm:$0xff]
        %v3676 = vld [vmem:[#allocation2 + $0xfa] sm:$0xff]
        %v3677 = vld [vmem:[#allocation2 + $0x10a] sm:$0xff]
        %v3678 = vld [vmem:[#allocation2 + $0x112] sm:$0xff]
        %v3679 = vld [vmem:[#allocation2 + $0x122] sm:$0xff]
        %v3680 = vld [vmem:[#allocation2 + $0x12a] sm:$0xff]
        %v3681 = vld [vmem:[#allocation2 + $0x13a] sm:$0xff]
        %v3682 = vld [vmem:[#allocation2 + $0x142] sm:$0xff]
        %v3683 = vld [vmem:[#allocation2 + $0x152] sm:$0xff]
        %v3684 = vld [vmem:[#allocation2 + $0x15a] sm:$0xff]
        %v3685 = vld [vmem:[#allocation2 + $0x16a] sm:$0xff]
        %v3686 = vld [vmem:[#allocation2 + $0x172] sm:$0xff]
        %s3687 = scalar_lea.vmem %s4, 80
        %v3688 = vld [vmem:[%s3687] sm:$0xff]
        %v3689 = vld [vmem:[%s3687 + $0x8] sm:$0xff]
        %v3690 = vld [vmem:[%s3687 + $0x10] sm:$0xff]
        %v3691 = vld [vmem:[%s3687 + $0x18] sm:$0xff]
        %v3692 = vld [vmem:[%s3687 + $0x20] sm:$0x3]
        %v3694 = vsel %vm2872, %v3655, 0
        %v3697 = vsel %vm2872, %v3656, 0
        %v3700 = vsel %vm2872, %v3657, 0
        %v3703 = vsel %vm2872, %v3658, 0
        %v3706 = vsel %vm2872, %v3659, 0
        %v3709 = vsel %vm2872, %v3660, 0
        %v3712 = vsel %vm2872, %v3661, 0
        %v3715 = vsel %vm2872, %v3662, 0
        %v3718 = vsel %vm2872, %v3663, 0
        %v3721 = vsel %vm2872, %v3664, 0
        %v3724 = vsel %vm2872, %v3665, 0
        %v3727 = vsel %vm2872, %v3666, 0
        %v3730 = vsel %vm2872, %v3667, 0
        %v3733 = vsel %vm2872, %v3668, 0
        %v3736 = vsel %vm2872, %v3669, 0
        %v3739 = vsel %vm2872, %v3670, 0
        %v3742 = vsel %vm2872, %v3671, 0
        %v3745 = vsel %vm2872, %v3672, 0
        %v3748 = vsel %vm2872, %v3673, 0
        %v3751 = vsel %vm2872, %v3674, 0
        %v3754 = vsel %vm2872, %v3675, 0
        %v3757 = vsel %vm2872, %v3676, 0
        %v3760 = vsel %vm2872, %v3677, 0
        %v3763 = vsel %vm2872, %v3678, 0
        %v3766 = vsel %vm2872, %v3679, 0
        %v3769 = vsel %vm2872, %v3680, 0
        %v3772 = vsel %vm2872, %v3681, 0
        %v3775 = vsel %vm2872, %v3682, 0
        %v3778 = vsel %vm2872, %v3683, 0
        %v3781 = vsel %vm2872, %v3684, 0
        %v3784 = vsel %vm2872, %v3685, 0
        %v3787 = vsel %vm2872, %v3686, 0
        %v3790 = vsel %vm3326, %v3692, 0
        %3792 = vmatpush.msra.mxu0 0.0
        %3793 = vmatpush.msra.mxu0 0.0
        %3794 = vmatpush.msra.mxu0 0.0
        %3795 = vmatpush.msra.mxu0 0.0
        %3796 = vmatpush.msra.mxu0 0.0
        %3797 = vmatpush.msra.mxu0 0.0
        %3798 = vmatpush.msra.mxu0 0.0
        %3799 = vmatpush.msra.mxu0 0.0
        %3800 = vmatpush.msra.mxu0 0.0
        %3801 = vmatpush.msra.mxu0 0.0
        %3802 = vmatpush.msra.mxu0 0.0
        %3803 = vmatpush.msra.mxu0 %v3790
        %3804 = vmatpush.msra.mxu0 %v3691
        %3805 = vmatpush.msra.mxu0 %v3690
        %3806 = vmatpush.msra.mxu0 %v3689
        %3807 = vmatpush.msra.mxu0 %v3688
        %3808 = vmatmul.f32.gmra.mxu0 %v3694
        %v3809 = vpop.f32.mrf.mxu0
        %v3810 = vadd.f32 0.0, %v3809
        %3811 = vmatmul.f32.gmra.mxu0 %v3697
        %v3812 = vpop.f32.mrf.mxu0
        %v3813 = vadd.f32 0.0, %v3812
        %3814 = vmatmul.f32.gmra.mxu0 %v3700
        %v3815 = vpop.f32.mrf.mxu0
        %v3816 = vadd.f32 0.0, %v3815
        %3817 = vmatmul.f32.gmra.mxu0 %v3703
        %v3818 = vpop.f32.mrf.mxu0
        %v3819 = vadd.f32 0.0, %v3818
        %3820 = vmatmul.f32.gmra.mxu0 %v3706
        %v3821 = vpop.f32.mrf.mxu0
        %v3822 = vadd.f32 0.0, %v3821
        %3823 = vmatmul.f32.gmra.mxu0 %v3709
        %v3824 = vpop.f32.mrf.mxu0
        %v3825 = vadd.f32 0.0, %v3824
        %3826 = vmatmul.f32.gmra.mxu0 %v3712
        %v3827 = vpop.f32.mrf.mxu0
        %v3828 = vadd.f32 0.0, %v3827
        %3829 = vmatmul.f32.gmra.mxu0 %v3715
        %v3830 = vpop.f32.mrf.mxu0
        %v3831 = vadd.f32 0.0, %v3830
        %3832 = vmatmul.f32.gmra.mxu0 %v3718
        %v3833 = vpop.f32.mrf.mxu0
        %v3834 = vadd.f32 0.0, %v3833
        %3835 = vmatmul.f32.gmra.mxu0 %v3721
        %v3836 = vpop.f32.mrf.mxu0
        %v3837 = vadd.f32 0.0, %v3836
        %3838 = vmatmul.f32.gmra.mxu0 %v3724
        %v3839 = vpop.f32.mrf.mxu0
        %v3840 = vadd.f32 0.0, %v3839
        %3841 = vmatmul.f32.gmra.mxu0 %v3727
        %v3842 = vpop.f32.mrf.mxu0
        %v3843 = vadd.f32 0.0, %v3842
        %3844 = vmatmul.f32.gmra.mxu0 %v3730
        %v3845 = vpop.f32.mrf.mxu0
        %v3846 = vadd.f32 0.0, %v3845
        %3847 = vmatmul.f32.gmra.mxu0 %v3733
        %v3848 = vpop.f32.mrf.mxu0
        %v3849 = vadd.f32 0.0, %v3848
        %3850 = vmatmul.f32.gmra.mxu0 %v3736
        %v3851 = vpop.f32.mrf.mxu0
        %v3852 = vadd.f32 0.0, %v3851
        %3853 = vmatmul.f32.gmra.mxu0 %v3739
        %v3854 = vpop.f32.mrf.mxu0
        %v3855 = vadd.f32 0.0, %v3854
        %3856 = vmatmul.f32.gmra.mxu0 %v3742
        %v3857 = vpop.f32.mrf.mxu0
        %v3858 = vadd.f32 0.0, %v3857
        %3859 = vmatmul.f32.gmra.mxu0 %v3745
        %v3860 = vpop.f32.mrf.mxu0
        %v3861 = vadd.f32 0.0, %v3860
        %3862 = vmatmul.f32.gmra.mxu0 %v3748
        %v3863 = vpop.f32.mrf.mxu0
        %v3864 = vadd.f32 0.0, %v3863
        %3865 = vmatmul.f32.gmra.mxu0 %v3751
        %v3866 = vpop.f32.mrf.mxu0
        %v3867 = vadd.f32 0.0, %v3866
        %3868 = vmatmul.f32.gmra.mxu0 %v3754
        %v3869 = vpop.f32.mrf.mxu0
        %v3870 = vadd.f32 0.0, %v3869
        %3871 = vmatmul.f32.gmra.mxu0 %v3757
        %v3872 = vpop.f32.mrf.mxu0
        %v3873 = vadd.f32 0.0, %v3872
        %3874 = vmatmul.f32.gmra.mxu0 %v3760
        %v3875 = vpop.f32.mrf.mxu0
        %v3876 = vadd.f32 0.0, %v3875
        %3877 = vmatmul.f32.gmra.mxu0 %v3763
        %v3878 = vpop.f32.mrf.mxu0
        %v3879 = vadd.f32 0.0, %v3878
        %3880 = vmatmul.f32.gmra.mxu0 %v3766
        %v3881 = vpop.f32.mrf.mxu0
        %v3882 = vadd.f32 0.0, %v3881
        %3883 = vmatmul.f32.gmra.mxu0 %v3769
        %v3884 = vpop.f32.mrf.mxu0
        %v3885 = vadd.f32 0.0, %v3884
        %3886 = vmatmul.f32.gmra.mxu0 %v3772
        %v3887 = vpop.f32.mrf.mxu0
        %v3888 = vadd.f32 0.0, %v3887
        %3889 = vmatmul.f32.gmra.mxu0 %v3775
        %v3890 = vpop.f32.mrf.mxu0
        %v3891 = vadd.f32 0.0, %v3890
        %3892 = vmatmul.f32.gmra.mxu0 %v3778
        %v3893 = vpop.f32.mrf.mxu0
        %v3894 = vadd.f32 0.0, %v3893
        %3895 = vmatmul.f32.gmra.mxu0 %v3781
        %v3896 = vpop.f32.mrf.mxu0
        %v3897 = vadd.f32 0.0, %v3896
        %3898 = vmatmul.f32.gmra.mxu0 %v3784
        %v3899 = vpop.f32.mrf.mxu0
        %v3900 = vadd.f32 0.0, %v3899
        %3901 = vmatmul.f32.gmra.mxu0 %v3787
        %v3902 = vpop.f32.mrf.mxu0
        %v3903 = vadd.f32 0.0, %v3902
        %3904 = vdwg.mxu0
        %v3905 = vadd.f32 %v3560, %v3810
        %v3906 = vadd.f32 %v3563, %v3813
        %v3907 = vadd.f32 %v3566, %v3816
        %v3908 = vadd.f32 %v3569, %v3819
        %v3909 = vadd.f32 %v3572, %v3822
        %v3910 = vadd.f32 %v3575, %v3825
        %v3911 = vadd.f32 %v3578, %v3828
        %v3912 = vadd.f32 %v3581, %v3831
        %v3913 = vadd.f32 %v3584, %v3834
        %v3914 = vadd.f32 %v3587, %v3837
        %v3915 = vadd.f32 %v3590, %v3840
        %v3916 = vadd.f32 %v3593, %v3843
        %v3917 = vadd.f32 %v3596, %v3846
        %v3918 = vadd.f32 %v3599, %v3849
        %v3919 = vadd.f32 %v3602, %v3852
        %v3920 = vadd.f32 %v3605, %v3855
        %v3921 = vadd.f32 %v3608, %v3858
        %v3922 = vadd.f32 %v3611, %v3861
        %v3923 = vadd.f32 %v3614, %v3864
        %v3924 = vadd.f32 %v3617, %v3867
        %v3925 = vadd.f32 %v3620, %v3870
        %v3926 = vadd.f32 %v3623, %v3873
        %v3927 = vadd.f32 %v3626, %v3876
        %v3928 = vadd.f32 %v3629, %v3879
        %v3929 = vadd.f32 %v3632, %v3882
        %v3930 = vadd.f32 %v3635, %v3885
        %v3931 = vadd.f32 %v3638, %v3888
        %v3932 = vadd.f32 %v3641, %v3891
        %v3933 = vadd.f32 %v3644, %v3894
        %v3934 = vadd.f32 %v3647, %v3897
        %v3935 = vadd.f32 %v3650, %v3900
        %v3936 = vadd.f32 %v3653, %v3903
        %v3937 = vld [vmem:[%s2928] sm:$0xff]
        %v3938 = vld [vmem:[%s2928 + $0x8] sm:$0xff]
        %v3939 = vld [vmem:[%s2928 + $0x18] sm:$0xff]
        %v3940 = vld [vmem:[%s2928 + $0x20] sm:$0xff]
        %v3941 = vld [vmem:[%s2928 + $0x30] sm:$0xff]
        %v3942 = vld [vmem:[%s2928 + $0x38] sm:$0xff]
        %v3943 = vld [vmem:[%s2928 + $0x48] sm:$0xff]
        %v3944 = vld [vmem:[%s2928 + $0x50] sm:$0xff]
        %v3945 = vld [vmem:[%s2928 + $0x60] sm:$0xff]
        %v3946 = vld [vmem:[%s2928 + $0x68] sm:$0xff]
        %v3947 = vld [vmem:[%s2928 + $0x78] sm:$0xff]
        %v3948 = vld [vmem:[%s2928 + $0x80] sm:$0xff]
        %v3949 = vld [vmem:[%s2928 + $0x90] sm:$0xff]
        %v3950 = vld [vmem:[%s2928 + $0x98] sm:$0xff]
        %v3951 = vld [vmem:[%s2928 + $0xa8] sm:$0xff]
        %v3952 = vld [vmem:[%s2928 + $0xb0] sm:$0xff]
        %v3953 = vld [vmem:[%s2928 + $0xc0] sm:$0xff]
        %v3954 = vld [vmem:[%s2928 + $0xc8] sm:$0xff]
        %v3955 = vld [vmem:[%s2928 + $0xd8] sm:$0xff]
        %v3956 = vld [vmem:[%s2928 + $0xe0] sm:$0xff]
        %v3957 = vld [vmem:[%s2928 + $0xf0] sm:$0xff]
        %v3958 = vld [vmem:[%s2928 + $0xf8] sm:$0xff]
        %v3959 = vld [vmem:[%s2928 + $0x108] sm:$0xff]
        %v3960 = vld [vmem:[%s2928 + $0x110] sm:$0xff]
        %v3961 = vld [vmem:[%s2928 + $0x120] sm:$0xff]
        %v3962 = vld [vmem:[%s2928 + $0x128] sm:$0xff]
        %v3963 = vld [vmem:[%s2928 + $0x138] sm:$0xff]
        %v3964 = vld [vmem:[%s2928 + $0x140] sm:$0xff]
        %v3965 = vld [vmem:[%s2928 + $0x150] sm:$0xff]
        %v3966 = vld [vmem:[%s2928 + $0x158] sm:$0xff]
        %v3967 = vld [vmem:[%s2928 + $0x168] sm:$0xff]
        %v3968 = vld [vmem:[%s2928 + $0x170] sm:$0xff]
        %s3969 = scalar_lea.vmem %s4, 120
        %v3970 = vld [vmem:[%s3969] sm:$0xff]
        %v3971 = vld [vmem:[%s3969 + $0x8] sm:$0xff]
        %v3972 = vld [vmem:[%s3969 + $0x10] sm:$0xff]
        %v3973 = vld [vmem:[%s3969 + $0x18] sm:$0xff]
        %v3974 = vld [vmem:[%s3969 + $0x20] sm:$0x3]
        %v3976 = vsel %vm2872, %v3937, 0
        %v3979 = vsel %vm2872, %v3938, 0
        %v3982 = vsel %vm2872, %v3939, 0
        %v3985 = vsel %vm2872, %v3940, 0
        %v3988 = vsel %vm2872, %v3941, 0
        %v3991 = vsel %vm2872, %v3942, 0
        %v3994 = vsel %vm2872, %v3943, 0
        %v3997 = vsel %vm2872, %v3944, 0
        %v4000 = vsel %vm2872, %v3945, 0
        %v4003 = vsel %vm2872, %v3946, 0
        %v4006 = vsel %vm2872, %v3947, 0
        %v4009 = vsel %vm2872, %v3948, 0
        %v4012 = vsel %vm2872, %v3949, 0
        %v4015 = vsel %vm2872, %v3950, 0
        %v4018 = vsel %vm2872, %v3951, 0
        %v4021 = vsel %vm2872, %v3952, 0
        %v4024 = vsel %vm2872, %v3953, 0
        %v4027 = vsel %vm2872, %v3954, 0
        %v4030 = vsel %vm2872, %v3955, 0
        %v4033 = vsel %vm2872, %v3956, 0
        %v4036 = vsel %vm2872, %v3957, 0
        %v4039 = vsel %vm2872, %v3958, 0
        %v4042 = vsel %vm2872, %v3959, 0
        %v4045 = vsel %vm2872, %v3960, 0
        %v4048 = vsel %vm2872, %v3961, 0
        %v4051 = vsel %vm2872, %v3962, 0
        %v4054 = vsel %vm2872, %v3963, 0
        %v4057 = vsel %vm2872, %v3964, 0
        %v4060 = vsel %vm2872, %v3965, 0
        %v4063 = vsel %vm2872, %v3966, 0
        %v4066 = vsel %vm2872, %v3967, 0
        %v4069 = vsel %vm2872, %v3968, 0
        %v4072 = vsel %vm3326, %v3974, 0
        %4074 = vmatpush.msra.mxu0 0.0
        %4075 = vmatpush.msra.mxu0 0.0
        %4076 = vmatpush.msra.mxu0 0.0
        %4077 = vmatpush.msra.mxu0 0.0
        %4078 = vmatpush.msra.mxu0 0.0
        %4079 = vmatpush.msra.mxu0 0.0
        %4080 = vmatpush.msra.mxu0 0.0
        %4081 = vmatpush.msra.mxu0 0.0
        %4082 = vmatpush.msra.mxu0 0.0
        %4083 = vmatpush.msra.mxu0 0.0
        %4084 = vmatpush.msra.mxu0 0.0
        %4085 = vmatpush.msra.mxu0 %v4072
        %4086 = vmatpush.msra.mxu0 %v3973
        %4087 = vmatpush.msra.mxu0 %v3972
        %4088 = vmatpush.msra.mxu0 %v3971
        %4089 = vmatpush.msra.mxu0 %v3970
        %4090 = vmatmul.f32.gmra.mxu0 %v3976
        %v4091 = vpop.f32.mrf.mxu0
        %v4092 = vadd.f32 0.0, %v4091
        %4093 = vmatmul.f32.gmra.mxu0 %v3979
        %v4094 = vpop.f32.mrf.mxu0
        %v4095 = vadd.f32 0.0, %v4094
        %4096 = vmatmul.f32.gmra.mxu0 %v3982
        %v4097 = vpop.f32.mrf.mxu0
        %v4098 = vadd.f32 0.0, %v4097
        %4099 = vmatmul.f32.gmra.mxu0 %v3985
        %v4100 = vpop.f32.mrf.mxu0
        %v4101 = vadd.f32 0.0, %v4100
        %4102 = vmatmul.f32.gmra.mxu0 %v3988
        %v4103 = vpop.f32.mrf.mxu0
        %v4104 = vadd.f32 0.0, %v4103
        %4105 = vmatmul.f32.gmra.mxu0 %v3991
        %v4106 = vpop.f32.mrf.mxu0
        %v4107 = vadd.f32 0.0, %v4106
        %4108 = vmatmul.f32.gmra.mxu0 %v3994
        %v4109 = vpop.f32.mrf.mxu0
        %v4110 = vadd.f32 0.0, %v4109
        %4111 = vmatmul.f32.gmra.mxu0 %v3997
        %v4112 = vpop.f32.mrf.mxu0
        %v4113 = vadd.f32 0.0, %v4112
        %4114 = vmatmul.f32.gmra.mxu0 %v4000
        %v4115 = vpop.f32.mrf.mxu0
        %v4116 = vadd.f32 0.0, %v4115
        %4117 = vmatmul.f32.gmra.mxu0 %v4003
        %v4118 = vpop.f32.mrf.mxu0
        %v4119 = vadd.f32 0.0, %v4118
        %4120 = vmatmul.f32.gmra.mxu0 %v4006
        %v4121 = vpop.f32.mrf.mxu0
        %v4122 = vadd.f32 0.0, %v4121
        %4123 = vmatmul.f32.gmra.mxu0 %v4009
        %v4124 = vpop.f32.mrf.mxu0
        %v4125 = vadd.f32 0.0, %v4124
        %4126 = vmatmul.f32.gmra.mxu0 %v4012
        %v4127 = vpop.f32.mrf.mxu0
        %v4128 = vadd.f32 0.0, %v4127
        %4129 = vmatmul.f32.gmra.mxu0 %v4015
        %v4130 = vpop.f32.mrf.mxu0
        %v4131 = vadd.f32 0.0, %v4130
        %4132 = vmatmul.f32.gmra.mxu0 %v4018
        %v4133 = vpop.f32.mrf.mxu0
        %v4134 = vadd.f32 0.0, %v4133
        %4135 = vmatmul.f32.gmra.mxu0 %v4021
        %v4136 = vpop.f32.mrf.mxu0
        %v4137 = vadd.f32 0.0, %v4136
        %4138 = vmatmul.f32.gmra.mxu0 %v4024
        %v4139 = vpop.f32.mrf.mxu0
        %v4140 = vadd.f32 0.0, %v4139
        %4141 = vmatmul.f32.gmra.mxu0 %v4027
        %v4142 = vpop.f32.mrf.mxu0
        %v4143 = vadd.f32 0.0, %v4142
        %4144 = vmatmul.f32.gmra.mxu0 %v4030
        %v4145 = vpop.f32.mrf.mxu0
        %v4146 = vadd.f32 0.0, %v4145
        %4147 = vmatmul.f32.gmra.mxu0 %v4033
        %v4148 = vpop.f32.mrf.mxu0
        %v4149 = vadd.f32 0.0, %v4148
        %4150 = vmatmul.f32.gmra.mxu0 %v4036
        %v4151 = vpop.f32.mrf.mxu0
        %v4152 = vadd.f32 0.0, %v4151
        %4153 = vmatmul.f32.gmra.mxu0 %v4039
        %v4154 = vpop.f32.mrf.mxu0
        %v4155 = vadd.f32 0.0, %v4154
        %4156 = vmatmul.f32.gmra.mxu0 %v4042
        %v4157 = vpop.f32.mrf.mxu0
        %v4158 = vadd.f32 0.0, %v4157
        %4159 = vmatmul.f32.gmra.mxu0 %v4045
        %v4160 = vpop.f32.mrf.mxu0
        %v4161 = vadd.f32 0.0, %v4160
        %4162 = vmatmul.f32.gmra.mxu0 %v4048
        %v4163 = vpop.f32.mrf.mxu0
        %v4164 = vadd.f32 0.0, %v4163
        %4165 = vmatmul.f32.gmra.mxu0 %v4051
        %v4166 = vpop.f32.mrf.mxu0
        %v4167 = vadd.f32 0.0, %v4166
        %4168 = vmatmul.f32.gmra.mxu0 %v4054
        %v4169 = vpop.f32.mrf.mxu0
        %v4170 = vadd.f32 0.0, %v4169
        %4171 = vmatmul.f32.gmra.mxu0 %v4057
        %v4172 = vpop.f32.mrf.mxu0
        %v4173 = vadd.f32 0.0, %v4172
        %4174 = vmatmul.f32.gmra.mxu0 %v4060
        %v4175 = vpop.f32.mrf.mxu0
        %v4176 = vadd.f32 0.0, %v4175
        %4177 = vmatmul.f32.gmra.mxu0 %v4063
        %v4178 = vpop.f32.mrf.mxu0
        %v4179 = vadd.f32 0.0, %v4178
        %4180 = vmatmul.f32.gmra.mxu0 %v4066
        %v4181 = vpop.f32.mrf.mxu0
        %v4182 = vadd.f32 0.0, %v4181
        %4183 = vmatmul.f32.gmra.mxu0 %v4069
        %v4184 = vpop.f32.mrf.mxu0
        %v4185 = vadd.f32 0.0, %v4184
        %4186 = vdwg.mxu0
        %v4187 = vadd.f32 %v3905, %v4092
        %v4188 = vadd.f32 %v3906, %v4095
        %v4189 = vadd.f32 %v3907, %v4098
        %v4190 = vadd.f32 %v3908, %v4101
        %v4191 = vadd.f32 %v3909, %v4104
        %v4192 = vadd.f32 %v3910, %v4107
        %v4193 = vadd.f32 %v3911, %v4110
        %v4194 = vadd.f32 %v3912, %v4113
        %v4195 = vadd.f32 %v3913, %v4116
        %v4196 = vadd.f32 %v3914, %v4119
        %v4197 = vadd.f32 %v3915, %v4122
        %v4198 = vadd.f32 %v3916, %v4125
        %v4199 = vadd.f32 %v3917, %v4128
        %v4200 = vadd.f32 %v3918, %v4131
        %v4201 = vadd.f32 %v3919, %v4134
        %v4202 = vadd.f32 %v3920, %v4137
        %v4203 = vadd.f32 %v3921, %v4140
        %v4204 = vadd.f32 %v3922, %v4143
        %v4205 = vadd.f32 %v3923, %v4146
        %v4206 = vadd.f32 %v3924, %v4149
        %v4207 = vadd.f32 %v3925, %v4152
        %v4208 = vadd.f32 %v3926, %v4155
        %v4209 = vadd.f32 %v3927, %v4158
        %v4210 = vadd.f32 %v3928, %v4161
        %v4211 = vadd.f32 %v3929, %v4164
        %v4212 = vadd.f32 %v3930, %v4167
        %v4213 = vadd.f32 %v3931, %v4170
        %v4214 = vadd.f32 %v3932, %v4173
        %v4215 = vadd.f32 %v3933, %v4176
        %v4216 = vadd.f32 %v3934, %v4179
        %v4217 = vadd.f32 %v3935, %v4182
        %v4218 = vadd.f32 %v3936, %v4185
        %v4219 = vld [vmem:[%s2928 + $0x1] sm:$0xff]
        %v4220 = vld [vmem:[%s2928 + $0x9] sm:$0xff]
        %v4221 = vld [vmem:[%s2928 + $0x19] sm:$0xff]
        %v4222 = vld [vmem:[%s2928 + $0x21] sm:$0xff]
        %v4223 = vld [vmem:[%s2928 + $0x31] sm:$0xff]
        %v4224 = vld [vmem:[%s2928 + $0x39] sm:$0xff]
        %v4225 = vld [vmem:[%s2928 + $0x49] sm:$0xff]
        %v4226 = vld [vmem:[%s2928 + $0x51] sm:$0xff]
        %v4227 = vld [vmem:[%s2928 + $0x61] sm:$0xff]
        %v4228 = vld [vmem:[%s2928 + $0x69] sm:$0xff]
        %v4229 = vld [vmem:[%s2928 + $0x79] sm:$0xff]
        %v4230 = vld [vmem:[%s2928 + $0x81] sm:$0xff]
        %v4231 = vld [vmem:[%s2928 + $0x91] sm:$0xff]
        %v4232 = vld [vmem:[%s2928 + $0x99] sm:$0xff]
        %v4233 = vld [vmem:[%s2928 + $0xa9] sm:$0xff]
        %v4234 = vld [vmem:[%s2928 + $0xb1] sm:$0xff]
        %v4235 = vld [vmem:[%s2928 + $0xc1] sm:$0xff]
        %v4236 = vld [vmem:[%s2928 + $0xc9] sm:$0xff]
        %v4237 = vld [vmem:[%s2928 + $0xd9] sm:$0xff]
        %v4238 = vld [vmem:[%s2928 + $0xe1] sm:$0xff]
        %v4239 = vld [vmem:[%s2928 + $0xf1] sm:$0xff]
        %v4240 = vld [vmem:[%s2928 + $0xf9] sm:$0xff]
        %v4241 = vld [vmem:[%s2928 + $0x109] sm:$0xff]
        %v4242 = vld [vmem:[%s2928 + $0x111] sm:$0xff]
        %v4243 = vld [vmem:[%s2928 + $0x121] sm:$0xff]
        %v4244 = vld [vmem:[%s2928 + $0x129] sm:$0xff]
        %v4245 = vld [vmem:[%s2928 + $0x139] sm:$0xff]
        %v4246 = vld [vmem:[%s2928 + $0x141] sm:$0xff]
        %v4247 = vld [vmem:[%s2928 + $0x151] sm:$0xff]
        %v4248 = vld [vmem:[%s2928 + $0x159] sm:$0xff]
        %v4249 = vld [vmem:[%s2928 + $0x169] sm:$0xff]
        %v4250 = vld [vmem:[%s2928 + $0x171] sm:$0xff]
        %s4251 = scalar_lea.vmem %s4, 160
        %v4252 = vld [vmem:[%s4251] sm:$0xff]
        %v4253 = vld [vmem:[%s4251 + $0x8] sm:$0xff]
        %v4254 = vld [vmem:[%s4251 + $0x10] sm:$0xff]
        %v4255 = vld [vmem:[%s4251 + $0x18] sm:$0xff]
        %v4256 = vld [vmem:[%s4251 + $0x20] sm:$0x3]
        %v4258 = vsel %vm2872, %v4219, 0
        %v4261 = vsel %vm2872, %v4220, 0
        %v4264 = vsel %vm2872, %v4221, 0
        %v4267 = vsel %vm2872, %v4222, 0
        %v4270 = vsel %vm2872, %v4223, 0
        %v4273 = vsel %vm2872, %v4224, 0
        %v4276 = vsel %vm2872, %v4225, 0
        %v4279 = vsel %vm2872, %v4226, 0
        %v4282 = vsel %vm2872, %v4227, 0
        %v4285 = vsel %vm2872, %v4228, 0
        %v4288 = vsel %vm2872, %v4229, 0
        %v4291 = vsel %vm2872, %v4230, 0
        %v4294 = vsel %vm2872, %v4231, 0
        %v4297 = vsel %vm2872, %v4232, 0
        %v4300 = vsel %vm2872, %v4233, 0
        %v4303 = vsel %vm2872, %v4234, 0
        %v4306 = vsel %vm2872, %v4235, 0
        %v4309 = vsel %vm2872, %v4236, 0
        %v4312 = vsel %vm2872, %v4237, 0
        %v4315 = vsel %vm2872, %v4238, 0
        %v4318 = vsel %vm2872, %v4239, 0
        %v4321 = vsel %vm2872, %v4240, 0
        %v4324 = vsel %vm2872, %v4241, 0
        %v4327 = vsel %vm2872, %v4242, 0
        %v4330 = vsel %vm2872, %v4243, 0
        %v4333 = vsel %vm2872, %v4244, 0
        %v4336 = vsel %vm2872, %v4245, 0
        %v4339 = vsel %vm2872, %v4246, 0
        %v4342 = vsel %vm2872, %v4247, 0
        %v4345 = vsel %vm2872, %v4248, 0
        %v4348 = vsel %vm2872, %v4249, 0
        %v4351 = vsel %vm2872, %v4250, 0
        %v4354 = vsel %vm3326, %v4256, 0
        %4356 = vmatpush.msra.mxu0 0.0
        %4357 = vmatpush.msra.mxu0 0.0
        %4358 = vmatpush.msra.mxu0 0.0
        %4359 = vmatpush.msra.mxu0 0.0
        %4360 = vmatpush.msra.mxu0 0.0
        %4361 = vmatpush.msra.mxu0 0.0
        %4362 = vmatpush.msra.mxu0 0.0
        %4363 = vmatpush.msra.mxu0 0.0
        %4364 = vmatpush.msra.mxu0 0.0
        %4365 = vmatpush.msra.mxu0 0.0
        %4366 = vmatpush.msra.mxu0 0.0
        %4367 = vmatpush.msra.mxu0 %v4354
        %4368 = vmatpush.msra.mxu0 %v4255
        %4369 = vmatpush.msra.mxu0 %v4254
        %4370 = vmatpush.msra.mxu0 %v4253
        %4371 = vmatpush.msra.mxu0 %v4252
        %4372 = vmatmul.f32.gmra.mxu0 %v4258
        %v4373 = vpop.f32.mrf.mxu0
        %v4374 = vadd.f32 0.0, %v4373
        %4375 = vmatmul.f32.gmra.mxu0 %v4261
        %v4376 = vpop.f32.mrf.mxu0
        %v4377 = vadd.f32 0.0, %v4376
        %4378 = vmatmul.f32.gmra.mxu0 %v4264
        %v4379 = vpop.f32.mrf.mxu0
        %v4380 = vadd.f32 0.0, %v4379
        %4381 = vmatmul.f32.gmra.mxu0 %v4267
        %v4382 = vpop.f32.mrf.mxu0
        %v4383 = vadd.f32 0.0, %v4382
        %4384 = vmatmul.f32.gmra.mxu0 %v4270
        %v4385 = vpop.f32.mrf.mxu0
        %v4386 = vadd.f32 0.0, %v4385
        %4387 = vmatmul.f32.gmra.mxu0 %v4273
        %v4388 = vpop.f32.mrf.mxu0
        %v4389 = vadd.f32 0.0, %v4388
        %4390 = vmatmul.f32.gmra.mxu0 %v4276
        %v4391 = vpop.f32.mrf.mxu0
        %v4392 = vadd.f32 0.0, %v4391
        %4393 = vmatmul.f32.gmra.mxu0 %v4279
        %v4394 = vpop.f32.mrf.mxu0
        %v4395 = vadd.f32 0.0, %v4394
        %4396 = vmatmul.f32.gmra.mxu0 %v4282
        %v4397 = vpop.f32.mrf.mxu0
        %v4398 = vadd.f32 0.0, %v4397
        %4399 = vmatmul.f32.gmra.mxu0 %v4285
        %v4400 = vpop.f32.mrf.mxu0
        %v4401 = vadd.f32 0.0, %v4400
        %4402 = vmatmul.f32.gmra.mxu0 %v4288
        %v4403 = vpop.f32.mrf.mxu0
        %v4404 = vadd.f32 0.0, %v4403
        %4405 = vmatmul.f32.gmra.mxu0 %v4291
        %v4406 = vpop.f32.mrf.mxu0
        %v4407 = vadd.f32 0.0, %v4406
        %4408 = vmatmul.f32.gmra.mxu0 %v4294
        %v4409 = vpop.f32.mrf.mxu0
        %v4410 = vadd.f32 0.0, %v4409
        %4411 = vmatmul.f32.gmra.mxu0 %v4297
        %v4412 = vpop.f32.mrf.mxu0
        %v4413 = vadd.f32 0.0, %v4412
        %4414 = vmatmul.f32.gmra.mxu0 %v4300
        %v4415 = vpop.f32.mrf.mxu0
        %v4416 = vadd.f32 0.0, %v4415
        %4417 = vmatmul.f32.gmra.mxu0 %v4303
        %v4418 = vpop.f32.mrf.mxu0
        %v4419 = vadd.f32 0.0, %v4418
        %4420 = vmatmul.f32.gmra.mxu0 %v4306
        %v4421 = vpop.f32.mrf.mxu0
        %v4422 = vadd.f32 0.0, %v4421
        %4423 = vmatmul.f32.gmra.mxu0 %v4309
        %v4424 = vpop.f32.mrf.mxu0
        %v4425 = vadd.f32 0.0, %v4424
        %4426 = vmatmul.f32.gmra.mxu0 %v4312
        %v4427 = vpop.f32.mrf.mxu0
        %v4428 = vadd.f32 0.0, %v4427
        %4429 = vmatmul.f32.gmra.mxu0 %v4315
        %v4430 = vpop.f32.mrf.mxu0
        %v4431 = vadd.f32 0.0, %v4430
        %4432 = vmatmul.f32.gmra.mxu0 %v4318
        %v4433 = vpop.f32.mrf.mxu0
        %v4434 = vadd.f32 0.0, %v4433
        %4435 = vmatmul.f32.gmra.mxu0 %v4321
        %v4436 = vpop.f32.mrf.mxu0
        %v4437 = vadd.f32 0.0, %v4436
        %4438 = vmatmul.f32.gmra.mxu0 %v4324
        %v4439 = vpop.f32.mrf.mxu0
        %v4440 = vadd.f32 0.0, %v4439
        %4441 = vmatmul.f32.gmra.mxu0 %v4327
        %v4442 = vpop.f32.mrf.mxu0
        %v4443 = vadd.f32 0.0, %v4442
        %4444 = vmatmul.f32.gmra.mxu0 %v4330
        %v4445 = vpop.f32.mrf.mxu0
        %v4446 = vadd.f32 0.0, %v4445
        %4447 = vmatmul.f32.gmra.mxu0 %v4333
        %v4448 = vpop.f32.mrf.mxu0
        %v4449 = vadd.f32 0.0, %v4448
        %4450 = vmatmul.f32.gmra.mxu0 %v4336
        %v4451 = vpop.f32.mrf.mxu0
        %v4452 = vadd.f32 0.0, %v4451
        %4453 = vmatmul.f32.gmra.mxu0 %v4339
        %v4454 = vpop.f32.mrf.mxu0
        %v4455 = vadd.f32 0.0, %v4454
        %4456 = vmatmul.f32.gmra.mxu0 %v4342
        %v4457 = vpop.f32.mrf.mxu0
        %v4458 = vadd.f32 0.0, %v4457
        %4459 = vmatmul.f32.gmra.mxu0 %v4345
        %v4460 = vpop.f32.mrf.mxu0
        %v4461 = vadd.f32 0.0, %v4460
        %4462 = vmatmul.f32.gmra.mxu0 %v4348
        %v4463 = vpop.f32.mrf.mxu0
        %v4464 = vadd.f32 0.0, %v4463
        %4465 = vmatmul.f32.gmra.mxu0 %v4351
        %v4466 = vpop.f32.mrf.mxu0
        %v4467 = vadd.f32 0.0, %v4466
        %4468 = vdwg.mxu0
        %v4469 = vadd.f32 %v4187, %v4374
        %v4470 = vadd.f32 %v4188, %v4377
        %v4471 = vadd.f32 %v4189, %v4380
        %v4472 = vadd.f32 %v4190, %v4383
        %v4473 = vadd.f32 %v4191, %v4386
        %v4474 = vadd.f32 %v4192, %v4389
        %v4475 = vadd.f32 %v4193, %v4392
        %v4476 = vadd.f32 %v4194, %v4395
        %v4477 = vadd.f32 %v4195, %v4398
        %v4478 = vadd.f32 %v4196, %v4401
        %v4479 = vadd.f32 %v4197, %v4404
        %v4480 = vadd.f32 %v4198, %v4407
        %v4481 = vadd.f32 %v4199, %v4410
        %v4482 = vadd.f32 %v4200, %v4413
        %v4483 = vadd.f32 %v4201, %v4416
        %v4484 = vadd.f32 %v4202, %v4419
        %v4485 = vadd.f32 %v4203, %v4422
        %v4486 = vadd.f32 %v4204, %v4425
        %v4487 = vadd.f32 %v4205, %v4428
        %v4488 = vadd.f32 %v4206, %v4431
        %v4489 = vadd.f32 %v4207, %v4434
        %v4490 = vadd.f32 %v4208, %v4437
        %v4491 = vadd.f32 %v4209, %v4440
        %v4492 = vadd.f32 %v4210, %v4443
        %v4493 = vadd.f32 %v4211, %v4446
        %v4494 = vadd.f32 %v4212, %v4449
        %v4495 = vadd.f32 %v4213, %v4452
        %v4496 = vadd.f32 %v4214, %v4455
        %v4497 = vadd.f32 %v4215, %v4458
        %v4498 = vadd.f32 %v4216, %v4461
        %v4499 = vadd.f32 %v4217, %v4464
        %v4500 = vadd.f32 %v4218, %v4467
        %v4501 = vld [vmem:[%s2928 + $0x2] sm:$0xff]
        %v4502 = vld [vmem:[%s2928 + $0xa] sm:$0xff]
        %v4503 = vld [vmem:[%s2928 + $0x1a] sm:$0xff]
        %v4504 = vld [vmem:[%s2928 + $0x22] sm:$0xff]
        %v4505 = vld [vmem:[%s2928 + $0x32] sm:$0xff]
        %v4506 = vld [vmem:[%s2928 + $0x3a] sm:$0xff]
        %v4507 = vld [vmem:[%s2928 + $0x4a] sm:$0xff]
        %v4508 = vld [vmem:[%s2928 + $0x52] sm:$0xff]
        %v4509 = vld [vmem:[%s2928 + $0x62] sm:$0xff]
        %v4510 = vld [vmem:[%s2928 + $0x6a] sm:$0xff]
        %v4511 = vld [vmem:[%s2928 + $0x7a] sm:$0xff]
        %v4512 = vld [vmem:[%s2928 + $0x82] sm:$0xff]
        %v4513 = vld [vmem:[%s2928 + $0x92] sm:$0xff]
        %v4514 = vld [vmem:[%s2928 + $0x9a] sm:$0xff]
        %v4515 = vld [vmem:[%s2928 + $0xaa] sm:$0xff]
        %v4516 = vld [vmem:[%s2928 + $0xb2] sm:$0xff]
        %v4517 = vld [vmem:[%s2928 + $0xc2] sm:$0xff]
        %v4518 = vld [vmem:[%s2928 + $0xca] sm:$0xff]
        %v4519 = vld [vmem:[%s2928 + $0xda] sm:$0xff]
        %v4520 = vld [vmem:[%s2928 + $0xe2] sm:$0xff]
        %v4521 = vld [vmem:[%s2928 + $0xf2] sm:$0xff]
        %v4522 = vld [vmem:[%s2928 + $0xfa] sm:$0xff]
        %v4523 = vld [vmem:[%s2928 + $0x10a] sm:$0xff]
        %v4524 = vld [vmem:[%s2928 + $0x112] sm:$0xff]
        %v4525 = vld [vmem:[%s2928 + $0x122] sm:$0xff]
        %v4526 = vld [vmem:[%s2928 + $0x12a] sm:$0xff]
        %v4527 = vld [vmem:[%s2928 + $0x13a] sm:$0xff]
        %v4528 = vld [vmem:[%s2928 + $0x142] sm:$0xff]
        %v4529 = vld [vmem:[%s2928 + $0x152] sm:$0xff]
        %v4530 = vld [vmem:[%s2928 + $0x15a] sm:$0xff]
        %v4531 = vld [vmem:[%s2928 + $0x16a] sm:$0xff]
        %v4532 = vld [vmem:[%s2928 + $0x172] sm:$0xff]
        %s4533 = scalar_lea.vmem %s4, 200
        %v4534 = vld [vmem:[%s4533] sm:$0xff]
        %v4535 = vld [vmem:[%s4533 + $0x8] sm:$0xff]
        %v4536 = vld [vmem:[%s4533 + $0x10] sm:$0xff]
        %v4537 = vld [vmem:[%s4533 + $0x18] sm:$0xff]
        %v4538 = vld [vmem:[%s4533 + $0x20] sm:$0x3]
        %v4540 = vsel %vm2872, %v4501, 0
        %v4543 = vsel %vm2872, %v4502, 0
        %v4546 = vsel %vm2872, %v4503, 0
        %v4549 = vsel %vm2872, %v4504, 0
        %v4552 = vsel %vm2872, %v4505, 0
        %v4555 = vsel %vm2872, %v4506, 0
        %v4558 = vsel %vm2872, %v4507, 0
        %v4561 = vsel %vm2872, %v4508, 0
        %v4564 = vsel %vm2872, %v4509, 0
        %v4567 = vsel %vm2872, %v4510, 0
        %v4570 = vsel %vm2872, %v4511, 0
        %v4573 = vsel %vm2872, %v4512, 0
        %v4576 = vsel %vm2872, %v4513, 0
        %v4579 = vsel %vm2872, %v4514, 0
        %v4582 = vsel %vm2872, %v4515, 0
        %v4585 = vsel %vm2872, %v4516, 0
        %v4588 = vsel %vm2872, %v4517, 0
        %v4591 = vsel %vm2872, %v4518, 0
        %v4594 = vsel %vm2872, %v4519, 0
        %v4597 = vsel %vm2872, %v4520, 0
        %v4600 = vsel %vm2872, %v4521, 0
        %v4603 = vsel %vm2872, %v4522, 0
        %v4606 = vsel %vm2872, %v4523, 0
        %v4609 = vsel %vm2872, %v4524, 0
        %v4612 = vsel %vm2872, %v4525, 0
        %v4615 = vsel %vm2872, %v4526, 0
        %v4618 = vsel %vm2872, %v4527, 0
        %v4621 = vsel %vm2872, %v4528, 0
        %v4624 = vsel %vm2872, %v4529, 0
        %v4627 = vsel %vm2872, %v4530, 0
        %v4630 = vsel %vm2872, %v4531, 0
        %v4633 = vsel %vm2872, %v4532, 0
        %v4636 = vsel %vm3326, %v4538, 0
        %4638 = vmatpush.msra.mxu0 0.0
        %4639 = vmatpush.msra.mxu0 0.0
        %4640 = vmatpush.msra.mxu0 0.0
        %4641 = vmatpush.msra.mxu0 0.0
        %4642 = vmatpush.msra.mxu0 0.0
        %4643 = vmatpush.msra.mxu0 0.0
        %4644 = vmatpush.msra.mxu0 0.0
        %4645 = vmatpush.msra.mxu0 0.0
        %4646 = vmatpush.msra.mxu0 0.0
        %4647 = vmatpush.msra.mxu0 0.0
        %4648 = vmatpush.msra.mxu0 0.0
        %4649 = vmatpush.msra.mxu0 %v4636
        %4650 = vmatpush.msra.mxu0 %v4537
        %4651 = vmatpush.msra.mxu0 %v4536
        %4652 = vmatpush.msra.mxu0 %v4535
        %4653 = vmatpush.msra.mxu0 %v4534
        %4654 = vmatmul.f32.gmra.mxu0 %v4540
        %v4655 = vpop.f32.mrf.mxu0
        %v4656 = vadd.f32 0.0, %v4655
        %4657 = vmatmul.f32.gmra.mxu0 %v4543
        %v4658 = vpop.f32.mrf.mxu0
        %v4659 = vadd.f32 0.0, %v4658
        %4660 = vmatmul.f32.gmra.mxu0 %v4546
        %v4661 = vpop.f32.mrf.mxu0
        %v4662 = vadd.f32 0.0, %v4661
        %4663 = vmatmul.f32.gmra.mxu0 %v4549
        %v4664 = vpop.f32.mrf.mxu0
        %v4665 = vadd.f32 0.0, %v4664
        %4666 = vmatmul.f32.gmra.mxu0 %v4552
        %v4667 = vpop.f32.mrf.mxu0
        %v4668 = vadd.f32 0.0, %v4667
        %4669 = vmatmul.f32.gmra.mxu0 %v4555
        %v4670 = vpop.f32.mrf.mxu0
        %v4671 = vadd.f32 0.0, %v4670
        %4672 = vmatmul.f32.gmra.mxu0 %v4558
        %v4673 = vpop.f32.mrf.mxu0
        %v4674 = vadd.f32 0.0, %v4673
        %4675 = vmatmul.f32.gmra.mxu0 %v4561
        %v4676 = vpop.f32.mrf.mxu0
        %v4677 = vadd.f32 0.0, %v4676
        %4678 = vmatmul.f32.gmra.mxu0 %v4564
        %v4679 = vpop.f32.mrf.mxu0
        %v4680 = vadd.f32 0.0, %v4679
        %4681 = vmatmul.f32.gmra.mxu0 %v4567
        %v4682 = vpop.f32.mrf.mxu0
        %v4683 = vadd.f32 0.0, %v4682
        %4684 = vmatmul.f32.gmra.mxu0 %v4570
        %v4685 = vpop.f32.mrf.mxu0
        %v4686 = vadd.f32 0.0, %v4685
        %4687 = vmatmul.f32.gmra.mxu0 %v4573
        %v4688 = vpop.f32.mrf.mxu0
        %v4689 = vadd.f32 0.0, %v4688
        %4690 = vmatmul.f32.gmra.mxu0 %v4576
        %v4691 = vpop.f32.mrf.mxu0
        %v4692 = vadd.f32 0.0, %v4691
        %4693 = vmatmul.f32.gmra.mxu0 %v4579
        %v4694 = vpop.f32.mrf.mxu0
        %v4695 = vadd.f32 0.0, %v4694
        %4696 = vmatmul.f32.gmra.mxu0 %v4582
        %v4697 = vpop.f32.mrf.mxu0
        %v4698 = vadd.f32 0.0, %v4697
        %4699 = vmatmul.f32.gmra.mxu0 %v4585
        %v4700 = vpop.f32.mrf.mxu0
        %v4701 = vadd.f32 0.0, %v4700
        %4702 = vmatmul.f32.gmra.mxu0 %v4588
        %v4703 = vpop.f32.mrf.mxu0
        %v4704 = vadd.f32 0.0, %v4703
        %4705 = vmatmul.f32.gmra.mxu0 %v4591
        %v4706 = vpop.f32.mrf.mxu0
        %v4707 = vadd.f32 0.0, %v4706
        %4708 = vmatmul.f32.gmra.mxu0 %v4594
        %v4709 = vpop.f32.mrf.mxu0
        %v4710 = vadd.f32 0.0, %v4709
        %4711 = vmatmul.f32.gmra.mxu0 %v4597
        %v4712 = vpop.f32.mrf.mxu0
        %v4713 = vadd.f32 0.0, %v4712
        %4714 = vmatmul.f32.gmra.mxu0 %v4600
        %v4715 = vpop.f32.mrf.mxu0
        %v4716 = vadd.f32 0.0, %v4715
        %4717 = vmatmul.f32.gmra.mxu0 %v4603
        %v4718 = vpop.f32.mrf.mxu0
        %v4719 = vadd.f32 0.0, %v4718
        %4720 = vmatmul.f32.gmra.mxu0 %v4606
        %v4721 = vpop.f32.mrf.mxu0
        %v4722 = vadd.f32 0.0, %v4721
        %4723 = vmatmul.f32.gmra.mxu0 %v4609
        %v4724 = vpop.f32.mrf.mxu0
        %v4725 = vadd.f32 0.0, %v4724
        %4726 = vmatmul.f32.gmra.mxu0 %v4612
        %v4727 = vpop.f32.mrf.mxu0
        %v4728 = vadd.f32 0.0, %v4727
        %4729 = vmatmul.f32.gmra.mxu0 %v4615
        %v4730 = vpop.f32.mrf.mxu0
        %v4731 = vadd.f32 0.0, %v4730
        %4732 = vmatmul.f32.gmra.mxu0 %v4618
        %v4733 = vpop.f32.mrf.mxu0
        %v4734 = vadd.f32 0.0, %v4733
        %4735 = vmatmul.f32.gmra.mxu0 %v4621
        %v4736 = vpop.f32.mrf.mxu0
        %v4737 = vadd.f32 0.0, %v4736
        %4738 = vmatmul.f32.gmra.mxu0 %v4624
        %v4739 = vpop.f32.mrf.mxu0
        %v4740 = vadd.f32 0.0, %v4739
        %4741 = vmatmul.f32.gmra.mxu0 %v4627
        %v4742 = vpop.f32.mrf.mxu0
        %v4743 = vadd.f32 0.0, %v4742
        %4744 = vmatmul.f32.gmra.mxu0 %v4630
        %v4745 = vpop.f32.mrf.mxu0
        %v4746 = vadd.f32 0.0, %v4745
        %4747 = vmatmul.f32.gmra.mxu0 %v4633
        %v4748 = vpop.f32.mrf.mxu0
        %v4749 = vadd.f32 0.0, %v4748
        %4750 = vdwg.mxu0
        %v4751 = vadd.f32 %v4469, %v4656
        %v4752 = vadd.f32 %v4470, %v4659
        %v4753 = vadd.f32 %v4471, %v4662
        %v4754 = vadd.f32 %v4472, %v4665
        %v4755 = vadd.f32 %v4473, %v4668
        %v4756 = vadd.f32 %v4474, %v4671
        %v4757 = vadd.f32 %v4475, %v4674
        %v4758 = vadd.f32 %v4476, %v4677
        %v4759 = vadd.f32 %v4477, %v4680
        %v4760 = vadd.f32 %v4478, %v4683
        %v4761 = vadd.f32 %v4479, %v4686
        %v4762 = vadd.f32 %v4480, %v4689
        %v4763 = vadd.f32 %v4481, %v4692
        %v4764 = vadd.f32 %v4482, %v4695
        %v4765 = vadd.f32 %v4483, %v4698
        %v4766 = vadd.f32 %v4484, %v4701
        %v4767 = vadd.f32 %v4485, %v4704
        %v4768 = vadd.f32 %v4486, %v4707
        %v4769 = vadd.f32 %v4487, %v4710
        %v4770 = vadd.f32 %v4488, %v4713
        %v4771 = vadd.f32 %v4489, %v4716
        %v4772 = vadd.f32 %v4490, %v4719
        %v4773 = vadd.f32 %v4491, %v4722
        %v4774 = vadd.f32 %v4492, %v4725
        %v4775 = vadd.f32 %v4493, %v4728
        %v4776 = vadd.f32 %v4494, %v4731
        %v4777 = vadd.f32 %v4495, %v4734
        %v4778 = vadd.f32 %v4496, %v4737
        %v4779 = vadd.f32 %v4497, %v4740
        %v4780 = vadd.f32 %v4498, %v4743
        %v4781 = vadd.f32 %v4499, %v4746
        %v4782 = vadd.f32 %v4500, %v4749
        %s4783 = scalar_lea.vmem [#allocation2], 48
        %v4784 = vld [vmem:[%s4783] sm:$0xff]
        %v4785 = vld [vmem:[%s4783 + $0x8] sm:$0xff]
        %v4786 = vld [vmem:[%s4783 + $0x18] sm:$0xff]
        %v4787 = vld [vmem:[%s4783 + $0x20] sm:$0xff]
        %v4788 = vld [vmem:[%s4783 + $0x30] sm:$0xff]
        %v4789 = vld [vmem:[%s4783 + $0x38] sm:$0xff]
        %v4790 = vld [vmem:[%s4783 + $0x48] sm:$0xff]
        %v4791 = vld [vmem:[%s4783 + $0x50] sm:$0xff]
        %v4792 = vld [vmem:[%s4783 + $0x60] sm:$0xff]
        %v4793 = vld [vmem:[%s4783 + $0x68] sm:$0xff]
        %v4794 = vld [vmem:[%s4783 + $0x78] sm:$0xff]
        %v4795 = vld [vmem:[%s4783 + $0x80] sm:$0xff]
        %v4796 = vld [vmem:[%s4783 + $0x90] sm:$0xff]
        %v4797 = vld [vmem:[%s4783 + $0x98] sm:$0xff]
        %v4798 = vld [vmem:[%s4783 + $0xa8] sm:$0xff]
        %v4799 = vld [vmem:[%s4783 + $0xb0] sm:$0xff]
        %v4800 = vld [vmem:[%s4783 + $0xc0] sm:$0xff]
        %v4801 = vld [vmem:[%s4783 + $0xc8] sm:$0xff]
        %v4802 = vld [vmem:[%s4783 + $0xd8] sm:$0xff]
        %v4803 = vld [vmem:[%s4783 + $0xe0] sm:$0xff]
        %v4804 = vld [vmem:[%s4783 + $0xf0] sm:$0xff]
        %v4805 = vld [vmem:[%s4783 + $0xf8] sm:$0xff]
        %v4806 = vld [vmem:[%s4783 + $0x108] sm:$0xff]
        %v4807 = vld [vmem:[%s4783 + $0x110] sm:$0xff]
        %v4808 = vld [vmem:[%s4783 + $0x120] sm:$0xff]
        %v4809 = vld [vmem:[%s4783 + $0x128] sm:$0xff]
        %v4810 = vld [vmem:[%s4783 + $0x138] sm:$0xff]
        %v4811 = vld [vmem:[%s4783 + $0x140] sm:$0xff]
        %v4812 = vld [vmem:[%s4783 + $0x150] sm:$0xff]
        %v4813 = vld [vmem:[%s4783 + $0x158] sm:$0xff]
        %v4814 = vld [vmem:[%s4783 + $0x168] sm:$0xff]
        %v4815 = vld [vmem:[%s4783 + $0x170] sm:$0xff]
        %s4816 = scalar_lea.vmem %s4, 240
        %v4817 = vld [vmem:[%s4816] sm:$0xff]
        %v4818 = vld [vmem:[%s4816 + $0x8] sm:$0xff]
        %v4819 = vld [vmem:[%s4816 + $0x10] sm:$0xff]
        %v4820 = vld [vmem:[%s4816 + $0x18] sm:$0xff]
        %v4821 = vld [vmem:[%s4816 + $0x20] sm:$0x3]
        %v4823 = vsel %vm2872, %v4784, 0
        %v4826 = vsel %vm2872, %v4785, 0
        %v4829 = vsel %vm2872, %v4786, 0
        %v4832 = vsel %vm2872, %v4787, 0
        %v4835 = vsel %vm2872, %v4788, 0
        %v4838 = vsel %vm2872, %v4789, 0
        %v4841 = vsel %vm2872, %v4790, 0
        %v4844 = vsel %vm2872, %v4791, 0
        %v4847 = vsel %vm2872, %v4792, 0
        %v4850 = vsel %vm2872, %v4793, 0
        %v4853 = vsel %vm2872, %v4794, 0
        %v4856 = vsel %vm2872, %v4795, 0
        %v4859 = vsel %vm2872, %v4796, 0
        %v4862 = vsel %vm2872, %v4797, 0
        %v4865 = vsel %vm2872, %v4798, 0
        %v4868 = vsel %vm2872, %v4799, 0
        %v4871 = vsel %vm2872, %v4800, 0
        %v4874 = vsel %vm2872, %v4801, 0
        %v4877 = vsel %vm2872, %v4802, 0
        %v4880 = vsel %vm2872, %v4803, 0
        %v4883 = vsel %vm2872, %v4804, 0
        %v4886 = vsel %vm2872, %v4805, 0
        %v4889 = vsel %vm2872, %v4806, 0
        %v4892 = vsel %vm2872, %v4807, 0
        %v4895 = vsel %vm2872, %v4808, 0
        %v4898 = vsel %vm2872, %v4809, 0
        %v4901 = vsel %vm2872, %v4810, 0
        %v4904 = vsel %vm2872, %v4811, 0
        %v4907 = vsel %vm2872, %v4812, 0
        %v4910 = vsel %vm2872, %v4813, 0
        %v4913 = vsel %vm2872, %v4814, 0
        %v4916 = vsel %vm2872, %v4815, 0
        %v4919 = vsel %vm3326, %v4821, 0
        %4921 = vmatpush.msra.mxu0 0.0
        %4922 = vmatpush.msra.mxu0 0.0
        %4923 = vmatpush.msra.mxu0 0.0
        %4924 = vmatpush.msra.mxu0 0.0
        %4925 = vmatpush.msra.mxu0 0.0
        %4926 = vmatpush.msra.mxu0 0.0
        %4927 = vmatpush.msra.mxu0 0.0
        %4928 = vmatpush.msra.mxu0 0.0
        %4929 = vmatpush.msra.mxu0 0.0
        %4930 = vmatpush.msra.mxu0 0.0
        %4931 = vmatpush.msra.mxu0 0.0
        %4932 = vmatpush.msra.mxu0 %v4919
        %4933 = vmatpush.msra.mxu0 %v4820
        %4934 = vmatpush.msra.mxu0 %v4819
        %4935 = vmatpush.msra.mxu0 %v4818
        %4936 = vmatpush.msra.mxu0 %v4817
        %4937 = vmatmul.f32.gmra.mxu0 %v4823
        %v4938 = vpop.f32.mrf.mxu0
        %v4939 = vadd.f32 0.0, %v4938
        %4940 = vmatmul.f32.gmra.mxu0 %v4826
        %v4941 = vpop.f32.mrf.mxu0
        %v4942 = vadd.f32 0.0, %v4941
        %4943 = vmatmul.f32.gmra.mxu0 %v4829
        %v4944 = vpop.f32.mrf.mxu0
        %v4945 = vadd.f32 0.0, %v4944
        %4946 = vmatmul.f32.gmra.mxu0 %v4832
        %v4947 = vpop.f32.mrf.mxu0
        %v4948 = vadd.f32 0.0, %v4947
        %4949 = vmatmul.f32.gmra.mxu0 %v4835
        %v4950 = vpop.f32.mrf.mxu0
        %v4951 = vadd.f32 0.0, %v4950
        %4952 = vmatmul.f32.gmra.mxu0 %v4838
        %v4953 = vpop.f32.mrf.mxu0
        %v4954 = vadd.f32 0.0, %v4953
        %4955 = vmatmul.f32.gmra.mxu0 %v4841
        %v4956 = vpop.f32.mrf.mxu0
        %v4957 = vadd.f32 0.0, %v4956
        %4958 = vmatmul.f32.gmra.mxu0 %v4844
        %v4959 = vpop.f32.mrf.mxu0
        %v4960 = vadd.f32 0.0, %v4959
        %4961 = vmatmul.f32.gmra.mxu0 %v4847
        %v4962 = vpop.f32.mrf.mxu0
        %v4963 = vadd.f32 0.0, %v4962
        %4964 = vmatmul.f32.gmra.mxu0 %v4850
        %v4965 = vpop.f32.mrf.mxu0
        %v4966 = vadd.f32 0.0, %v4965
        %4967 = vmatmul.f32.gmra.mxu0 %v4853
        %v4968 = vpop.f32.mrf.mxu0
        %v4969 = vadd.f32 0.0, %v4968
        %4970 = vmatmul.f32.gmra.mxu0 %v4856
        %v4971 = vpop.f32.mrf.mxu0
        %v4972 = vadd.f32 0.0, %v4971
        %4973 = vmatmul.f32.gmra.mxu0 %v4859
        %v4974 = vpop.f32.mrf.mxu0
        %v4975 = vadd.f32 0.0, %v4974
        %4976 = vmatmul.f32.gmra.mxu0 %v4862
        %v4977 = vpop.f32.mrf.mxu0
        %v4978 = vadd.f32 0.0, %v4977
        %4979 = vmatmul.f32.gmra.mxu0 %v4865
        %v4980 = vpop.f32.mrf.mxu0
        %v4981 = vadd.f32 0.0, %v4980
        %4982 = vmatmul.f32.gmra.mxu0 %v4868
        %v4983 = vpop.f32.mrf.mxu0
        %v4984 = vadd.f32 0.0, %v4983
        %4985 = vmatmul.f32.gmra.mxu0 %v4871
        %v4986 = vpop.f32.mrf.mxu0
        %v4987 = vadd.f32 0.0, %v4986
        %4988 = vmatmul.f32.gmra.mxu0 %v4874
        %v4989 = vpop.f32.mrf.mxu0
        %v4990 = vadd.f32 0.0, %v4989
        %4991 = vmatmul.f32.gmra.mxu0 %v4877
        %v4992 = vpop.f32.mrf.mxu0
        %v4993 = vadd.f32 0.0, %v4992
        %4994 = vmatmul.f32.gmra.mxu0 %v4880
        %v4995 = vpop.f32.mrf.mxu0
        %v4996 = vadd.f32 0.0, %v4995
        %4997 = vmatmul.f32.gmra.mxu0 %v4883
        %v4998 = vpop.f32.mrf.mxu0
        %v4999 = vadd.f32 0.0, %v4998
        %5000 = vmatmul.f32.gmra.mxu0 %v4886
        %v5001 = vpop.f32.mrf.mxu0
        %v5002 = vadd.f32 0.0, %v5001
        %5003 = vmatmul.f32.gmra.mxu0 %v4889
        %v5004 = vpop.f32.mrf.mxu0
        %v5005 = vadd.f32 0.0, %v5004
        %5006 = vmatmul.f32.gmra.mxu0 %v4892
        %v5007 = vpop.f32.mrf.mxu0
        %v5008 = vadd.f32 0.0, %v5007
        %5009 = vmatmul.f32.gmra.mxu0 %v4895
        %v5010 = vpop.f32.mrf.mxu0
        %v5011 = vadd.f32 0.0, %v5010
        %5012 = vmatmul.f32.gmra.mxu0 %v4898
        %v5013 = vpop.f32.mrf.mxu0
        %v5014 = vadd.f32 0.0, %v5013
        %5015 = vmatmul.f32.gmra.mxu0 %v4901
        %v5016 = vpop.f32.mrf.mxu0
        %v5017 = vadd.f32 0.0, %v5016
        %5018 = vmatmul.f32.gmra.mxu0 %v4904
        %v5019 = vpop.f32.mrf.mxu0
        %v5020 = vadd.f32 0.0, %v5019
        %5021 = vmatmul.f32.gmra.mxu0 %v4907
        %v5022 = vpop.f32.mrf.mxu0
        %v5023 = vadd.f32 0.0, %v5022
        %5024 = vmatmul.f32.gmra.mxu0 %v4910
        %v5025 = vpop.f32.mrf.mxu0
        %v5026 = vadd.f32 0.0, %v5025
        %5027 = vmatmul.f32.gmra.mxu0 %v4913
        %v5028 = vpop.f32.mrf.mxu0
        %v5029 = vadd.f32 0.0, %v5028
        %5030 = vmatmul.f32.gmra.mxu0 %v4916
        %v5031 = vpop.f32.mrf.mxu0
        %v5032 = vadd.f32 0.0, %v5031
        %5033 = vdwg.mxu0
        %v5034 = vadd.f32 %v4751, %v4939
        %v5035 = vadd.f32 %v4752, %v4942
        %v5036 = vadd.f32 %v4753, %v4945
        %v5037 = vadd.f32 %v4754, %v4948
        %v5038 = vadd.f32 %v4755, %v4951
        %v5039 = vadd.f32 %v4756, %v4954
        %v5040 = vadd.f32 %v4757, %v4957
        %v5041 = vadd.f32 %v4758, %v4960
        %v5042 = vadd.f32 %v4759, %v4963
        %v5043 = vadd.f32 %v4760, %v4966
        %v5044 = vadd.f32 %v4761, %v4969
        %v5045 = vadd.f32 %v4762, %v4972
        %v5046 = vadd.f32 %v4763, %v4975
        %v5047 = vadd.f32 %v4764, %v4978
        %v5048 = vadd.f32 %v4765, %v4981
        %v5049 = vadd.f32 %v4766, %v4984
        %v5050 = vadd.f32 %v4767, %v4987
        %v5051 = vadd.f32 %v4768, %v4990
        %v5052 = vadd.f32 %v4769, %v4993
        %v5053 = vadd.f32 %v4770, %v4996
        %v5054 = vadd.f32 %v4771, %v4999
        %v5055 = vadd.f32 %v4772, %v5002
        %v5056 = vadd.f32 %v4773, %v5005
        %v5057 = vadd.f32 %v4774, %v5008
        %v5058 = vadd.f32 %v4775, %v5011
        %v5059 = vadd.f32 %v4776, %v5014
        %v5060 = vadd.f32 %v4777, %v5017
        %v5061 = vadd.f32 %v4778, %v5020
        %v5062 = vadd.f32 %v4779, %v5023
        %v5063 = vadd.f32 %v4780, %v5026
        %v5064 = vadd.f32 %v4781, %v5029
        %v5065 = vadd.f32 %v4782, %v5032
        %v5066 = vld [vmem:[%s4783 + $0x1] sm:$0xff]
        %v5067 = vld [vmem:[%s4783 + $0x9] sm:$0xff]
        %v5068 = vld [vmem:[%s4783 + $0x19] sm:$0xff]
        %v5069 = vld [vmem:[%s4783 + $0x21] sm:$0xff]
        %v5070 = vld [vmem:[%s4783 + $0x31] sm:$0xff]
        %v5071 = vld [vmem:[%s4783 + $0x39] sm:$0xff]
        %v5072 = vld [vmem:[%s4783 + $0x49] sm:$0xff]
        %v5073 = vld [vmem:[%s4783 + $0x51] sm:$0xff]
        %v5074 = vld [vmem:[%s4783 + $0x61] sm:$0xff]
        %v5075 = vld [vmem:[%s4783 + $0x69] sm:$0xff]
        %v5076 = vld [vmem:[%s4783 + $0x79] sm:$0xff]
        %v5077 = vld [vmem:[%s4783 + $0x81] sm:$0xff]
        %v5078 = vld [vmem:[%s4783 + $0x91] sm:$0xff]
        %v5079 = vld [vmem:[%s4783 + $0x99] sm:$0xff]
        %v5080 = vld [vmem:[%s4783 + $0xa9] sm:$0xff]
        %v5081 = vld [vmem:[%s4783 + $0xb1] sm:$0xff]
        %v5082 = vld [vmem:[%s4783 + $0xc1] sm:$0xff]
        %v5083 = vld [vmem:[%s4783 + $0xc9] sm:$0xff]
        %v5084 = vld [vmem:[%s4783 + $0xd9] sm:$0xff]
        %v5085 = vld [vmem:[%s4783 + $0xe1] sm:$0xff]
        %v5086 = vld [vmem:[%s4783 + $0xf1] sm:$0xff]
        %v5087 = vld [vmem:[%s4783 + $0xf9] sm:$0xff]
        %v5088 = vld [vmem:[%s4783 + $0x109] sm:$0xff]
        %v5089 = vld [vmem:[%s4783 + $0x111] sm:$0xff]
        %v5090 = vld [vmem:[%s4783 + $0x121] sm:$0xff]
        %v5091 = vld [vmem:[%s4783 + $0x129] sm:$0xff]
        %v5092 = vld [vmem:[%s4783 + $0x139] sm:$0xff]
        %v5093 = vld [vmem:[%s4783 + $0x141] sm:$0xff]
        %v5094 = vld [vmem:[%s4783 + $0x151] sm:$0xff]
        %v5095 = vld [vmem:[%s4783 + $0x159] sm:$0xff]
        %v5096 = vld [vmem:[%s4783 + $0x169] sm:$0xff]
        %v5097 = vld [vmem:[%s4783 + $0x171] sm:$0xff]
        %s5098 = scalar_lea.vmem %s4, 280
        %v5099 = vld [vmem:[%s5098] sm:$0xff]
        %v5100 = vld [vmem:[%s5098 + $0x8] sm:$0xff]
        %v5101 = vld [vmem:[%s5098 + $0x10] sm:$0xff]
        %v5102 = vld [vmem:[%s5098 + $0x18] sm:$0xff]
        %v5103 = vld [vmem:[%s5098 + $0x20] sm:$0x3]
        %v5105 = vsel %vm2872, %v5066, 0
        %v5108 = vsel %vm2872, %v5067, 0
        %v5111 = vsel %vm2872, %v5068, 0
        %v5114 = vsel %vm2872, %v5069, 0
        %v5117 = vsel %vm2872, %v5070, 0
        %v5120 = vsel %vm2872, %v5071, 0
        %v5123 = vsel %vm2872, %v5072, 0
        %v5126 = vsel %vm2872, %v5073, 0
        %v5129 = vsel %vm2872, %v5074, 0
        %v5132 = vsel %vm2872, %v5075, 0
        %v5135 = vsel %vm2872, %v5076, 0
        %v5138 = vsel %vm2872, %v5077, 0
        %v5141 = vsel %vm2872, %v5078, 0
        %v5144 = vsel %vm2872, %v5079, 0
        %v5147 = vsel %vm2872, %v5080, 0
        %v5150 = vsel %vm2872, %v5081, 0
        %v5153 = vsel %vm2872, %v5082, 0
        %v5156 = vsel %vm2872, %v5083, 0
        %v5159 = vsel %vm2872, %v5084, 0
        %v5162 = vsel %vm2872, %v5085, 0
        %v5165 = vsel %vm2872, %v5086, 0
        %v5168 = vsel %vm2872, %v5087, 0
        %v5171 = vsel %vm2872, %v5088, 0
        %v5174 = vsel %vm2872, %v5089, 0
        %v5177 = vsel %vm2872, %v5090, 0
        %v5180 = vsel %vm2872, %v5091, 0
        %v5183 = vsel %vm2872, %v5092, 0
        %v5186 = vsel %vm2872, %v5093, 0
        %v5189 = vsel %vm2872, %v5094, 0
        %v5192 = vsel %vm2872, %v5095, 0
        %v5195 = vsel %vm2872, %v5096, 0
        %v5198 = vsel %vm2872, %v5097, 0
        %v5201 = vsel %vm3326, %v5103, 0
        %5203 = vmatpush.msra.mxu0 0.0
        %5204 = vmatpush.msra.mxu0 0.0
        %5205 = vmatpush.msra.mxu0 0.0
        %5206 = vmatpush.msra.mxu0 0.0
        %5207 = vmatpush.msra.mxu0 0.0
        %5208 = vmatpush.msra.mxu0 0.0
        %5209 = vmatpush.msra.mxu0 0.0
        %5210 = vmatpush.msra.mxu0 0.0
        %5211 = vmatpush.msra.mxu0 0.0
        %5212 = vmatpush.msra.mxu0 0.0
        %5213 = vmatpush.msra.mxu0 0.0
        %5214 = vmatpush.msra.mxu0 %v5201
        %5215 = vmatpush.msra.mxu0 %v5102
        %5216 = vmatpush.msra.mxu0 %v5101
        %5217 = vmatpush.msra.mxu0 %v5100
        %5218 = vmatpush.msra.mxu0 %v5099
        %5219 = vmatmul.f32.gmra.mxu0 %v5105
        %v5220 = vpop.f32.mrf.mxu0
        %v5221 = vadd.f32 0.0, %v5220
        %5222 = vmatmul.f32.gmra.mxu0 %v5108
        %v5223 = vpop.f32.mrf.mxu0
        %v5224 = vadd.f32 0.0, %v5223
        %5225 = vmatmul.f32.gmra.mxu0 %v5111
        %v5226 = vpop.f32.mrf.mxu0
        %v5227 = vadd.f32 0.0, %v5226
        %5228 = vmatmul.f32.gmra.mxu0 %v5114
        %v5229 = vpop.f32.mrf.mxu0
        %v5230 = vadd.f32 0.0, %v5229
        %5231 = vmatmul.f32.gmra.mxu0 %v5117
        %v5232 = vpop.f32.mrf.mxu0
        %v5233 = vadd.f32 0.0, %v5232
        %5234 = vmatmul.f32.gmra.mxu0 %v5120
        %v5235 = vpop.f32.mrf.mxu0
        %v5236 = vadd.f32 0.0, %v5235
        %5237 = vmatmul.f32.gmra.mxu0 %v5123
        %v5238 = vpop.f32.mrf.mxu0
        %v5239 = vadd.f32 0.0, %v5238
        %5240 = vmatmul.f32.gmra.mxu0 %v5126
        %v5241 = vpop.f32.mrf.mxu0
        %v5242 = vadd.f32 0.0, %v5241
        %5243 = vmatmul.f32.gmra.mxu0 %v5129
        %v5244 = vpop.f32.mrf.mxu0
        %v5245 = vadd.f32 0.0, %v5244
        %5246 = vmatmul.f32.gmra.mxu0 %v5132
        %v5247 = vpop.f32.mrf.mxu0
        %v5248 = vadd.f32 0.0, %v5247
        %5249 = vmatmul.f32.gmra.mxu0 %v5135
        %v5250 = vpop.f32.mrf.mxu0
        %v5251 = vadd.f32 0.0, %v5250
        %5252 = vmatmul.f32.gmra.mxu0 %v5138
        %v5253 = vpop.f32.mrf.mxu0
        %v5254 = vadd.f32 0.0, %v5253
        %5255 = vmatmul.f32.gmra.mxu0 %v5141
        %v5256 = vpop.f32.mrf.mxu0
        %v5257 = vadd.f32 0.0, %v5256
        %5258 = vmatmul.f32.gmra.mxu0 %v5144
        %v5259 = vpop.f32.mrf.mxu0
        %v5260 = vadd.f32 0.0, %v5259
        %5261 = vmatmul.f32.gmra.mxu0 %v5147
        %v5262 = vpop.f32.mrf.mxu0
        %v5263 = vadd.f32 0.0, %v5262
        %5264 = vmatmul.f32.gmra.mxu0 %v5150
        %v5265 = vpop.f32.mrf.mxu0
        %v5266 = vadd.f32 0.0, %v5265
        %5267 = vmatmul.f32.gmra.mxu0 %v5153
        %v5268 = vpop.f32.mrf.mxu0
        %v5269 = vadd.f32 0.0, %v5268
        %5270 = vmatmul.f32.gmra.mxu0 %v5156
        %v5271 = vpop.f32.mrf.mxu0
        %v5272 = vadd.f32 0.0, %v5271
        %5273 = vmatmul.f32.gmra.mxu0 %v5159
        %v5274 = vpop.f32.mrf.mxu0
        %v5275 = vadd.f32 0.0, %v5274
        %5276 = vmatmul.f32.gmra.mxu0 %v5162
        %v5277 = vpop.f32.mrf.mxu0
        %v5278 = vadd.f32 0.0, %v5277
        %5279 = vmatmul.f32.gmra.mxu0 %v5165
        %v5280 = vpop.f32.mrf.mxu0
        %v5281 = vadd.f32 0.0, %v5280
        %5282 = vmatmul.f32.gmra.mxu0 %v5168
        %v5283 = vpop.f32.mrf.mxu0
        %v5284 = vadd.f32 0.0, %v5283
        %5285 = vmatmul.f32.gmra.mxu0 %v5171
        %v5286 = vpop.f32.mrf.mxu0
        %v5287 = vadd.f32 0.0, %v5286
        %5288 = vmatmul.f32.gmra.mxu0 %v5174
        %v5289 = vpop.f32.mrf.mxu0
        %v5290 = vadd.f32 0.0, %v5289
        %5291 = vmatmul.f32.gmra.mxu0 %v5177
        %v5292 = vpop.f32.mrf.mxu0
        %v5293 = vadd.f32 0.0, %v5292
        %5294 = vmatmul.f32.gmra.mxu0 %v5180
        %v5295 = vpop.f32.mrf.mxu0
        %v5296 = vadd.f32 0.0, %v5295
        %5297 = vmatmul.f32.gmra.mxu0 %v5183
        %v5298 = vpop.f32.mrf.mxu0
        %v5299 = vadd.f32 0.0, %v5298
        %5300 = vmatmul.f32.gmra.mxu0 %v5186
        %v5301 = vpop.f32.mrf.mxu0
        %v5302 = vadd.f32 0.0, %v5301
        %5303 = vmatmul.f32.gmra.mxu0 %v5189
        %v5304 = vpop.f32.mrf.mxu0
        %v5305 = vadd.f32 0.0, %v5304
        %5306 = vmatmul.f32.gmra.mxu0 %v5192
        %v5307 = vpop.f32.mrf.mxu0
        %v5308 = vadd.f32 0.0, %v5307
        %5309 = vmatmul.f32.gmra.mxu0 %v5195
        %v5310 = vpop.f32.mrf.mxu0
        %v5311 = vadd.f32 0.0, %v5310
        %5312 = vmatmul.f32.gmra.mxu0 %v5198
        %v5313 = vpop.f32.mrf.mxu0
        %v5314 = vadd.f32 0.0, %v5313
        %5315 = vdwg.mxu0
        %v5316 = vadd.f32 %v5034, %v5221
        %v5317 = vadd.f32 %v5035, %v5224
        %v5318 = vadd.f32 %v5036, %v5227
        %v5319 = vadd.f32 %v5037, %v5230
        %v5320 = vadd.f32 %v5038, %v5233
        %v5321 = vadd.f32 %v5039, %v5236
        %v5322 = vadd.f32 %v5040, %v5239
        %v5323 = vadd.f32 %v5041, %v5242
        %v5324 = vadd.f32 %v5042, %v5245
        %v5325 = vadd.f32 %v5043, %v5248
        %v5326 = vadd.f32 %v5044, %v5251
        %v5327 = vadd.f32 %v5045, %v5254
        %v5328 = vadd.f32 %v5046, %v5257
        %v5329 = vadd.f32 %v5047, %v5260
        %v5330 = vadd.f32 %v5048, %v5263
        %v5331 = vadd.f32 %v5049, %v5266
        %v5332 = vadd.f32 %v5050, %v5269
        %v5333 = vadd.f32 %v5051, %v5272
        %v5334 = vadd.f32 %v5052, %v5275
        %v5335 = vadd.f32 %v5053, %v5278
        %v5336 = vadd.f32 %v5054, %v5281
        %v5337 = vadd.f32 %v5055, %v5284
        %v5338 = vadd.f32 %v5056, %v5287
        %v5339 = vadd.f32 %v5057, %v5290
        %v5340 = vadd.f32 %v5058, %v5293
        %v5341 = vadd.f32 %v5059, %v5296
        %v5342 = vadd.f32 %v5060, %v5299
        %v5343 = vadd.f32 %v5061, %v5302
        %v5344 = vadd.f32 %v5062, %v5305
        %v5345 = vadd.f32 %v5063, %v5308
        %v5346 = vadd.f32 %v5064, %v5311
        %v5347 = vadd.f32 %v5065, %v5314
        %v5348 = vld [vmem:[%s4783 + $0x2] sm:$0xff]
        %v5349 = vld [vmem:[%s4783 + $0xa] sm:$0xff]
        %v5350 = vld [vmem:[%s4783 + $0x1a] sm:$0xff]
        %v5351 = vld [vmem:[%s4783 + $0x22] sm:$0xff]
        %v5352 = vld [vmem:[%s4783 + $0x32] sm:$0xff]
        %v5353 = vld [vmem:[%s4783 + $0x3a] sm:$0xff]
        %v5354 = vld [vmem:[%s4783 + $0x4a] sm:$0xff]
        %v5355 = vld [vmem:[%s4783 + $0x52] sm:$0xff]
        %v5356 = vld [vmem:[%s4783 + $0x62] sm:$0xff]
        %v5357 = vld [vmem:[%s4783 + $0x6a] sm:$0xff]
        %v5358 = vld [vmem:[%s4783 + $0x7a] sm:$0xff]
        %v5359 = vld [vmem:[%s4783 + $0x82] sm:$0xff]
        %v5360 = vld [vmem:[%s4783 + $0x92] sm:$0xff]
        %v5361 = vld [vmem:[%s4783 + $0x9a] sm:$0xff]
        %v5362 = vld [vmem:[%s4783 + $0xaa] sm:$0xff]
        %v5363 = vld [vmem:[%s4783 + $0xb2] sm:$0xff]
        %v5364 = vld [vmem:[%s4783 + $0xc2] sm:$0xff]
        %v5365 = vld [vmem:[%s4783 + $0xca] sm:$0xff]
        %v5366 = vld [vmem:[%s4783 + $0xda] sm:$0xff]
        %v5367 = vld [vmem:[%s4783 + $0xe2] sm:$0xff]
        %v5368 = vld [vmem:[%s4783 + $0xf2] sm:$0xff]
        %v5369 = vld [vmem:[%s4783 + $0xfa] sm:$0xff]
        %v5370 = vld [vmem:[%s4783 + $0x10a] sm:$0xff]
        %v5371 = vld [vmem:[%s4783 + $0x112] sm:$0xff]
        %v5372 = vld [vmem:[%s4783 + $0x122] sm:$0xff]
        %v5373 = vld [vmem:[%s4783 + $0x12a] sm:$0xff]
        %v5374 = vld [vmem:[%s4783 + $0x13a] sm:$0xff]
        %v5375 = vld [vmem:[%s4783 + $0x142] sm:$0xff]
        %v5376 = vld [vmem:[%s4783 + $0x152] sm:$0xff]
        %v5377 = vld [vmem:[%s4783 + $0x15a] sm:$0xff]
        %v5378 = vld [vmem:[%s4783 + $0x16a] sm:$0xff]
        %v5379 = vld [vmem:[%s4783 + $0x172] sm:$0xff]
        %s5380 = scalar_lea.vmem %s4, 320
        %v5381 = vld [vmem:[%s5380] sm:$0xff]
        %v5382 = vld [vmem:[%s5380 + $0x8] sm:$0xff]
        %v5383 = vld [vmem:[%s5380 + $0x10] sm:$0xff]
        %v5384 = vld [vmem:[%s5380 + $0x18] sm:$0xff]
        %v5385 = vld [vmem:[%s5380 + $0x20] sm:$0x3]
        %v5387 = vsel %vm2872, %v5348, 0
        %v5390 = vsel %vm2872, %v5349, 0
        %v5393 = vsel %vm2872, %v5350, 0
        %v5396 = vsel %vm2872, %v5351, 0
        %v5399 = vsel %vm2872, %v5352, 0
        %v5402 = vsel %vm2872, %v5353, 0
        %v5405 = vsel %vm2872, %v5354, 0
        %v5408 = vsel %vm2872, %v5355, 0
        %v5411 = vsel %vm2872, %v5356, 0
        %v5414 = vsel %vm2872, %v5357, 0
        %v5417 = vsel %vm2872, %v5358, 0
        %v5420 = vsel %vm2872, %v5359, 0
        %v5423 = vsel %vm2872, %v5360, 0
        %v5426 = vsel %vm2872, %v5361, 0
        %v5429 = vsel %vm2872, %v5362, 0
        %v5432 = vsel %vm2872, %v5363, 0
        %v5435 = vsel %vm2872, %v5364, 0
        %v5438 = vsel %vm2872, %v5365, 0
        %v5441 = vsel %vm2872, %v5366, 0
        %v5444 = vsel %vm2872, %v5367, 0
        %v5447 = vsel %vm2872, %v5368, 0
        %v5450 = vsel %vm2872, %v5369, 0
        %v5453 = vsel %vm2872, %v5370, 0
        %v5456 = vsel %vm2872, %v5371, 0
        %v5459 = vsel %vm2872, %v5372, 0
        %v5462 = vsel %vm2872, %v5373, 0
        %v5465 = vsel %vm2872, %v5374, 0
        %v5468 = vsel %vm2872, %v5375, 0
        %v5471 = vsel %vm2872, %v5376, 0
        %v5474 = vsel %vm2872, %v5377, 0
        %v5477 = vsel %vm2872, %v5378, 0
        %v5480 = vsel %vm2872, %v5379, 0
        %v5483 = vsel %vm3326, %v5385, 0
        %5485 = vmatpush.msra.mxu0 0.0
        %5486 = vmatpush.msra.mxu0 0.0
        %5487 = vmatpush.msra.mxu0 0.0
        %5488 = vmatpush.msra.mxu0 0.0
        %5489 = vmatpush.msra.mxu0 0.0
        %5490 = vmatpush.msra.mxu0 0.0
        %5491 = vmatpush.msra.mxu0 0.0
        %5492 = vmatpush.msra.mxu0 0.0
        %5493 = vmatpush.msra.mxu0 0.0
        %5494 = vmatpush.msra.mxu0 0.0
        %5495 = vmatpush.msra.mxu0 0.0
        %5496 = vmatpush.msra.mxu0 %v5483
        %5497 = vmatpush.msra.mxu0 %v5384
        %5498 = vmatpush.msra.mxu0 %v5383
        %5499 = vmatpush.msra.mxu0 %v5382
        %5500 = vmatpush.msra.mxu0 %v5381
        %5501 = vmatmul.f32.gmra.mxu0 %v5387
        %v5502 = vpop.f32.mrf.mxu0
        %v5503 = vadd.f32 0.0, %v5502
        %5504 = vmatmul.f32.gmra.mxu0 %v5390
        %v5505 = vpop.f32.mrf.mxu0
        %v5506 = vadd.f32 0.0, %v5505
        %5507 = vmatmul.f32.gmra.mxu0 %v5393
        %v5508 = vpop.f32.mrf.mxu0
        %v5509 = vadd.f32 0.0, %v5508
        %5510 = vmatmul.f32.gmra.mxu0 %v5396
        %v5511 = vpop.f32.mrf.mxu0
        %v5512 = vadd.f32 0.0, %v5511
        %5513 = vmatmul.f32.gmra.mxu0 %v5399
        %v5514 = vpop.f32.mrf.mxu0
        %v5515 = vadd.f32 0.0, %v5514
        %5516 = vmatmul.f32.gmra.mxu0 %v5402
        %v5517 = vpop.f32.mrf.mxu0
        %v5518 = vadd.f32 0.0, %v5517
        %5519 = vmatmul.f32.gmra.mxu0 %v5405
        %v5520 = vpop.f32.mrf.mxu0
        %v5521 = vadd.f32 0.0, %v5520
        %5522 = vmatmul.f32.gmra.mxu0 %v5408
        %v5523 = vpop.f32.mrf.mxu0
        %v5524 = vadd.f32 0.0, %v5523
        %5525 = vmatmul.f32.gmra.mxu0 %v5411
        %v5526 = vpop.f32.mrf.mxu0
        %v5527 = vadd.f32 0.0, %v5526
        %5528 = vmatmul.f32.gmra.mxu0 %v5414
        %v5529 = vpop.f32.mrf.mxu0
        %v5530 = vadd.f32 0.0, %v5529
        %5531 = vmatmul.f32.gmra.mxu0 %v5417
        %v5532 = vpop.f32.mrf.mxu0
        %v5533 = vadd.f32 0.0, %v5532
        %5534 = vmatmul.f32.gmra.mxu0 %v5420
        %v5535 = vpop.f32.mrf.mxu0
        %v5536 = vadd.f32 0.0, %v5535
        %5537 = vmatmul.f32.gmra.mxu0 %v5423
        %v5538 = vpop.f32.mrf.mxu0
        %v5539 = vadd.f32 0.0, %v5538
        %5540 = vmatmul.f32.gmra.mxu0 %v5426
        %v5541 = vpop.f32.mrf.mxu0
        %v5542 = vadd.f32 0.0, %v5541
        %5543 = vmatmul.f32.gmra.mxu0 %v5429
        %v5544 = vpop.f32.mrf.mxu0
        %v5545 = vadd.f32 0.0, %v5544
        %5546 = vmatmul.f32.gmra.mxu0 %v5432
        %v5547 = vpop.f32.mrf.mxu0
        %v5548 = vadd.f32 0.0, %v5547
        %5549 = vmatmul.f32.gmra.mxu0 %v5435
        %v5550 = vpop.f32.mrf.mxu0
        %v5551 = vadd.f32 0.0, %v5550
        %5552 = vmatmul.f32.gmra.mxu0 %v5438
        %v5553 = vpop.f32.mrf.mxu0
        %v5554 = vadd.f32 0.0, %v5553
        %5555 = vmatmul.f32.gmra.mxu0 %v5441
        %v5556 = vpop.f32.mrf.mxu0
        %v5557 = vadd.f32 0.0, %v5556
        %5558 = vmatmul.f32.gmra.mxu0 %v5444
        %v5559 = vpop.f32.mrf.mxu0
        %v5560 = vadd.f32 0.0, %v5559
        %5561 = vmatmul.f32.gmra.mxu0 %v5447
        %v5562 = vpop.f32.mrf.mxu0
        %v5563 = vadd.f32 0.0, %v5562
        %5564 = vmatmul.f32.gmra.mxu0 %v5450
        %v5565 = vpop.f32.mrf.mxu0
        %v5566 = vadd.f32 0.0, %v5565
        %5567 = vmatmul.f32.gmra.mxu0 %v5453
        %v5568 = vpop.f32.mrf.mxu0
        %v5569 = vadd.f32 0.0, %v5568
        %5570 = vmatmul.f32.gmra.mxu0 %v5456
        %v5571 = vpop.f32.mrf.mxu0
        %v5572 = vadd.f32 0.0, %v5571
        %5573 = vmatmul.f32.gmra.mxu0 %v5459
        %v5574 = vpop.f32.mrf.mxu0
        %v5575 = vadd.f32 0.0, %v5574
        %5576 = vmatmul.f32.gmra.mxu0 %v5462
        %v5577 = vpop.f32.mrf.mxu0
        %v5578 = vadd.f32 0.0, %v5577
        %5579 = vmatmul.f32.gmra.mxu0 %v5465
        %v5580 = vpop.f32.mrf.mxu0
        %v5581 = vadd.f32 0.0, %v5580
        %5582 = vmatmul.f32.gmra.mxu0 %v5468
        %v5583 = vpop.f32.mrf.mxu0
        %v5584 = vadd.f32 0.0, %v5583
        %5585 = vmatmul.f32.gmra.mxu0 %v5471
        %v5586 = vpop.f32.mrf.mxu0
        %v5587 = vadd.f32 0.0, %v5586
        %5588 = vmatmul.f32.gmra.mxu0 %v5474
        %v5589 = vpop.f32.mrf.mxu0
        %v5590 = vadd.f32 0.0, %v5589
        %5591 = vmatmul.f32.gmra.mxu0 %v5477
        %v5592 = vpop.f32.mrf.mxu0
        %v5593 = vadd.f32 0.0, %v5592
        %5594 = vmatmul.f32.gmra.mxu0 %v5480
        %v5595 = vpop.f32.mrf.mxu0
        %v5596 = vadd.f32 0.0, %v5595
        %5597 = vdwg.mxu0
        %v5598 = vadd.f32 %v5316, %v5503
        %v5599 = vadd.f32 %v5317, %v5506
        %v5600 = vadd.f32 %v5318, %v5509
        %v5601 = vadd.f32 %v5319, %v5512
        %v5602 = vadd.f32 %v5320, %v5515
        %v5603 = vadd.f32 %v5321, %v5518
        %v5604 = vadd.f32 %v5322, %v5521
        %v5605 = vadd.f32 %v5323, %v5524
        %v5606 = vadd.f32 %v5324, %v5527
        %v5607 = vadd.f32 %v5325, %v5530
        %v5608 = vadd.f32 %v5326, %v5533
        %v5609 = vadd.f32 %v5327, %v5536
        %v5610 = vadd.f32 %v5328, %v5539
        %v5611 = vadd.f32 %v5329, %v5542
        %v5612 = vadd.f32 %v5330, %v5545
        %v5613 = vadd.f32 %v5331, %v5548
        %v5614 = vadd.f32 %v5332, %v5551
        %v5615 = vadd.f32 %v5333, %v5554
        %v5616 = vadd.f32 %v5334, %v5557
        %v5617 = vadd.f32 %v5335, %v5560
        %v5618 = vadd.f32 %v5336, %v5563
        %v5619 = vadd.f32 %v5337, %v5566
        %v5620 = vadd.f32 %v5338, %v5569
        %v5621 = vadd.f32 %v5339, %v5572
        %v5622 = vadd.f32 %v5340, %v5575
        %v5623 = vadd.f32 %v5341, %v5578
        %v5624 = vadd.f32 %v5342, %v5581
        %v5625 = vadd.f32 %v5343, %v5584
        %v5626 = vadd.f32 %v5344, %v5587
        %v5627 = vadd.f32 %v5345, %v5590
        %v5628 = vadd.f32 %v5346, %v5593
        %v5629 = vadd.f32 %v5347, %v5596
        %v5630 = vld [vmem:[%s5] sm:$0x1]
        %v5632 = vperm.slane %v5630, 0
        %v5634 = vadd.f32 %v5598, %v5632
        %v5635 = vadd.f32 %v5599, %v5632
        %v5636 = vadd.f32 %v5600, %v5632
        %v5637 = vadd.f32 %v5601, %v5632
        %v5638 = vadd.f32 %v5602, %v5632
        %v5639 = vadd.f32 %v5603, %v5632
        %v5640 = vadd.f32 %v5604, %v5632
        %v5641 = vadd.f32 %v5605, %v5632
        %v5642 = vadd.f32 %v5606, %v5632
        %v5643 = vadd.f32 %v5607, %v5632
        %v5644 = vadd.f32 %v5608, %v5632
        %v5645 = vadd.f32 %v5609, %v5632
        %v5646 = vadd.f32 %v5610, %v5632
        %v5647 = vadd.f32 %v5611, %v5632
        %v5648 = vadd.f32 %v5612, %v5632
        %v5649 = vadd.f32 %v5613, %v5632
        %v5650 = vadd.f32 %v5614, %v5632
        %v5651 = vadd.f32 %v5615, %v5632
        %v5652 = vadd.f32 %v5616, %v5632
        %v5653 = vadd.f32 %v5617, %v5632
        %v5654 = vadd.f32 %v5618, %v5632
        %v5655 = vadd.f32 %v5619, %v5632
        %v5656 = vadd.f32 %v5620, %v5632
        %v5657 = vadd.f32 %v5621, %v5632
        %v5658 = vadd.f32 %v5622, %v5632
        %v5659 = vadd.f32 %v5623, %v5632
        %v5660 = vadd.f32 %v5624, %v5632
        %v5661 = vadd.f32 %v5625, %v5632
        %v5662 = vadd.f32 %v5626, %v5632
        %v5663 = vadd.f32 %v5627, %v5632
        %v5664 = vadd.f32 %v5628, %v5632
        %v5665 = vadd.f32 %v5629, %v5632
        %v5666 = vmul.f32 %v5634, 0.2
        %v5667 = vmul.f32 %v5635, 0.2
        %v5668 = vmul.f32 %v5636, 0.2
        %v5669 = vmul.f32 %v5637, 0.2
        %v5670 = vmul.f32 %v5638, 0.2
        %v5671 = vmul.f32 %v5639, 0.2
        %v5672 = vmul.f32 %v5640, 0.2
        %v5673 = vmul.f32 %v5641, 0.2
        %v5674 = vmul.f32 %v5642, 0.2
        %v5675 = vmul.f32 %v5643, 0.2
        %v5676 = vmul.f32 %v5644, 0.2
        %v5677 = vmul.f32 %v5645, 0.2
        %v5678 = vmul.f32 %v5646, 0.2
        %v5679 = vmul.f32 %v5647, 0.2
        %v5680 = vmul.f32 %v5648, 0.2
        %v5681 = vmul.f32 %v5649, 0.2
        %v5682 = vmul.f32 %v5650, 0.2
        %v5683 = vmul.f32 %v5651, 0.2
        %v5684 = vmul.f32 %v5652, 0.2
        %v5685 = vmul.f32 %v5653, 0.2
        %v5686 = vmul.f32 %v5654, 0.2
        %v5687 = vmul.f32 %v5655, 0.2
        %v5688 = vmul.f32 %v5656, 0.2
        %v5689 = vmul.f32 %v5657, 0.2
        %v5690 = vmul.f32 %v5658, 0.2
        %v5691 = vmul.f32 %v5659, 0.2
        %v5692 = vmul.f32 %v5660, 0.2
        %v5693 = vmul.f32 %v5661, 0.2
        %v5694 = vmul.f32 %v5662, 0.2
        %v5695 = vmul.f32 %v5663, 0.2
        %v5696 = vmul.f32 %v5664, 0.2
        %v5697 = vmul.f32 %v5665, 0.2
        %v5698 = vmax.f32 %v5634, %v5666
        %v5699 = vmax.f32 %v5635, %v5667
        %v5700 = vmax.f32 %v5636, %v5668
        %v5701 = vmax.f32 %v5637, %v5669
        %v5702 = vmax.f32 %v5638, %v5670
        %v5703 = vmax.f32 %v5639, %v5671
        %v5704 = vmax.f32 %v5640, %v5672
        %v5705 = vmax.f32 %v5641, %v5673
        %v5706 = vmax.f32 %v5642, %v5674
        %v5707 = vmax.f32 %v5643, %v5675
        %v5708 = vmax.f32 %v5644, %v5676
        %v5709 = vmax.f32 %v5645, %v5677
        %v5710 = vmax.f32 %v5646, %v5678
        %v5711 = vmax.f32 %v5647, %v5679
        %v5712 = vmax.f32 %v5648, %v5680
        %v5713 = vmax.f32 %v5649, %v5681
        %v5714 = vmax.f32 %v5650, %v5682
        %v5715 = vmax.f32 %v5651, %v5683
        %v5716 = vmax.f32 %v5652, %v5684
        %v5717 = vmax.f32 %v5653, %v5685
        %v5718 = vmax.f32 %v5654, %v5686
        %v5719 = vmax.f32 %v5655, %v5687
        %v5720 = vmax.f32 %v5656, %v5688
        %v5721 = vmax.f32 %v5657, %v5689
        %v5722 = vmax.f32 %v5658, %v5690
        %v5723 = vmax.f32 %v5659, %v5691
        %v5724 = vmax.f32 %v5660, %v5692
        %v5725 = vmax.f32 %v5661, %v5693
        %v5726 = vmax.f32 %v5662, %v5694
        %v5727 = vmax.f32 %v5663, %v5695
        %v5728 = vmax.f32 %v5664, %v5696
        %v5729 = vmax.f32 %v5665, %v5697
        %v5730 = vld [vmem:[%s8] sm:$0xff]
        %v5731 = vld [vmem:[%s8 + $0x8] sm:$0xff]
        %v5732 = vld [vmem:[%s8 + $0x10] sm:$0xff]
        %v5733 = vld [vmem:[%s8 + $0x18] sm:$0xff]
        %v5734 = vld [vmem:[%s8 + $0x20] sm:$0xff]
        %v5735 = vld [vmem:[%s8 + $0x28] sm:$0xff]
        %v5736 = vld [vmem:[%s8 + $0x30] sm:$0xff]
        %v5737 = vld [vmem:[%s8 + $0x38] sm:$0xff]
        %v5738 = vld [vmem:[%s8 + $0x40] sm:$0xff]
        %v5739 = vld [vmem:[%s8 + $0x48] sm:$0xff]
        %v5740 = vld [vmem:[%s8 + $0x50] sm:$0xff]
        %v5741 = vld [vmem:[%s8 + $0x58] sm:$0xff]
        %v5742 = vld [vmem:[%s8 + $0x60] sm:$0xff]
        %v5743 = vld [vmem:[%s8 + $0x68] sm:$0xff]
        %v5744 = vld [vmem:[%s8 + $0x70] sm:$0xff]
        %v5745 = vld [vmem:[%s8 + $0x78] sm:$0xff]
        %v5746 = vld [vmem:[%s1102 + $0x1] sm:$0xff]
        %v5747 = vld [vmem:[%s1102 + $0x9] sm:$0xff]
        %v5748 = vld [vmem:[%s1102 + $0x19] sm:$0xff]
        %v5749 = vld [vmem:[%s1102 + $0x21] sm:$0xff]
        %v5750 = vld [vmem:[%s1102 + $0x31] sm:$0xff]
        %v5751 = vld [vmem:[%s1102 + $0x39] sm:$0xff]
        %v5752 = vld [vmem:[%s1102 + $0x49] sm:$0xff]
        %v5753 = vld [vmem:[%s1102 + $0x51] sm:$0xff]
        %v5754 = vld [vmem:[%s1102 + $0x61] sm:$0xff]
        %v5755 = vld [vmem:[%s1102 + $0x69] sm:$0xff]
        %v5756 = vld [vmem:[%s1102 + $0x79] sm:$0xff]
        %v5757 = vld [vmem:[%s1102 + $0x81] sm:$0xff]
        %v5758 = vld [vmem:[%s1102 + $0x91] sm:$0xff]
        %v5759 = vld [vmem:[%s1102 + $0x99] sm:$0xff]
        %v5760 = vld [vmem:[%s1102 + $0xa9] sm:$0xff]
        %v5761 = vld [vmem:[%s1102 + $0xb1] sm:$0xff]
        %v5762 = vld [vmem:[%s1102 + $0xc1] sm:$0xff]
        %v5763 = vld [vmem:[%s1102 + $0xc9] sm:$0xff]
        %v5764 = vld [vmem:[%s1102 + $0xd9] sm:$0xff]
        %v5765 = vld [vmem:[%s1102 + $0xe1] sm:$0xff]
        %v5766 = vld [vmem:[%s1102 + $0xf1] sm:$0xff]
        %v5767 = vld [vmem:[%s1102 + $0xf9] sm:$0xff]
        %v5768 = vld [vmem:[%s1102 + $0x109] sm:$0xff]
        %v5769 = vld [vmem:[%s1102 + $0x111] sm:$0xff]
        %v5770 = vld [vmem:[%s1102 + $0x121] sm:$0xff]
        %v5771 = vld [vmem:[%s1102 + $0x129] sm:$0xff]
        %v5772 = vld [vmem:[%s1102 + $0x139] sm:$0xff]
        %v5773 = vld [vmem:[%s1102 + $0x141] sm:$0xff]
        %v5774 = vld [vmem:[%s1102 + $0x151] sm:$0xff]
        %v5775 = vld [vmem:[%s1102 + $0x159] sm:$0xff]
        %v5776 = vld [vmem:[%s1102 + $0x169] sm:$0xff]
        %v5777 = vld [vmem:[%s1102 + $0x171] sm:$0xff]
        %5778 = vmatpush.msra.mxu0 %v5761
        %5779 = vmatpush.msra.mxu0 %v5760
        %5780 = vmatpush.msra.mxu0 %v5759
        %5781 = vmatpush.msra.mxu0 %v5758
        %5782 = vmatpush.msra.mxu0 %v5757
        %5783 = vmatpush.msra.mxu0 %v5756
        %5784 = vmatpush.msra.mxu0 %v5755
        %5785 = vmatpush.msra.mxu0 %v5754
        %5786 = vmatpush.msra.mxu0 %v5753
        %5787 = vmatpush.msra.mxu0 %v5752
        %5788 = vmatpush.msra.mxu0 %v5751
        %5789 = vmatpush.msra.mxu0 %v5750
        %5790 = vmatpush.msra.mxu0 %v5749
        %5791 = vmatpush.msra.mxu0 %v5748
        %5792 = vmatpush.msra.mxu0 %v5747
        %5793 = vmatpush.msra.mxu0 %v5746
        %5794 = vmatmul.f32.gmra.mxu0 %v5730
        %v5795 = vpop.f32.mrf.mxu0
        %v5796 = vadd.f32 0.0, %v5795
        %5797 = vmatmul.f32.gmra.mxu0 %v5732
        %v5798 = vpop.f32.mrf.mxu0
        %v5799 = vadd.f32 0.0, %v5798
        %5800 = vmatmul.f32.gmra.mxu0 %v5734
        %v5801 = vpop.f32.mrf.mxu0
        %v5802 = vadd.f32 0.0, %v5801
        %5803 = vmatmul.f32.gmra.mxu0 %v5736
        %v5804 = vpop.f32.mrf.mxu0
        %v5805 = vadd.f32 0.0, %v5804
        %5806 = vmatmul.f32.gmra.mxu0 %v5738
        %v5807 = vpop.f32.mrf.mxu0
        %v5808 = vadd.f32 0.0, %v5807
        %5809 = vmatmul.f32.gmra.mxu0 %v5740
        %v5810 = vpop.f32.mrf.mxu0
        %v5811 = vadd.f32 0.0, %v5810
        %5812 = vmatmul.f32.gmra.mxu0 %v5742
        %v5813 = vpop.f32.mrf.mxu0
        %v5814 = vadd.f32 0.0, %v5813
        %5815 = vmatmul.f32.gmra.mxu0 %v5744
        %v5816 = vpop.f32.mrf.mxu0
        %v5817 = vadd.f32 0.0, %v5816
        %5818 = vdwg.mxu0
        %5819 = vmatpush.msra.mxu0 %v5777
        %5820 = vmatpush.msra.mxu0 %v5776
        %5821 = vmatpush.msra.mxu0 %v5775
        %5822 = vmatpush.msra.mxu0 %v5774
        %5823 = vmatpush.msra.mxu0 %v5773
        %5824 = vmatpush.msra.mxu0 %v5772
        %5825 = vmatpush.msra.mxu0 %v5771
        %5826 = vmatpush.msra.mxu0 %v5770
        %5827 = vmatpush.msra.mxu0 %v5769
        %5828 = vmatpush.msra.mxu0 %v5768
        %5829 = vmatpush.msra.mxu0 %v5767
        %5830 = vmatpush.msra.mxu0 %v5766
        %5831 = vmatpush.msra.mxu0 %v5765
        %5832 = vmatpush.msra.mxu0 %v5764
        %5833 = vmatpush.msra.mxu0 %v5763
        %5834 = vmatpush.msra.mxu0 %v5762
        %5835 = vmatmul.f32.gmra.mxu0 %v5731
        %v5836 = vpop.f32.mrf.mxu0
        %v5837 = vadd.f32 %v5796, %v5836
        %5838 = vmatmul.f32.gmra.mxu0 %v5733
        %v5839 = vpop.f32.mrf.mxu0
        %v5840 = vadd.f32 %v5799, %v5839
        %5841 = vmatmul.f32.gmra.mxu0 %v5735
        %v5842 = vpop.f32.mrf.mxu0
        %v5843 = vadd.f32 %v5802, %v5842
        %5844 = vmatmul.f32.gmra.mxu0 %v5737
        %v5845 = vpop.f32.mrf.mxu0
        %v5846 = vadd.f32 %v5805, %v5845
        %5847 = vmatmul.f32.gmra.mxu0 %v5739
        %v5848 = vpop.f32.mrf.mxu0
        %v5849 = vadd.f32 %v5808, %v5848
        %5850 = vmatmul.f32.gmra.mxu0 %v5741
        %v5851 = vpop.f32.mrf.mxu0
        %v5852 = vadd.f32 %v5811, %v5851
        %5853 = vmatmul.f32.gmra.mxu0 %v5743
        %v5854 = vpop.f32.mrf.mxu0
        %v5855 = vadd.f32 %v5814, %v5854
        %5856 = vmatmul.f32.gmra.mxu0 %v5745
        %v5857 = vpop.f32.mrf.mxu0
        %v5858 = vadd.f32 %v5817, %v5857
        %5859 = vdwg.mxu0
        %v5860 = vld [vmem:[%s6] sm:$0x3f]
        %v5861 = vld [vmem:[%s7] sm:$0x1]
        %v5863 = vperm.slane %v5861, 0
        %v5866 = vsel %vm398, %v5837, 0
        %v5869 = vsel %vm398, %v5840, 0
        %v5872 = vsel %vm398, %v5843, 0
        %v5875 = vsel %vm398, %v5846, 0
        %v5878 = vsel %vm398, %v5849, 0
        %v5881 = vsel %vm398, %v5852, 0
        %v5884 = vsel %vm398, %v5855, 0
        %v5887 = vsel %vm398, %v5858, 0
        %v5890 = vsel %vm495, %v5860, 0
        %5892 = vmatpush.msra.mxu0 0.0
        %5893 = vmatpush.msra.mxu0 0.0
        %5894 = vmatpush.msra.mxu0 0.0
        %5895 = vmatpush.msra.mxu0 0.0
        %5896 = vmatpush.msra.mxu0 0.0
        %5897 = vmatpush.msra.mxu0 0.0
        %5898 = vmatpush.msra.mxu0 0.0
        %5899 = vmatpush.msra.mxu0 0.0
        %5900 = vmatpush.msra.mxu0 0.0
        %5901 = vmatpush.msra.mxu0 0.0
        %5902 = vmatpush.msra.mxu0 0.0
        %5903 = vmatpush.msra.mxu0 0.0
        %5904 = vmatpush.msra.mxu0 0.0
        %5905 = vmatpush.msra.mxu0 0.0
        %5906 = vmatpush.msra.mxu0 0.0
        %5907 = vmatpush.msra.mxu0 %v5890
        %5908 = vmatmul.f32.gmra.mxu0 %v5866
        %v5909 = vpop.f32.mrf.mxu0
        %v5910 = vadd.f32 %v5863, %v5909
        %5911 = vmatmul.f32.gmra.mxu0 %v5869
        %v5912 = vpop.f32.mrf.mxu0
        %v5913 = vadd.f32 %v5863, %v5912
        %5914 = vmatmul.f32.gmra.mxu0 %v5872
        %v5915 = vpop.f32.mrf.mxu0
        %v5916 = vadd.f32 %v5863, %v5915
        %5917 = vmatmul.f32.gmra.mxu0 %v5875
        %v5918 = vpop.f32.mrf.mxu0
        %v5919 = vadd.f32 %v5863, %v5918
        %5920 = vmatmul.f32.gmra.mxu0 %v5878
        %v5921 = vpop.f32.mrf.mxu0
        %v5922 = vadd.f32 %v5863, %v5921
        %5923 = vmatmul.f32.gmra.mxu0 %v5881
        %v5924 = vpop.f32.mrf.mxu0
        %v5925 = vadd.f32 %v5863, %v5924
        %5926 = vmatmul.f32.gmra.mxu0 %v5884
        %v5927 = vpop.f32.mrf.mxu0
        %v5928 = vadd.f32 %v5863, %v5927
        %5929 = vmatmul.f32.gmra.mxu0 %v5887
        %v5930 = vpop.f32.mrf.mxu0
        %v5931 = vadd.f32 %v5863, %v5930
        %5932 = vdwg.mxu0
        %5933 = vmatpush.msra.mxu0 %v5713
        %5934 = vmatpush.msra.mxu0 %v5712
        %5935 = vmatpush.msra.mxu0 %v5711
        %5936 = vmatpush.msra.mxu0 %v5710
        %5937 = vmatpush.msra.mxu0 %v5709
        %5938 = vmatpush.msra.mxu0 %v5708
        %5939 = vmatpush.msra.mxu0 %v5707
        %5940 = vmatpush.msra.mxu0 %v5706
        %5941 = vmatpush.msra.mxu0 %v5705
        %5942 = vmatpush.msra.mxu0 %v5704
        %5943 = vmatpush.msra.mxu0 %v5703
        %5944 = vmatpush.msra.mxu0 %v5702
        %5945 = vmatpush.msra.mxu0 %v5701
        %5946 = vmatpush.msra.mxu0 %v5700
        %5947 = vmatpush.msra.mxu0 %v5699
        %5948 = vmatpush.msra.mxu0 %v5698
        %5949 = vmatmul.f32.gmra.mxu0 %v5730
        %v5950 = vpop.f32.mrf.mxu0
        %v5951 = vadd.f32 %v5910, %v5950
        %5952 = vmatmul.f32.gmra.mxu0 %v5732
        %v5953 = vpop.f32.mrf.mxu0
        %v5954 = vadd.f32 %v5913, %v5953
        %5955 = vmatmul.f32.gmra.mxu0 %v5734
        %v5956 = vpop.f32.mrf.mxu0
        %v5957 = vadd.f32 %v5916, %v5956
        %5958 = vmatmul.f32.gmra.mxu0 %v5736
        %v5959 = vpop.f32.mrf.mxu0
        %v5960 = vadd.f32 %v5919, %v5959
        %5961 = vmatmul.f32.gmra.mxu0 %v5738
        %v5962 = vpop.f32.mrf.mxu0
        %v5963 = vadd.f32 %v5922, %v5962
        %5964 = vmatmul.f32.gmra.mxu0 %v5740
        %v5965 = vpop.f32.mrf.mxu0
        %v5966 = vadd.f32 %v5925, %v5965
        %5967 = vmatmul.f32.gmra.mxu0 %v5742
        %v5968 = vpop.f32.mrf.mxu0
        %v5969 = vadd.f32 %v5928, %v5968
        %5970 = vmatmul.f32.gmra.mxu0 %v5744
        %v5971 = vpop.f32.mrf.mxu0
        %v5972 = vadd.f32 %v5931, %v5971
        %5973 = vdwg.mxu0
        %5974 = vmatpush.msra.mxu0 %v5729
        %5975 = vmatpush.msra.mxu0 %v5728
        %5976 = vmatpush.msra.mxu0 %v5727
        %5977 = vmatpush.msra.mxu0 %v5726
        %5978 = vmatpush.msra.mxu0 %v5725
        %5979 = vmatpush.msra.mxu0 %v5724
        %5980 = vmatpush.msra.mxu0 %v5723
        %5981 = vmatpush.msra.mxu0 %v5722
        %5982 = vmatpush.msra.mxu0 %v5721
        %5983 = vmatpush.msra.mxu0 %v5720
        %5984 = vmatpush.msra.mxu0 %v5719
        %5985 = vmatpush.msra.mxu0 %v5718
        %5986 = vmatpush.msra.mxu0 %v5717
        %5987 = vmatpush.msra.mxu0 %v5716
        %5988 = vmatpush.msra.mxu0 %v5715
        %5989 = vmatpush.msra.mxu0 %v5714
        %5990 = vmatmul.f32.gmra.mxu0 %v5731
        %v5991 = vpop.f32.mrf.mxu0
        %v5992 = vadd.f32 %v5951, %v5991
        %5993 = vmatmul.f32.gmra.mxu0 %v5733
        %v5994 = vpop.f32.mrf.mxu0
        %v5995 = vadd.f32 %v5954, %v5994
        %5996 = vmatmul.f32.gmra.mxu0 %v5735
        %v5997 = vpop.f32.mrf.mxu0
        %v5998 = vadd.f32 %v5957, %v5997
        %5999 = vmatmul.f32.gmra.mxu0 %v5737
        %v6000 = vpop.f32.mrf.mxu0
        %v6001 = vadd.f32 %v5960, %v6000
        %6002 = vmatmul.f32.gmra.mxu0 %v5739
        %v6003 = vpop.f32.mrf.mxu0
        %v6004 = vadd.f32 %v5963, %v6003
        %6005 = vmatmul.f32.gmra.mxu0 %v5741
        %v6006 = vpop.f32.mrf.mxu0
        %v6007 = vadd.f32 %v5966, %v6006
        %6008 = vmatmul.f32.gmra.mxu0 %v5743
        %v6009 = vpop.f32.mrf.mxu0
        %v6010 = vadd.f32 %v5969, %v6009
        %6011 = vmatmul.f32.gmra.mxu0 %v5745
        %v6012 = vpop.f32.mrf.mxu0
        %v6013 = vadd.f32 %v5972, %v6012
        %6014 = vdwg.mxu0
        %v6015 = vmul.f32 %v5992, 0.70710677
        %v6016 = vmul.f32 %v5995, 0.70710677
        %v6017 = vmul.f32 %v5998, 0.70710677
        %v6018 = vmul.f32 %v6001, 0.70710677
        %v6019 = vmul.f32 %v6004, 0.70710677
        %v6020 = vmul.f32 %v6007, 0.70710677
        %v6021 = vmul.f32 %v6010, 0.70710677
        %v6022 = vmul.f32 %v6013, 0.70710677
        %6023 = vst.msk [vmem:[%s325] sm:$0xff] %vm2929, %v6015
        %6024 = vst.msk [vmem:[%s325 + $0x8] sm:$0xff] %vm2929, %v6016
        %6025 = vst.msk [vmem:[%s325 + $0x10] sm:$0xff] %vm2929, %v6017
        %6026 = vst.msk [vmem:[%s325 + $0x18] sm:$0xff] %vm2929, %v6018
        %6027 = vst.msk [vmem:[%s325 + $0x20] sm:$0xff] %vm2929, %v6019
        %6028 = vst.msk [vmem:[%s325 + $0x28] sm:$0xff] %vm2929, %v6020
        %6029 = vst.msk [vmem:[%s325 + $0x30] sm:$0xff] %vm2929, %v6021
        %6030 = vst.msk [vmem:[%s325 + $0x38] sm:$0xff] %vm2929, %v6022
        %s6031 = sand.u32 %s225, 1
        %s6032 = scalar_lea.sflag [#allocation4], %s6031
        %s6033 = sand.u32 %s225, 1
        %s6034 = smul.addr %s6033, 64
        %s6035 = scalar_lea.vmem [#allocation3], %s6034
        // Predicated region
        $region57: #{residual_cc_block_forward.1} parent=55 // pred_check
          %p6036 = pneg %p235
        $region58: #{residual_cc_block_forward.1} parent=55 // pred_check_branch
          %6038 = sbr.rel (%p6036) target = $region60
        $region59: #{residual_cc_block_forward.1} parent=55 // pred_region
          %6040 = vsyncadd %s6032, 0
          %s6041 = smul.addr %s23, 8
          %s6042 = smul.addr %s6041, 8
          %s6043 = scalar_lea.hbm %s9, %s6042
          %s6044 = sshll.u32 %s6035, 4
          %s6045 = int_to_ptr.vmem [resolvable:$true] %s6044
          %s6046 = sshll.u32 %s6043, 4
          %s6047 = int_to_ptr.hbm [resolvable:$true] %s6046
          %6052 = dma.vmem_to_hbm [thread:$0]  %s6045, 1024, %s6047, %s6032, 128, 128, 8
        $region60: #{residual_cc_block_forward.1} parent=55 // pred_fallthru
          _
      $region56: #{residual_cc_block_forward.1} parent=5 // pred_fallthru
        _
      %p6053 = scmp.le.s32.totalorder 2, %s18
      // Predicated region
      $region61: #{residual_cc_block_forward.1} parent=5 // pred_check
        %p6054 = pneg %p6053
      $region62: #{residual_cc_block_forward.1} parent=5 // pred_check_branch
        %6056 = sbr.rel (%p6054) target = $region64
      $region63: #{residual_cc_block_forward.1} parent=5 // pred_region
        %s6057 = ssub.s32 %s18, 2
        // Predicated region
        $region65: #{residual_cc_block_forward.1} parent=63 // pred_check
          %p6058 = pneg %p241
        $region66: #{residual_cc_block_forward.1} parent=63 // pred_check_branch
          %6060 = sbr.rel (%p6058) target = $region68
        $region67: #{residual_cc_block_forward.1} parent=63 // pred_region
          %s6061 = sand.u32 %s226, 1
          %s6062 = scalar_lea.sflag [#allocation4], %s6061
          %s6063 = sand.u32 %s226, 1
          %s6064 = smul.addr %s6063, 64
          %s6065 = scalar_lea.vmem [#allocation3], %s6064
          %6067 = dma.done %s6062, 1024
        $region68: #{residual_cc_block_forward.1} parent=63 // pred_fallthru
          _
      $region64: #{residual_cc_block_forward.1} parent=5 // pred_fallthru
        _
    $region6: #{residual_cc_block_forward.1} parent=1 // loop_footer
      %s22 = sadd.s32 1, %s18
    $region7: #{residual_cc_block_forward.1} parent=1 // loop_footer_branch
      %17 = sbr.rel target = $region3
    $region8: #{residual_cc_block_forward.1} parent=1 // loop_exit
      _
    %6068 = vsyncpa [#allocation4], 1
    %s6069 = scalar_lea.sflag [#allocation4], 1
    %6070 = vsyncpa %s6069, 1

</llo_original>
